<compile_context>
chip_gen: v6e
topology: v6e:2x2x1
jax: 0.10.0
libtpu: 0.0.40
codegen_flags: <defaults>
</compile_context>

<pallas_src>
import functools

import numpy as np

import jax
import jax.numpy as jnp
from jax.experimental import pallas as pl
from jax.experimental.pallas import tpu as pltpu

PIXEL_MEAN = np.array([0.485, 0.456, 0.406], np.float32)
PIXEL_STD = np.array([0.229, 0.224, 0.225], np.float32)

_VMEM_LIMIT_CACHE = None


def _vmem_limit_bytes():
    """Generation-aware VMEM budget: ~75% of physical, capped at 100 MiB."""
    global _VMEM_LIMIT_CACHE
    if _VMEM_LIMIT_CACHE is None:
        cap = None
        try:
            cap = getattr(pltpu.get_tpu_info(), "vmem_capacity_bytes", None)
        except Exception:
            cap = None
        if not cap:
            cap = 64 * 1024 * 1024          # conservative (v7x physical VMEM)
        _VMEM_LIMIT_CACHE = int(min(cap * 3 // 4, 100 * 1024 * 1024))
    return _VMEM_LIMIT_CACHE


def _compiler_params(semantics):
    return pltpu.CompilerParams(dimension_semantics=semantics,
                                vmem_limit_bytes=_vmem_limit_bytes())


def _pick_tile(total, cap, min_blocks=2):
    """Largest multiple-of-8 divisor of `total` <= cap (prefer multiples of 16,
    prefer >= min_blocks grid blocks).  Fails loudly instead of blowing VMEM."""
    cands = [t for t in range(8, min(total, cap) + 1, 8) if total % t == 0]
    if not cands:
        raise ValueError(f"M={total} has no multiple-of-8 tile <= {cap}")
    pref = [t for t in cands if total // t >= min_blocks] or cands
    pref16 = [t for t in pref if t % 16 == 0] or pref
    return max(pref16)


def _pad_axis(a, mult, axis):
    size = a.shape[axis]
    rem = (-size) % mult
    if rem == 0:
        return a
    pads = [(0, 0)] * a.ndim
    pads[axis] = (0, rem)
    return jnp.pad(a, pads)


# --------------------------------------------------------------------------
# Pallas kernels
# --------------------------------------------------------------------------
def _band_conv_kernel(x_ref, w_ref, b_ref, o_ref, *, oh, act, gathered):
    """3x3 conv for one image, as 3 accumulated matmuls over row-banded weights.

    x_ref:  (1, Hp, Wp*Cin)      flattened padded rows        (gathered=False)
            (1, 3, OH, Wp*Cin)   pre-gathered strided rows    (gathered=True)
    w_ref:  (3, Wp*Cin, OW*Cout) banded weight per tap-row
    b_ref:  (1, OW*Cout)         bias tiled over OW
    o_ref:  (1, OH, OW*Cout)     lane-dense output
    """
    acc = None
    for di in range(w_ref.shape[0]):
        tap = x_ref[0, di] if gathered else x_ref[0, di:di + oh, :]
        p = jnp.dot(tap, w_ref[di], preferred_element_type=jnp.float32)
        acc = p if acc is None else acc + p
    acc = acc + b_ref[...]
    if act == "relu":
        acc = jnp.maximum(acc, 0.0)
    o_ref[0] = acc.astype(o_ref.dtype)


def _head_loss_kernel(a_ref, w_ref, b_ref, g_ref, part_ref, *, nc):
    """Fused 1x1 cls/wh heads + GaussianFocal + GIoU partials for one M tile.

    Accumulates into a single resident (8,128) block:
      sublane 0 = focal-loss sum, 1 = #positives, 2 = weighted (1-GIoU) sum,
      3 = reg-weight sum.
    """
    @pl.when(pl.program_id(0) == 0)
    def _init():
        part_ref[...] = jnp.zeros_like(part_ref)

    a = a_ref[...]                                               # (tm, 64) bf16
    preds = jnp.dot(a, w_ref[...],
                    preferred_element_type=jnp.float32) + b_ref[...]
    cls_logit = preds[:, :nc]
    wh_raw = preds[:, nc:nc + 4]
    pred_hm = jax.nn.sigmoid(cls_logit)
    # TODO(synk): wh_offset_base=16 / relu come from the (synthetic) TTFnetHead.
    pred_wh = jnp.maximum(wh_raw, 0.0) * 16.0

    g = g_ref[...]
    gt_hm = g[:, :nc]
    bt = g[:, nc:nc + 4]
    rw = g[:, nc + 4:nc + 5]
    loc = g[:, nc + 5:nc + 7]

    # GaussianFocalLoss(alpha=2, gamma=4): eps only inside the logs.
    eps = 1e-12
    pos_w = (gt_hm == 1.0).astype(jnp.float32)
    n1 = 1.0 - gt_hm
    neg_w = (n1 * n1) * (n1 * n1)                                # (1-gt)^4
    omp = 1.0 - pred_hm
    pos_loss = -jnp.log(pred_hm + eps) * (omp * omp) * pos_w
    neg_loss = -jnp.log(omp + eps) * (pred_hm * pred_hm) * neg_w
    hm_sum = jnp.sum(pos_loss + neg_loss)
    pos_cnt = jnp.sum(pos_w)

    # GIoU: pred box = [loc - wh[0:2], loc + wh[2:4]]
    p_lo = loc - pred_wh[:, 0:2]
    p_hi = loc + pred_wh[:, 2:4]
    g_lo = bt[:, 0:2]
    g_hi = bt[:, 2:4]
    i_lo = jnp.maximum(p_lo, g_lo)
    i_hi = jnp.minimum(p_hi, g_hi)
    iwh = jnp.maximum(i_hi - i_lo, 0.0)
    inter = iwh[:, 0:1] * iwh[:, 1:2]
    pwh = p_hi - p_lo
    gwh = g_hi - g_lo
    area_p = pwh[:, 0:1] * pwh[:, 1:2]
    area_g = gwh[:, 0:1] * gwh[:, 1:2]
    union = jnp.maximum(area_p + area_g - inter, 1e-7)
    ious = inter * pl.reciprocal(union, approx=True)
    e_lo = jnp.minimum(p_lo, g_lo)
    e_hi = jnp.maximum(p_hi, g_hi)
    ewh = jnp.maximum(e_hi - e_lo, 0.0)
    enclose = jnp.maximum(ewh[:, 0:1] * ewh[:, 1:2], 1e-7)
    gious = ious - (enclose - union) * pl.reciprocal(enclose, approx=True)

    pos_m = (rw > 0.0).astype(jnp.float32)
    wh_sum = jnp.sum((1.0 - gious) * rw * pos_m)
    w_sum = jnp.sum(rw)

    sub = jax.lax.broadcasted_iota(jnp.int32, (8, 128), 0)
    part_ref[...] += (jnp.where(sub == 0, hm_sum, 0.0)
                      + jnp.where(sub == 1, pos_cnt, 0.0)
                      + jnp.where(sub == 2, wh_sum, 0.0)
                      + jnp.where(sub == 3, w_sum, 0.0))


# --------------------------------------------------------------------------
# Pallas wrappers
# --------------------------------------------------------------------------
def band_conv(x, bw, bias, *, oh, act, gathered, out_dtype=jnp.bfloat16):
    """Per-image banded-matmul 3x3 conv; whole image block resident in VMEM."""
    n = x.shape[0]
    owc = bw.shape[2]
    in_block = x.shape[1:]
    nd_in = len(in_block)
    kernel = functools.partial(_band_conv_kernel, oh=oh, act=act,
                               gathered=gathered)
    return pl.pallas_call(
        kernel,
        grid=(n,),
        in_specs=[pl.BlockSpec((1,) + in_block, lambda i: (i,) + (0,) * nd_in),
                  pl.BlockSpec(bw.shape, lambda i: (0, 0, 0)),
                  pl.BlockSpec(bias.shape, lambda i: (0, 0))],
        out_specs=pl.BlockSpec((1, oh, owc), lambda i: (i, 0, 0)),
        out_shape=jax.ShapeDtypeStruct((n, oh, owc), out_dtype),
        compiler_params=_compiler_params(("parallel",)),
    )(x, bw, bias)


def fused_head_losses(head_rows, w1, b1, gt_pack, *, nc):
    """Fused 1x1 heads + losses; resident-accumulated (8,128) partial sums."""
    m, c_head = head_rows.shape
    gdim = gt_pack.shape[1]
    tm = _pick_tile(m, cap=128)            # capped -> bounded vreg pressure
    grid_m = m // tm
    return pl.pallas_call(
        functools.partial(_head_loss_kernel, nc=nc),
        grid=(grid_m,),
        in_specs=[pl.BlockSpec((tm, c_head), lambda i: (i, 0)),
                  pl.BlockSpec((c_head, nc + 4), lambda i: (0, 0)),
                  pl.BlockSpec((1, nc + 4), lambda i: (0, 0)),
                  pl.BlockSpec((tm, gdim), lambda i: (i, 0))],
        out_specs=pl.BlockSpec((8, 128), lambda i: (0, 0)),
        out_shape=jax.ShapeDtypeStruct((8, 128), jnp.float32),
        compiler_params=_compiler_params(("arbitrary",)),
    )(head_rows, w1, b1, gt_pack)


# --------------------------------------------------------------------------
# Banded weight construction (XLA-side, tiny, built once per call)
# --------------------------------------------------------------------------
def _band_weights(w, out_w, in_w, stride, dtype=jnp.bfloat16):
    """w: (Cout, Cin, 3, 3) torch layout -> (3, in_w*Cin, out_w*Cout) banded."""
    cout, cin, kh, kw = w.shape
    sel = np.zeros((kw, in_w, out_w), np.float32)
    for dj in range(kw):
        for ox in range(out_w):
            iw = ox * stride + dj
            if 0 <= iw < in_w:
                sel[dj, iw, ox] = 1.0
    bw = jnp.einsum("ocdj,jwx->dwcxo", w.astype(jnp.float32), jnp.asarray(sel))
    return bw.reshape(kh, in_w * cin, out_w * cout).astype(dtype)


def _tiled_bias(b, out_w):
    return jnp.tile(b.astype(jnp.float32), out_w).reshape(1, out_w * b.shape[0])


# --------------------------------------------------------------------------
# Synthetic TTFNet (parameters, GT, forward)
# --------------------------------------------------------------------------
def init_params(key, num_classes):
    def conv_w(k, cout, cin, ksz):
        return jax.random.normal(k, (cout, cin, ksz, ksz), jnp.float32) * 0.05

    ks = jax.random.split(key, 6)
    return {
        "backbone_w": conv_w(ks[0], 16, 3, 3), "backbone_b": jnp.zeros((16,)),
        "up_w": conv_w(ks[1], 16, 16, 3), "up_b": jnp.zeros((16,)),
        "cls_w1": conv_w(ks[2], 32, 16, 3), "cls_b1": jnp.zeros((32,)),
        "cls_w2": conv_w(ks[3], num_classes, 32, 1),
        "cls_b2": jnp.full((num_classes,), -2.19, jnp.float32),
        "wh_w1": conv_w(ks[4], 32, 16, 3), "wh_b1": jnp.zeros((32,)),
        "wh_w2": conv_w(ks[5], 4, 32, 1), "wh_b2": jnp.zeros((4,)),
    }


def make_synthetic_gt(N, num_classes, H, W, down_ratio):
    # TODO(synk): real GT comes from TTFNetGT.generate(cfg, annotations).
    heat = jnp.zeros((N, num_classes, H, W), jnp.float32)
    box_t = jnp.full((N, 4, H, W), -1.0, jnp.float32)
    reg_w = jnp.zeros((N, 1, H, W), jnp.float32)
    ys = jnp.arange(H, dtype=jnp.float32)[:, None]
    xs = jnp.arange(W, dtype=jnp.float32)[None, :]
    objects = [(0, 1, 3, 4, 10.0, 12.0), (1, 2, 5, 2, 8.0, 14.0)]  # n,cls,cy,cx,bw,bh
    for n, c, cy, cx, bw, bh in objects:
        g = jnp.exp(-(((xs - cx) ** 2) + ((ys - cy) ** 2)) / (2.0 * 1.5 ** 2))
        heat = heat.at[n, c].set(jnp.maximum(heat[n, c], g))
        heat = heat.at[n, c, cy, cx].set(1.0)
        xc, yc = cx * down_ratio, cy * down_ratio
        box = jnp.array([xc - bw / 2, yc - bh / 2, xc + bw / 2, yc + bh / 2],
                        jnp.float32)
        mask = g > 0.3
        box_t = box_t.at[n].set(jnp.where(mask[None], box[:, None, None], box_t[n]))
        reg_w = reg_w.at[n, 0].set(jnp.maximum(reg_w[n, 0], jnp.where(mask, g, 0.0)))
    return {"heatmaps": heat, "box_targets": box_t, "reg_weights": reg_w}


def ttfnet_forward(images, params, gt, down_ratio=4):
    """images: (N,3,H,W) raw pixels in [0,255]; returns {'hm_loss','wh_loss'}."""
    n, _, h, w = images.shape
    nc = params["cls_w2"].shape[0]
    x = images.transpose(0, 2, 3, 1)                       # NHWC raw pixels

    # --- backbone: 3x3 s8 conv + relu, (x/255 - mean)/std folded in exactly ---
    # TODO(synk): real build_backbone(cfg) is a deep CNN; stride-8 stand-in here.
    scale = 1.0 / (255.0 * PIXEL_STD)
    shift = -PIXEL_MEAN / PIXEL_STD
    w1 = params["backbone_w"] * scale[None, :, None, None]
    b1 = params["backbone_b"] + jnp.sum(
        params["backbone_w"] * shift[None, :, None, None], axis=(1, 2, 3))
    stride = 8
    pad_pix = 255.0 * PIXEL_MEAN                           # normalizes to exactly 0
    xpad = jnp.pad(x - pad_pix, ((0, 0), (1, 1), (1, 1), (0, 0))) + pad_pix
    hp, wp = h + 2, w + 2
    oh_b = (hp - 3) // stride + 1
    ow_b = (wp - 3) // stride + 1
    # stride-8 -> gather only the 3*OH needed rows (a reduction, not an im2col)
    ridx = np.arange(3)[:, None] + stride * np.arange(oh_b)[None, :]
    xg = xpad[:, ridx].reshape(n, 3, oh_b, wp * 3).astype(jnp.bfloat16)
    xg = _pad_axis(xg, 8, -1)
    bw1 = _pad_axis(_band_weights(w1, ow_b, wp, stride), 8, 1)
    feat = band_conv(xg, bw1, _tiled_bias(b1, ow_b), oh=oh_b, act="relu",
                     gathered=True)                        # (n, oh_b, ow_b*16)
    feat = feat.reshape(n, oh_b, ow_b, 16)

    # --- x2 nearest upsample folded into the padded-input gather + 3x3 conv ---
    # TODO(synk): real CenternetDeconv uses learned ConvTranspose2d stacks.
    hf, wf = oh_b * 2, ow_b * 2
    uidx = np.clip((np.arange(hf + 2) - 1) // 2, 0, oh_b - 1)
    uval = (np.arange(hf + 2) >= 1) & (np.arange(hf + 2) <= hf)
    t = feat[:, uidx][:, :, uidx, :]
    umask = jnp.asarray((uval[:, None] & uval[None, :])[None, :, :, None])
    up_in = jnp.where(umask, t, jnp.zeros((), feat.dtype))
    up_in = up_in.reshape(n, hf + 2, (wf + 2) * 16)
    bw2 = _band_weights(params["up_w"], wf, wf + 2, 1)
    up = band_conv(up_in, bw2, _tiled_bias(params["up_b"], wf), oh=hf,
                   act="relu", gathered=False)             # (n, hf, wf*16)

    # --- fused cls/wh 3x3 head conv (shared input read, Cout = 64) ---
    up4 = up.reshape(n, hf, wf, 16)
    hpad = jnp.pad(up4, ((0, 0), (1, 1), (1, 1), (0, 0)))
    hpad = hpad.reshape(n, hf + 2, (wf + 2) * 16)
    w_h = jnp.concatenate([params["cls_w1"], params["wh_w1"]], axis=0)
    b_h = jnp.concatenate([params["cls_b1"], params["wh_b1"]], axis=0)
    c_head = w_h.shape[0]
    bw3 = _band_weights(w_h, wf, wf + 2, 1)
    head = band_conv(hpad, bw3, _tiled_bias(b_h, wf), oh=hf, act="relu",
                     gathered=False)                       # (n, hf, wf*64) lane-dense
    m = n * hf * wf
    head_rows = head.reshape(m, c_head)                    # free row-major reshape

    # --- fused 1x1 heads (block-diagonal, single matmul) + losses ---
    # TODO(synk): fusing the 3x3 head conv into the loss kernel would also drop
    # this (M, 64) bf16 activation round-trip.
    c_mid = params["cls_w1"].shape[0]
    w_1x1 = jnp.zeros((c_head, nc + 4), jnp.float32)
    w_1x1 = w_1x1.at[:c_mid, :nc].set(params["cls_w2"].reshape(nc, c_mid).T)
    w_1x1 = w_1x1.at[c_mid:, nc:].set(params["wh_w2"].reshape(4, c_mid).T)
    b_1x1 = jnp.concatenate([params["cls_b2"], params["wh_b2"]]).reshape(1, nc + 4)

    hm_rows = gt["heatmaps"].transpose(0, 2, 3, 1).reshape(m, nc)
    bt_rows = gt["box_targets"].transpose(0, 2, 3, 1).reshape(m, 4)
    rw_rows = gt["reg_weights"].transpose(0, 2, 3, 1).reshape(m, 1)
    sx = jnp.arange(wf, dtype=jnp.float32) * down_ratio
    sy = jnp.arange(hf, dtype=jnp.float32) * down_ratio
    gy, gx = jnp.meshgrid(sy, sx, indexing="ij")
    loc_rows = jnp.tile(jnp.stack([gx, gy], axis=-1).reshape(hf * wf, 2), (n, 1))
    gt_pack = jnp.concatenate([hm_rows, bt_rows, rw_rows, loc_rows],
                              axis=1).astype(jnp.float32)  # (M, nc+7): one DMA/tile

    partials = fused_head_losses(head_rows, w_1x1.astype(jnp.bfloat16),
                                 b_1x1.astype(jnp.float32), gt_pack, nc=nc)
    hm_sum, pos_cnt = partials[0, 0], partials[1, 0]
    wh_sum, w_sum = partials[2, 0], partials[3, 0]

    hm_loss = hm_sum / jnp.maximum(1.0, pos_cnt)           # avg_factor = max(1, #gt==1)
    wh_loss = 5.0 * wh_sum / (w_sum + 0.0001)              # GIoULoss(loss_weight=5)
    return {"hm_loss": hm_loss, "wh_loss": wh_loss}


if __name__ == "__main__":
    key = jax.random.PRNGKey(0)
    k_img, k_par = jax.random.split(key)

    N, H, W = 2, 32, 32
    num_classes = 4
    down_ratio = 4

    images = jax.random.uniform(k_img, (N, 3, H, W), jnp.float32, 0.0, 255.0)
    params = init_params(k_par, num_classes)
    gt = make_synthetic_gt(N, num_classes, H // down_ratio, W // down_ratio,
                           down_ratio)

    fwd = jax.jit(functools.partial(ttfnet_forward, down_ratio=down_ratio))
    losses = fwd(images, params, gt)
    losses = {k: jax.block_until_ready(v) for k, v in losses.items()}
    assert all(bool(jnp.isfinite(v)) for v in losses.values())
    print("KERNEL_OK")
</pallas_src>

<mosaic_0001>
module attributes {stable_mosaic.version = 11 : i64} {
  func.func @_band_conv_kernel(%arg0: i32, %arg1: memref<1x3x4x104xbf16, #tpu.memory_space<vmem>>, %arg2: memref<3x104x64xbf16, #tpu.memory_space<vmem>>, %arg3: memref<1x64xf32, #tpu.memory_space<vmem>>, %arg4: memref<1x4x64xbf16, #tpu.memory_space<vmem>>) attributes {dimension_semantics = [#tpu.dimension_semantics<parallel>], iteration_bounds = array<i64: 2>, scalar_prefetch = 0 : i64, scratch_operands = 0 : i64, tpu.core_type = #tpu.core_type<tc>, window_params = [{transform_indices = @transform_0, window_bounds = array<i64: 1, 3, 4, 104>}, {pipeline_mode = #tpu.pipeline_mode<synchronous>, transform_indices = @transform_1, window_bounds = array<i64: 3, 104, 64>}, {pipeline_mode = #tpu.pipeline_mode<synchronous>, transform_indices = @transform_2, window_bounds = array<i64: 1, 64>}, {transform_indices = @transform_3, window_bounds = array<i64: 1, 4, 64>}]} {
    %c0 = arith.constant 0 : index
    %c0_0 = arith.constant 0 : index
    %c0_1 = arith.constant 0 : index
    %c0_2 = arith.constant 0 : index
    %0 = vector.load %arg1[%c0, %c0_0, %c0_1, %c0_2] : memref<1x3x4x104xbf16, #tpu.memory_space<vmem>>, vector<1x1x4x104xbf16>
    %1 = vector.shape_cast %0 : vector<1x1x4x104xbf16> to vector<4x104xbf16>
    %c0_3 = arith.constant 0 : index
    %c0_4 = arith.constant 0 : index
    %c0_5 = arith.constant 0 : index
    %2 = vector.load %arg2[%c0_3, %c0_4, %c0_5] : memref<3x104x64xbf16, #tpu.memory_space<vmem>>, vector<1x104x64xbf16>
    %3 = vector.shape_cast %2 : vector<1x104x64xbf16> to vector<104x64xbf16>
    %cst = arith.constant dense<0.000000e+00> : vector<4x64xf32>
    %4 = tpu.matmul %1, %3, %cst {dimension_numbers = #tpu.dot_dimension_numbers<[1], [0], [0], [1], [0, 0, 1, 1], [], []>} : vector<4x104xbf16>, vector<104x64xbf16>, vector<4x64xf32> -> vector<4x64xf32>
    %c0_6 = arith.constant 0 : index
    %c1 = arith.constant 1 : index
    %c0_7 = arith.constant 0 : index
    %c0_8 = arith.constant 0 : index
    %5 = vector.load %arg1[%c0_6, %c1, %c0_7, %c0_8] : memref<1x3x4x104xbf16, #tpu.memory_space<vmem>>, vector<1x1x4x104xbf16>
    %6 = vector.shape_cast %5 : vector<1x1x4x104xbf16> to vector<4x104xbf16>
    %c1_9 = arith.constant 1 : index
    %c0_10 = arith.constant 0 : index
    %c0_11 = arith.constant 0 : index
    %7 = vector.load %arg2[%c1_9, %c0_10, %c0_11] : memref<3x104x64xbf16, #tpu.memory_space<vmem>>, vector<1x104x64xbf16>
    %8 = vector.shape_cast %7 : vector<1x104x64xbf16> to vector<104x64xbf16>
    %cst_12 = arith.constant dense<0.000000e+00> : vector<4x64xf32>
    %9 = tpu.matmul %6, %8, %cst_12 {dimension_numbers = #tpu.dot_dimension_numbers<[1], [0], [0], [1], [0, 0, 1, 1], [], []>} : vector<4x104xbf16>, vector<104x64xbf16>, vector<4x64xf32> -> vector<4x64xf32>
    %10 = arith.addf %4, %9 : vector<4x64xf32>
    %c0_13 = arith.constant 0 : index
    %c2 = arith.constant 2 : index
    %c0_14 = arith.constant 0 : index
    %c0_15 = arith.constant 0 : index
    %11 = vector.load %arg1[%c0_13, %c2, %c0_14, %c0_15] : memref<1x3x4x104xbf16, #tpu.memory_space<vmem>>, vector<1x1x4x104xbf16>
    %12 = vector.shape_cast %11 : vector<1x1x4x104xbf16> to vector<4x104xbf16>
    %c2_16 = arith.constant 2 : index
    %c0_17 = arith.constant 0 : index
    %c0_18 = arith.constant 0 : index
    %13 = vector.load %arg2[%c2_16, %c0_17, %c0_18] : memref<3x104x64xbf16, #tpu.memory_space<vmem>>, vector<1x104x64xbf16>
    %14 = vector.shape_cast %13 : vector<1x104x64xbf16> to vector<104x64xbf16>
    %cst_19 = arith.constant dense<0.000000e+00> : vector<4x64xf32>
    %15 = tpu.matmul %12, %14, %cst_19 {dimension_numbers = #tpu.dot_dimension_numbers<[1], [0], [0], [1], [0, 0, 1, 1], [], []>} : vector<4x104xbf16>, vector<104x64xbf16>, vector<4x64xf32> -> vector<4x64xf32>
    %16 = arith.addf %10, %15 : vector<4x64xf32>
    %c0_20 = arith.constant 0 : index
    %c0_21 = arith.constant 0 : index
    %17 = vector.load %arg3[%c0_20, %c0_21] : memref<1x64xf32, #tpu.memory_space<vmem>>, vector<1x64xf32>
    %18 = vector.broadcast %17 : vector<1x64xf32> to vector<4x64xf32>
    %19 = arith.addf %16, %18 : vector<4x64xf32>
    %cst_22 = arith.constant 0.000000e+00 : f32
    %20 = vector.broadcast %cst_22 : f32 to vector<4x64xf32>
    %21 = arith.maximumf %19, %20 : vector<4x64xf32>
    %22 = arith.truncf %21 : vector<4x64xf32> to vector<4x64xbf16>
    %c0_23 = arith.constant 0 : index
    %c0_24 = arith.constant 0 : index
    %c0_25 = arith.constant 0 : index
    %23 = vector.load %arg4[%c0_23, %c0_24, %c0_25] : memref<1x4x64xbf16, #tpu.memory_space<vmem>>, vector<1x4x64xbf16>
    %24 = vector.shape_cast %23 : vector<1x4x64xbf16> to vector<4x64xbf16>
    %25 = vector.shape_cast %22 : vector<4x64xbf16> to vector<1x4x64xbf16>
    tpu.vector_store %arg4[%c0_23, %c0_24, %c0_25], %25 {strides = array<i32>} : memref<1x4x64xbf16, #tpu.memory_space<vmem>>, vector<1x4x64xbf16>,
    return
  }
  func.func @transform_0(%arg0: i32) -> (i32, i32, i32, i32) {
    %c0_i32 = arith.constant 0 : i32
    %c0_i32_0 = arith.constant 0 : i32
    %c0_i32_1 = arith.constant 0 : i32
    %c0_i32_2 = arith.constant 0 : i32
    return %arg0, %c0_i32, %c0_i32_0, %c0_i32_1 : i32, i32, i32, i32
  }
  func.func @transform_1(%arg0: i32) -> (i32, i32, i32) {
    %c0_i32 = arith.constant 0 : i32
    %c0_i32_0 = arith.constant 0 : i32
    %c0_i32_1 = arith.constant 0 : i32
    %c0_i32_2 = arith.constant 0 : i32
    return %c0_i32, %c0_i32_0, %c0_i32_1 : i32, i32, i32
  }
  func.func @transform_2(%arg0: i32) -> (i32, i32) {
    %c0_i32 = arith.constant 0 : i32
    %c0_i32_0 = arith.constant 0 : i32
    %c0_i32_1 = arith.constant 0 : i32
    return %c0_i32, %c0_i32_0 : i32, i32
  }
  func.func @transform_3(%arg0: i32) -> (i32, i32, i32) {
    %c0_i32 = arith.constant 0 : i32
    %c0_i32_0 = arith.constant 0 : i32
    %c0_i32_1 = arith.constant 0 : i32
    return %arg0, %c0_i32, %c0_i32_0 : i32, i32, i32
  }
}

module attributes {stable_mosaic.version = 11 : i64} {
  func.func @_band_conv_kernel(%arg0: i32, %arg1: memref<1x10x160xbf16, #tpu.memory_space<vmem>>, %arg2: memref<3x160x128xbf16, #tpu.memory_space<vmem>>, %arg3: memref<1x128xf32, #tpu.memory_space<vmem>>, %arg4: memref<1x8x128xbf16, #tpu.memory_space<vmem>>) attributes {dimension_semantics = [#tpu.dimension_semantics<parallel>], iteration_bounds = array<i64: 2>, scalar_prefetch = 0 : i64, scratch_operands = 0 : i64, tpu.core_type = #tpu.core_type<tc>, window_params = [{transform_indices = @transform_0, window_bounds = array<i64: 1, 10, 160>}, {pipeline_mode = #tpu.pipeline_mode<synchronous>, transform_indices = @transform_1, window_bounds = array<i64: 3, 160, 128>}, {pipeline_mode = #tpu.pipeline_mode<synchronous>, transform_indices = @transform_2, window_bounds = array<i64: 1, 128>}, {transform_indices = @transform_3, window_bounds = array<i64: 1, 8, 128>}]} {
    %c0 = arith.constant 0 : index
    %c0_0 = arith.constant 0 : index
    %c0_1 = arith.constant 0 : index
    %0 = vector.load %arg1[%c0, %c0_0, %c0_1] : memref<1x10x160xbf16, #tpu.memory_space<vmem>>, vector<1x8x160xbf16>
    %1 = vector.shape_cast %0 : vector<1x8x160xbf16> to vector<8x160xbf16>
    %c0_2 = arith.constant 0 : index
    %c0_3 = arith.constant 0 : index
    %c0_4 = arith.constant 0 : index
    %2 = vector.load %arg2[%c0_2, %c0_3, %c0_4] : memref<3x160x128xbf16, #tpu.memory_space<vmem>>, vector<1x160x128xbf16>
    %3 = vector.shape_cast %2 : vector<1x160x128xbf16> to vector<160x128xbf16>
    %cst = arith.constant dense<0.000000e+00> : vector<8x128xf32>
    %4 = tpu.matmul %1, %3, %cst {dimension_numbers = #tpu.dot_dimension_numbers<[1], [0], [0], [1], [0, 0, 1, 1], [], []>} : vector<8x160xbf16>, vector<160x128xbf16>, vector<8x128xf32> -> vector<8x128xf32>
    %c0_5 = arith.constant 0 : index
    %c1 = arith.constant 1 : index
    %c0_6 = arith.constant 0 : index
    %5 = vector.load %arg1[%c0_5, %c1, %c0_6] : memref<1x10x160xbf16, #tpu.memory_space<vmem>>, vector<1x8x160xbf16>
    %6 = vector.shape_cast %5 : vector<1x8x160xbf16> to vector<8x160xbf16>
    %c1_7 = arith.constant 1 : index
    %c0_8 = arith.constant 0 : index
    %c0_9 = arith.constant 0 : index
    %7 = vector.load %arg2[%c1_7, %c0_8, %c0_9] : memref<3x160x128xbf16, #tpu.memory_space<vmem>>, vector<1x160x128xbf16>
    %8 = vector.shape_cast %7 : vector<1x160x128xbf16> to vector<160x128xbf16>
    %cst_10 = arith.constant dense<0.000000e+00> : vector<8x128xf32>
    %9 = tpu.matmul %6, %8, %cst_10 {dimension_numbers = #tpu.dot_dimension_numbers<[1], [0], [0], [1], [0, 0, 1, 1], [], []>} : vector<8x160xbf16>, vector<160x128xbf16>, vector<8x128xf32> -> vector<8x128xf32>
    %10 = arith.addf %4, %9 : vector<8x128xf32>
    %c0_11 = arith.constant 0 : index
    %c2 = arith.constant 2 : index
    %c0_12 = arith.constant 0 : index
    %11 = vector.load %arg1[%c0_11, %c2, %c0_12] : memref<1x10x160xbf16, #tpu.memory_space<vmem>>, vector<1x8x160xbf16>
    %12 = vector.shape_cast %11 : vector<1x8x160xbf16> to vector<8x160xbf16>
    %c2_13 = arith.constant 2 : index
    %c0_14 = arith.constant 0 : index
    %c0_15 = arith.constant 0 : index
    %13 = vector.load %arg2[%c2_13, %c0_14, %c0_15] : memref<3x160x128xbf16, #tpu.memory_space<vmem>>, vector<1x160x128xbf16>
    %14 = vector.shape_cast %13 : vector<1x160x128xbf16> to vector<160x128xbf16>
    %cst_16 = arith.constant dense<0.000000e+00> : vector<8x128xf32>
    %15 = tpu.matmul %12, %14, %cst_16 {dimension_numbers = #tpu.dot_dimension_numbers<[1], [0], [0], [1], [0, 0, 1, 1], [], []>} : vector<8x160xbf16>, vector<160x128xbf16>, vector<8x128xf32> -> vector<8x128xf32>
    %16 = arith.addf %10, %15 : vector<8x128xf32>
    %c0_17 = arith.constant 0 : index
    %c0_18 = arith.constant 0 : index
    %17 = vector.load %arg3[%c0_17, %c0_18] : memref<1x128xf32, #tpu.memory_space<vmem>>, vector<1x128xf32>
    %18 = vector.broadcast %17 : vector<1x128xf32> to vector<8x128xf32>
    %19 = arith.addf %16, %18 : vector<8x128xf32>
    %cst_19 = arith.constant 0.000000e+00 : f32
    %20 = vector.broadcast %cst_19 : f32 to vector<8x128xf32>
    %21 = arith.maximumf %19, %20 : vector<8x128xf32>
    %22 = arith.truncf %21 : vector<8x128xf32> to vector<8x128xbf16>
    %c0_20 = arith.constant 0 : index
    %c0_21 = arith.constant 0 : index
    %c0_22 = arith.constant 0 : index
    %23 = vector.load %arg4[%c0_20, %c0_21, %c0_22] : memref<1x8x128xbf16, #tpu.memory_space<vmem>>, vector<1x8x128xbf16>
    %24 = vector.shape_cast %23 : vector<1x8x128xbf16> to vector<8x128xbf16>
    %25 = vector.shape_cast %22 : vector<8x128xbf16> to vector<1x8x128xbf16>
    tpu.vector_store %arg4[%c0_20, %c0_21, %c0_22], %25 {strides = array<i32>} : memref<1x8x128xbf16, #tpu.memory_space<vmem>>, vector<1x8x128xbf16>,
    return
  }
  func.func @transform_0(%arg0: i32) -> (i32, i32, i32) {
    %c0_i32 = arith.constant 0 : i32
    %c0_i32_0 = arith.constant 0 : i32
    %c0_i32_1 = arith.constant 0 : i32
    return %arg0, %c0_i32, %c0_i32_0 : i32, i32, i32
  }
  func.func @transform_1(%arg0: i32) -> (i32, i32, i32) {
    %c0_i32 = arith.constant 0 : i32
    %c0_i32_0 = arith.constant 0 : i32
    %c0_i32_1 = arith.constant 0 : i32
    %c0_i32_2 = arith.constant 0 : i32
    return %c0_i32, %c0_i32_0, %c0_i32_1 : i32, i32, i32
  }
  func.func @transform_2(%arg0: i32) -> (i32, i32) {
    %c0_i32 = arith.constant 0 : i32
    %c0_i32_0 = arith.constant 0 : i32
    %c0_i32_1 = arith.constant 0 : i32
    return %c0_i32, %c0_i32_0 : i32, i32
  }
  func.func @transform_3(%arg0: i32) -> (i32, i32, i32) {
    %c0_i32 = arith.constant 0 : i32
    %c0_i32_0 = arith.constant 0 : i32
    %c0_i32_1 = arith.constant 0 : i32
    return %arg0, %c0_i32, %c0_i32_0 : i32, i32, i32
  }
}

module attributes {stable_mosaic.version = 11 : i64} {
  func.func @_band_conv_kernel(%arg0: i32, %arg1: memref<1x10x160xbf16, #tpu.memory_space<vmem>>, %arg2: memref<3x160x512xbf16, #tpu.memory_space<vmem>>, %arg3: memref<1x512xf32, #tpu.memory_space<vmem>>, %arg4: memref<1x8x512xbf16, #tpu.memory_space<vmem>>) attributes {dimension_semantics = [#tpu.dimension_semantics<parallel>], iteration_bounds = array<i64: 2>, scalar_prefetch = 0 : i64, scratch_operands = 0 : i64, tpu.core_type = #tpu.core_type<tc>, window_params = [{transform_indices = @transform_0, window_bounds = array<i64: 1, 10, 160>}, {pipeline_mode = #tpu.pipeline_mode<synchronous>, transform_indices = @transform_1, window_bounds = array<i64: 3, 160, 512>}, {pipeline_mode = #tpu.pipeline_mode<synchronous>, transform_indices = @transform_2, window_bounds = array<i64: 1, 512>}, {transform_indices = @transform_3, window_bounds = array<i64: 1, 8, 512>}]} {
    %c0 = arith.constant 0 : index
    %c0_0 = arith.constant 0 : index
    %c0_1 = arith.constant 0 : index
    %0 = vector.load %arg1[%c0, %c0_0, %c0_1] : memref<1x10x160xbf16, #tpu.memory_space<vmem>>, vector<1x8x160xbf16>
    %1 = vector.shape_cast %0 : vector<1x8x160xbf16> to vector<8x160xbf16>
    %c0_2 = arith.constant 0 : index
    %c0_3 = arith.constant 0 : index
    %c0_4 = arith.constant 0 : index
    %2 = vector.load %arg2[%c0_2, %c0_3, %c0_4] : memref<3x160x512xbf16, #tpu.memory_space<vmem>>, vector<1x160x512xbf16>
    %3 = vector.shape_cast %2 : vector<1x160x512xbf16> to vector<160x512xbf16>
    %cst = arith.constant dense<0.000000e+00> : vector<8x512xf32>
    %4 = tpu.matmul %1, %3, %cst {dimension_numbers = #tpu.dot_dimension_numbers<[1], [0], [0], [1], [0, 0, 1, 1], [], []>} : vector<8x160xbf16>, vector<160x512xbf16>, vector<8x512xf32> -> vector<8x512xf32>
    %c0_5 = arith.constant 0 : index
    %c1 = arith.constant 1 : index
    %c0_6 = arith.constant 0 : index
    %5 = vector.load %arg1[%c0_5, %c1, %c0_6] : memref<1x10x160xbf16, #tpu.memory_space<vmem>>, vector<1x8x160xbf16>
    %6 = vector.shape_cast %5 : vector<1x8x160xbf16> to vector<8x160xbf16>
    %c1_7 = arith.constant 1 : index
    %c0_8 = arith.constant 0 : index
    %c0_9 = arith.constant 0 : index
    %7 = vector.load %arg2[%c1_7, %c0_8, %c0_9] : memref<3x160x512xbf16, #tpu.memory_space<vmem>>, vector<1x160x512xbf16>
    %8 = vector.shape_cast %7 : vector<1x160x512xbf16> to vector<160x512xbf16>
    %cst_10 = arith.constant dense<0.000000e+00> : vector<8x512xf32>
    %9 = tpu.matmul %6, %8, %cst_10 {dimension_numbers = #tpu.dot_dimension_numbers<[1], [0], [0], [1], [0, 0, 1, 1], [], []>} : vector<8x160xbf16>, vector<160x512xbf16>, vector<8x512xf32> -> vector<8x512xf32>
    %10 = arith.addf %4, %9 : vector<8x512xf32>
    %c0_11 = arith.constant 0 : index
    %c2 = arith.constant 2 : index
    %c0_12 = arith.constant 0 : index
    %11 = vector.load %arg1[%c0_11, %c2, %c0_12] : memref<1x10x160xbf16, #tpu.memory_space<vmem>>, vector<1x8x160xbf16>
    %12 = vector.shape_cast %11 : vector<1x8x160xbf16> to vector<8x160xbf16>
    %c2_13 = arith.constant 2 : index
    %c0_14 = arith.constant 0 : index
    %c0_15 = arith.constant 0 : index
    %13 = vector.load %arg2[%c2_13, %c0_14, %c0_15] : memref<3x160x512xbf16, #tpu.memory_space<vmem>>, vector<1x160x512xbf16>
    %14 = vector.shape_cast %13 : vector<1x160x512xbf16> to vector<160x512xbf16>
    %cst_16 = arith.constant dense<0.000000e+00> : vector<8x512xf32>
    %15 = tpu.matmul %12, %14, %cst_16 {dimension_numbers = #tpu.dot_dimension_numbers<[1], [0], [0], [1], [0, 0, 1, 1], [], []>} : vector<8x160xbf16>, vector<160x512xbf16>, vector<8x512xf32> -> vector<8x512xf32>
    %16 = arith.addf %10, %15 : vector<8x512xf32>
    %c0_17 = arith.constant 0 : index
    %c0_18 = arith.constant 0 : index
    %17 = vector.load %arg3[%c0_17, %c0_18] : memref<1x512xf32, #tpu.memory_space<vmem>>, vector<1x512xf32>
    %18 = vector.broadcast %17 : vector<1x512xf32> to vector<8x512xf32>
    %19 = arith.addf %16, %18 : vector<8x512xf32>
    %cst_19 = arith.constant 0.000000e+00 : f32
    %20 = vector.broadcast %cst_19 : f32 to vector<8x512xf32>
    %21 = arith.maximumf %19, %20 : vector<8x512xf32>
    %22 = arith.truncf %21 : vector<8x512xf32> to vector<8x512xbf16>
    %c0_20 = arith.constant 0 : index
    %c0_21 = arith.constant 0 : index
    %c0_22 = arith.constant 0 : index
    %23 = vector.load %arg4[%c0_20, %c0_21, %c0_22] : memref<1x8x512xbf16, #tpu.memory_space<vmem>>, vector<1x8x512xbf16>
    %24 = vector.shape_cast %23 : vector<1x8x512xbf16> to vector<8x512xbf16>
    %25 = vector.shape_cast %22 : vector<8x512xbf16> to vector<1x8x512xbf16>
    tpu.vector_store %arg4[%c0_20, %c0_21, %c0_22], %25 {strides = array<i32>} : memref<1x8x512xbf16, #tpu.memory_space<vmem>>, vector<1x8x512xbf16>,
    return
  }
  func.func @transform_0(%arg0: i32) -> (i32, i32, i32) {
    %c0_i32 = arith.constant 0 : i32
    %c0_i32_0 = arith.constant 0 : i32
    %c0_i32_1 = arith.constant 0 : i32
    return %arg0, %c0_i32, %c0_i32_0 : i32, i32, i32
  }
  func.func @transform_1(%arg0: i32) -> (i32, i32, i32) {
    %c0_i32 = arith.constant 0 : i32
    %c0_i32_0 = arith.constant 0 : i32
    %c0_i32_1 = arith.constant 0 : i32
    %c0_i32_2 = arith.constant 0 : i32
    return %c0_i32, %c0_i32_0, %c0_i32_1 : i32, i32, i32
  }
  func.func @transform_2(%arg0: i32) -> (i32, i32) {
    %c0_i32 = arith.constant 0 : i32
    %c0_i32_0 = arith.constant 0 : i32
    %c0_i32_1 = arith.constant 0 : i32
    return %c0_i32, %c0_i32_0 : i32, i32
  }
  func.func @transform_3(%arg0: i32) -> (i32, i32, i32) {
    %c0_i32 = arith.constant 0 : i32
    %c0_i32_0 = arith.constant 0 : i32
    %c0_i32_1 = arith.constant 0 : i32
    return %arg0, %c0_i32, %c0_i32_0 : i32, i32, i32
  }
}

module attributes {stable_mosaic.version = 11 : i64} {
  func.func @_head_loss_kernel(%arg0: i32, %arg1: memref<64x64xbf16, #tpu.memory_space<vmem>>, %arg2: memref<64x8xbf16, #tpu.memory_space<vmem>>, %arg3: memref<1x8xf32, #tpu.memory_space<vmem>>, %arg4: memref<64x11xf32, #tpu.memory_space<vmem>>, %arg5: memref<8x128xf32, #tpu.memory_space<vmem>>) attributes {dimension_semantics = [#tpu.dimension_semantics<arbitrary>], iteration_bounds = array<i64: 2>, scalar_prefetch = 0 : i64, scratch_operands = 0 : i64, tpu.core_type = #tpu.core_type<tc>, window_params = [{transform_indices = @transform_0, window_bounds = array<i64: 64, 64>}, {pipeline_mode = #tpu.pipeline_mode<synchronous>, transform_indices = @transform_1, window_bounds = array<i64: 64, 8>}, {pipeline_mode = #tpu.pipeline_mode<synchronous>, transform_indices = @transform_2, window_bounds = array<i64: 1, 8>}, {transform_indices = @transform_3, window_bounds = array<i64: 64, 11>}, {pipeline_mode = #tpu.pipeline_mode<synchronous>, transform_indices = @transform_4, window_bounds = array<i64: 8, 128>}]} {
    %c0_i32 = arith.constant 0 : i32
    %0 = arith.cmpi eq, %arg0, %c0_i32 : i32
    %1 = arith.extui %0 : i1 to i32
    %c0_i32_0 = arith.constant 0 : i32
    %2 = arith.cmpi ne, %1, %c0_i32_0 : i32
    scf.if %2 {
      %cst_37 = arith.constant 0.000000e+00 : f32
      %146 = vector.broadcast %cst_37 : f32 to vector<8x128xf32>
      %c0_38 = arith.constant 0 : index
      %c0_39 = arith.constant 0 : index
      %147 = vector.load %arg5[%c0_38, %c0_39] : memref<8x128xf32, #tpu.memory_space<vmem>>, vector<8x128xf32>
      tpu.vector_store %arg5[%c0_38, %c0_39], %146 {strides = array<i32>} : memref<8x128xf32, #tpu.memory_space<vmem>>, vector<8x128xf32>,
    } else {
    }
    %c0 = arith.constant 0 : index
    %c0_1 = arith.constant 0 : index
    %3 = vector.load %arg1[%c0, %c0_1] : memref<64x64xbf16, #tpu.memory_space<vmem>>, vector<64x64xbf16>
    %c0_2 = arith.constant 0 : index
    %c0_3 = arith.constant 0 : index
    %4 = vector.load %arg2[%c0_2, %c0_3] : memref<64x8xbf16, #tpu.memory_space<vmem>>, vector<64x8xbf16>
    %cst = arith.constant dense<0.000000e+00> : vector<64x8xf32>
    %5 = tpu.matmul %3, %4, %cst {dimension_numbers = #tpu.dot_dimension_numbers<[1], [0], [0], [1], [0, 0, 1, 1], [], []>} : vector<64x64xbf16>, vector<64x8xbf16>, vector<64x8xf32> -> vector<64x8xf32>
    %c0_4 = arith.constant 0 : index
    %c0_5 = arith.constant 0 : index
    %6 = vector.load %arg3[%c0_4, %c0_5] : memref<1x8xf32, #tpu.memory_space<vmem>>, vector<1x8xf32>
    %7 = vector.broadcast %6 : vector<1x8xf32> to vector<64x8xf32>
    %8 = arith.addf %5, %7 : vector<64x8xf32>
    %9 = vector.extract_strided_slice %8 {offsets = [0, 0], sizes = [64, 4], strides = [1, 1]} : vector<64x8xf32> to vector<64x4xf32>
    %10 = vector.extract_strided_slice %8 {offsets = [0, 4], sizes = [64, 4], strides = [1, 1]} : vector<64x8xf32> to vector<64x4xf32>
    %11 = arith.negf %9 : vector<64x4xf32>
    %12 = math.exp %11 : vector<64x4xf32>
    %cst_6 = arith.constant 1.000000e+00 : f32
    %13 = vector.broadcast %cst_6 : f32 to vector<64x4xf32>
    %14 = arith.addf %13, %12 : vector<64x4xf32>
    %15 = arith.divf %13, %14 : vector<64x4xf32>
    %cst_7 = arith.constant 0.000000e+00 : f32
    %16 = vector.broadcast %cst_7 : f32 to vector<64x4xf32>
    %17 = arith.maximumf %10, %16 : vector<64x4xf32>
    %cst_8 = arith.constant 1.600000e+01 : f32
    %18 = vector.broadcast %cst_8 : f32 to vector<64x4xf32>
    %19 = arith.mulf %17, %18 : vector<64x4xf32>
    %c0_9 = arith.constant 0 : index
    %c0_10 = arith.constant 0 : index
    %20 = vector.load %arg4[%c0_9, %c0_10] : memref<64x11xf32, #tpu.memory_space<vmem>>, vector<64x11xf32>
    %21 = vector.extract_strided_slice %20 {offsets = [0, 0], sizes = [64, 4], strides = [1, 1]} : vector<64x11xf32> to vector<64x4xf32>
    %22 = vector.extract_strided_slice %20 {offsets = [0, 4], sizes = [64, 4], strides = [1, 1]} : vector<64x11xf32> to vector<64x4xf32>
    %23 = vector.extract_strided_slice %20 {offsets = [0, 8], sizes = [64, 1], strides = [1, 1]} : vector<64x11xf32> to vector<64x1xf32>
    %24 = vector.extract_strided_slice %20 {offsets = [0, 9], sizes = [64, 2], strides = [1, 1]} : vector<64x11xf32> to vector<64x2xf32>
    %cst_11 = arith.constant 1.000000e+00 : f32
    %25 = vector.broadcast %cst_11 : f32 to vector<64x4xf32>
    %26 = arith.cmpf oeq, %21, %25 : vector<64x4xf32>
    %27 = arith.extui %26 : vector<64x4xi1> to vector<64x4xi32>
    %28 = arith.sitofp %27 : vector<64x4xi32> to vector<64x4xf32>
    %cst_12 = arith.constant 1.000000e+00 : f32
    %29 = vector.broadcast %cst_12 : f32 to vector<64x4xf32>
    %30 = arith.subf %29, %21 : vector<64x4xf32>
    %31 = arith.mulf %30, %30 : vector<64x4xf32>
    %32 = arith.mulf %30, %30 : vector<64x4xf32>
    %33 = arith.mulf %31, %32 : vector<64x4xf32>
    %cst_13 = arith.constant 1.000000e+00 : f32
    %34 = vector.broadcast %cst_13 : f32 to vector<64x4xf32>
    %35 = arith.subf %34, %15 : vector<64x4xf32>
    %cst_14 = arith.constant 9.99999996E-13 : f32
    %36 = vector.broadcast %cst_14 : f32 to vector<64x4xf32>
    %37 = arith.addf %15, %36 : vector<64x4xf32>
    %38 = math.log %37 : vector<64x4xf32>
    %cst_15 = arith.constant 0.000000e+00 : f32
    %39 = vector.broadcast %cst_15 : f32 to vector<64x4xf32>
    %40 = arith.subf %39, %38 : vector<64x4xf32>
    %41 = arith.mulf %35, %35 : vector<64x4xf32>
    %42 = arith.mulf %40, %41 : vector<64x4xf32>
    %43 = arith.mulf %42, %28 : vector<64x4xf32>
    %cst_16 = arith.constant 9.99999996E-13 : f32
    %44 = vector.broadcast %cst_16 : f32 to vector<64x4xf32>
    %45 = arith.addf %35, %44 : vector<64x4xf32>
    %46 = math.log %45 : vector<64x4xf32>
    %cst_17 = arith.constant 0.000000e+00 : f32
    %47 = vector.broadcast %cst_17 : f32 to vector<64x4xf32>
    %48 = arith.subf %47, %46 : vector<64x4xf32>
    %49 = arith.mulf %15, %15 : vector<64x4xf32>
    %50 = arith.mulf %48, %49 : vector<64x4xf32>
    %51 = arith.mulf %50, %33 : vector<64x4xf32>
    %52 = arith.addf %43, %51 : vector<64x4xf32>
    %53 = vector.shape_cast %52 : vector<64x4xf32> to vector<1x64x4xf32>
    %cst_18 = arith.constant dense<0.000000e+00> : vector<1xf32>
    %54 = vector.multi_reduction <add>, %53, %cst_18 [1, 2] : vector<1x64x4xf32> to vector<1xf32>
    %55 = vector.shape_cast %54 : vector<1xf32> to vector<1x1x1xf32>
    %56 = vector.extract %55[0, 0, 0] : f32 from vector<1x1x1xf32>
    %57 = vector.shape_cast %28 : vector<64x4xf32> to vector<1x64x4xf32>
    %cst_19 = arith.constant dense<0.000000e+00> : vector<1xf32>
    %58 = vector.multi_reduction <add>, %57, %cst_19 [1, 2] : vector<1x64x4xf32> to vector<1xf32>
    %59 = vector.shape_cast %58 : vector<1xf32> to vector<1x1x1xf32>
    %60 = vector.extract %59[0, 0, 0] : f32 from vector<1x1x1xf32>
    %61 = vector.extract_strided_slice %19 {offsets = [0, 0], sizes = [64, 2], strides = [1, 1]} : vector<64x4xf32> to vector<64x2xf32>
    %62 = arith.subf %24, %61 : vector<64x2xf32>
    %63 = vector.extract_strided_slice %19 {offsets = [0, 2], sizes = [64, 2], strides = [1, 1]} : vector<64x4xf32> to vector<64x2xf32>
    %64 = arith.addf %24, %63 : vector<64x2xf32>
    %65 = vector.extract_strided_slice %22 {offsets = [0, 0], sizes = [64, 2], strides = [1, 1]} : vector<64x4xf32> to vector<64x2xf32>
    %66 = vector.extract_strided_slice %22 {offsets = [0, 2], sizes = [64, 2], strides = [1, 1]} : vector<64x4xf32> to vector<64x2xf32>
    %67 = arith.maximumf %62, %65 : vector<64x2xf32>
    %68 = arith.minimumf %64, %66 : vector<64x2xf32>
    %69 = arith.subf %68, %67 : vector<64x2xf32>
    %cst_20 = arith.constant 0.000000e+00 : f32
    %70 = vector.broadcast %cst_20 : f32 to vector<64x2xf32>
    %71 = arith.maximumf %69, %70 : vector<64x2xf32>
    %72 = vector.extract_strided_slice %71 {offsets = [0, 0], sizes = [64, 1], strides = [1, 1]} : vector<64x2xf32> to vector<64x1xf32>
    %73 = vector.extract_strided_slice %71 {offsets = [0, 1], sizes = [64, 1], strides = [1, 1]} : vector<64x2xf32> to vector<64x1xf32>
    %74 = arith.mulf %72, %73 : vector<64x1xf32>
    %75 = arith.subf %64, %62 : vector<64x2xf32>
    %76 = arith.subf %66, %65 : vector<64x2xf32>
    %77 = vector.extract_strided_slice %75 {offsets = [0, 0], sizes = [64, 1], strides = [1, 1]} : vector<64x2xf32> to vector<64x1xf32>
    %78 = vector.extract_strided_slice %75 {offsets = [0, 1], sizes = [64, 1], strides = [1, 1]} : vector<64x2xf32> to vector<64x1xf32>
    %79 = arith.mulf %77, %78 : vector<64x1xf32>
    %80 = vector.extract_strided_slice %76 {offsets = [0, 0], sizes = [64, 1], strides = [1, 1]} : vector<64x2xf32> to vector<64x1xf32>
    %81 = vector.extract_strided_slice %76 {offsets = [0, 1], sizes = [64, 1], strides = [1, 1]} : vector<64x2xf32> to vector<64x1xf32>
    %82 = arith.mulf %80, %81 : vector<64x1xf32>
    %83 = arith.addf %79, %82 : vector<64x1xf32>
    %84 = arith.subf %83, %74 : vector<64x1xf32>
    %cst_21 = arith.constant 1.000000e-07 : f32
    %85 = vector.broadcast %cst_21 : f32 to vector<64x1xf32>
    %86 = arith.maximumf %84, %85 : vector<64x1xf32>
    %87 = tpu.reciprocal %86 {approx = true} : vector<64x1xf32> -> vector<64x1xf32>
    %88 = arith.mulf %74, %87 : vector<64x1xf32>
    %89 = arith.minimumf %62, %65 : vector<64x2xf32>
    %90 = arith.maximumf %64, %66 : vector<64x2xf32>
    %91 = arith.subf %90, %89 : vector<64x2xf32>
    %cst_22 = arith.constant 0.000000e+00 : f32
    %92 = vector.broadcast %cst_22 : f32 to vector<64x2xf32>
    %93 = arith.maximumf %91, %92 : vector<64x2xf32>
    %94 = vector.extract_strided_slice %93 {offsets = [0, 0], sizes = [64, 1], strides = [1, 1]} : vector<64x2xf32> to vector<64x1xf32>
    %95 = vector.extract_strided_slice %93 {offsets = [0, 1], sizes = [64, 1], strides = [1, 1]} : vector<64x2xf32> to vector<64x1xf32>
    %96 = arith.mulf %94, %95 : vector<64x1xf32>
    %cst_23 = arith.constant 1.000000e-07 : f32
    %97 = vector.broadcast %cst_23 : f32 to vector<64x1xf32>
    %98 = arith.maximumf %96, %97 : vector<64x1xf32>
    %99 = arith.subf %98, %86 : vector<64x1xf32>
    %100 = tpu.reciprocal %98 {approx = true} : vector<64x1xf32> -> vector<64x1xf32>
    %101 = arith.mulf %99, %100 : vector<64x1xf32>
    %102 = arith.subf %88, %101 : vector<64x1xf32>
    %cst_24 = arith.constant 0.000000e+00 : f32
    %103 = vector.broadcast %cst_24 : f32 to vector<64x1xf32>
    %104 = arith.cmpf ogt, %23, %103 : vector<64x1xf32>
    %105 = arith.extui %104 : vector<64x1xi1> to vector<64x1xi32>
    %106 = arith.sitofp %105 : vector<64x1xi32> to vector<64x1xf32>
    %cst_25 = arith.constant 1.000000e+00 : f32
    %107 = vector.broadcast %cst_25 : f32 to vector<64x1xf32>
    %108 = arith.subf %107, %102 : vector<64x1xf32>
    %109 = arith.mulf %108, %23 : vector<64x1xf32>
    %110 = arith.mulf %109, %106 : vector<64x1xf32>
    %111 = vector.shape_cast %110 : vector<64x1xf32> to vector<1x64x1xf32>
    %cst_26 = arith.constant dense<0.000000e+00> : vector<1xf32>
    %112 = vector.multi_reduction <add>, %111, %cst_26 [1, 2] : vector<1x64x1xf32> to vector<1xf32>
    %113 = vector.shape_cast %112 : vector<1xf32> to vector<1x1x1xf32>
    %114 = vector.extract %113[0, 0, 0] : f32 from vector<1x1x1xf32>
    %115 = vector.shape_cast %23 : vector<64x1xf32> to vector<1x64x1xf32>
    %cst_27 = arith.constant dense<0.000000e+00> : vector<1xf32>
    %116 = vector.multi_reduction <add>, %115, %cst_27 [1, 2] : vector<1x64x1xf32> to vector<1xf32>
    %117 = vector.shape_cast %116 : vector<1xf32> to vector<1x1x1xf32>
    %118 = vector.extract %117[0, 0, 0] : f32 from vector<1x1x1xf32>
    %119 = tpu.iota {dimensions = array<i32: 0>} : vector<8x128xi32>
    %c0_28 = arith.constant 0 : index
    %c0_29 = arith.constant 0 : index
    %120 = vector.load %arg5[%c0_28, %c0_29] : memref<8x128xf32, #tpu.memory_space<vmem>>, vector<8x128xf32>
    %c0_i32_30 = arith.constant 0 : i32
    %121 = vector.broadcast %c0_i32_30 : i32 to vector<8x128xi32>
    %122 = arith.cmpi eq, %119, %121 : vector<8x128xi32>
    %cst_31 = arith.constant 0.000000e+00 : f32
    %123 = vector.broadcast %56 : f32 to vector<8x128xf32>
    %124 = vector.broadcast %cst_31 : f32 to vector<8x128xf32>
    %125 = arith.select %122, %123, %124 : vector<8x128xi1>, vector<8x128xf32>
    %c1_i32 = arith.constant 1 : i32
    %126 = vector.broadcast %c1_i32 : i32 to vector<8x128xi32>
    %127 = arith.cmpi eq, %119, %126 : vector<8x128xi32>
    %cst_32 = arith.constant 0.000000e+00 : f32
    %128 = vector.broadcast %60 : f32 to vector<8x128xf32>
    %129 = vector.broadcast %cst_32 : f32 to vector<8x128xf32>
    %130 = arith.select %127, %128, %129 : vector<8x128xi1>, vector<8x128xf32>
    %131 = arith.addf %125, %130 : vector<8x128xf32>
    %c2_i32 = arith.constant 2 : i32
    %132 = vector.broadcast %c2_i32 : i32 to vector<8x128xi32>
    %133 = arith.cmpi eq, %119, %132 : vector<8x128xi32>
    %cst_33 = arith.constant 0.000000e+00 : f32
    %134 = vector.broadcast %114 : f32 to vector<8x128xf32>
    %135 = vector.broadcast %cst_33 : f32 to vector<8x128xf32>
    %136 = arith.select %133, %134, %135 : vector<8x128xi1>, vector<8x128xf32>
    %137 = arith.addf %131, %136 : vector<8x128xf32>
    %c3_i32 = arith.constant 3 : i32
    %138 = vector.broadcast %c3_i32 : i32 to vector<8x128xi32>
    %139 = arith.cmpi eq, %119, %138 : vector<8x128xi32>
    %cst_34 = arith.constant 0.000000e+00 : f32
    %140 = vector.broadcast %118 : f32 to vector<8x128xf32>
    %141 = vector.broadcast %cst_34 : f32 to vector<8x128xf32>
    %142 = arith.select %139, %140, %141 : vector<8x128xi1>, vector<8x128xf32>
    %143 = arith.addf %137, %142 : vector<8x128xf32>
    %144 = arith.addf %120, %143 : vector<8x128xf32>
    %c0_35 = arith.constant 0 : index
    %c0_36 = arith.constant 0 : index
    %145 = vector.load %arg5[%c0_35, %c0_36] : memref<8x128xf32, #tpu.memory_space<vmem>>, vector<8x128xf32>
    tpu.vector_store %arg5[%c0_35, %c0_36], %144 {strides = array<i32>} : memref<8x128xf32, #tpu.memory_space<vmem>>, vector<8x128xf32>,
    return
  }
  func.func @transform_0(%arg0: i32) -> (i32, i32) {
    %c0_i32 = arith.constant 0 : i32
    %c0_i32_0 = arith.constant 0 : i32
    return %arg0, %c0_i32 : i32, i32
  }
  func.func @transform_1(%arg0: i32) -> (i32, i32) {
    %c0_i32 = arith.constant 0 : i32
    %c0_i32_0 = arith.constant 0 : i32
    %c0_i32_1 = arith.constant 0 : i32
    return %c0_i32, %c0_i32_0 : i32, i32
  }
  func.func @transform_2(%arg0: i32) -> (i32, i32) {
    %c0_i32 = arith.constant 0 : i32
    %c0_i32_0 = arith.constant 0 : i32
    %c0_i32_1 = arith.constant 0 : i32
    return %c0_i32, %c0_i32_0 : i32, i32
  }
  func.func @transform_3(%arg0: i32) -> (i32, i32) {
    %c0_i32 = arith.constant 0 : i32
    %c0_i32_0 = arith.constant 0 : i32
    return %arg0, %c0_i32 : i32, i32
  }
  func.func @transform_4(%arg0: i32) -> (i32, i32) {
    %c0_i32 = arith.constant 0 : i32
    %c0_i32_0 = arith.constant 0 : i32
    %c0_i32_1 = arith.constant 0 : i32
    return %c0_i32, %c0_i32_0 : i32, i32
  }
}

</mosaic_0001>

<llo_original>
// kernel: tile.22
$region0: #{tile.22}
  #allocation0 [shape = 's32[1]{0}', space=sflag, size = 0x4, scoped, tag = 'scoped memory for tile.22']
  %s0 = inlined_call_operand.vmem [shape: f32[16], index: 0, kind: input, shape index: {}]
  %s1 = inlined_call_operand.vmem [shape: f32[4,16], index: 1, kind: output, shape index: {}]
  // Predicated region
  $region2: #{tile.22} parent=0 // pred_check
    _
  $region3: #{tile.22} parent=0 // pred_check_branch
    %3 = sbr.rel (0) target = $region5
  $region4: #{tile.22} parent=0 // pred_region
    _
  $region5: #{tile.22} parent=0 // pred_fallthru
    _
  %v4 = vld [vmem:[%s0] ss:$0 sm:$0xff]
  %5 = vst [vmem:[%s1] sm:$0xf] %v4

// kernel: tile.23
$region0: #{tile.23}
  %s0 = inlined_call_operand.vmem [shape: f32[4,16], index: 0, kind: input, shape index: {}]
  %s1 = inlined_call_operand.vmem [shape: f32[1,64], index: 1, kind: output, shape index: {}]
  $region1: #{tile.23} parent=0
    #allocation0 [shape = 'u8[4096]{0}', space=vmem, size = 0x1000, scoped, tag = 'scoped mem for output reshape']
    #allocation1 [shape = 'u8[4096]{0}', space=vmem, size = 0x1000, scoped, tag = 'scoped mem for input reshape']
    %s3 = sshll.u32 1, 4
    %s4 = ssub.s32 %s3, 1
    %v5 = vld [vmem:[%s0] sm:%s4]
    %6 = vst [vmem:[#allocation1] sm:%s4] %v5
    %v7 = vld [vmem:[#allocation1] sm:$0x1]
    %vm8 = vcmask 130048
    %9 = vst.msk [vmem:[#allocation0] sm:$0x1] %vm8, %v7
    %s10 = scalar_lea.vmem [#allocation1], 3
    %v11 = vld [vmem:[%s10] sm:$0x1]
    %12 = vrot.lane.b32.xlu0 %v11, 48
    %v13 = vpop.permute.xlu0 %12
    %vm14 = vcmask 523648
    %15 = vst.msk [vmem:[#allocation0] sm:$0x1] %vm14, %v13
    %s16 = scalar_lea.vmem [#allocation1], 2
    %v17 = vld [vmem:[%s16] sm:$0x1]
    %18 = vrot.lane.b32.xlu0 %v17, 32
    %v19 = vpop.permute.xlu0 %18
    %vm20 = vcmask 392448
    %21 = vst.msk [vmem:[#allocation0] sm:$0x1] %vm20, %v19
    %s22 = scalar_lea.vmem [#allocation1], 1
    %v23 = vld [vmem:[%s22] sm:$0x1]
    %24 = vrot.lane.b32.xlu0 %v23, 16
    %v25 = vpop.permute.xlu0 %24
    %vm26 = vcmask 261248
    %27 = vst.msk [vmem:[#allocation0] sm:$0x1] %vm26, %v25
    %s29 = sshll.u32 1, 1
    %s30 = ssub.s32 %s29, 1
    %v32 = vld [vmem:[#allocation0] sm:%s30]
    %s33 = sshll.u32 1, 1
    %s34 = ssub.s32 %s33, 1
    %35 = vst [vmem:[%s1] sm:%s34] %v32

// kernel: ttfnet_forward.4
$region0: #{ttfnet_forward.4}
  #allocation0 [shape = 'u32[]', space=smem, size = 0x4, offset = 0x4, fixed_abs, tag = 'smem constant byte address 0x4 - core index']
  #allocation1 [shape = 'u32[144,128]{1,0:T(1,128)}', space=vmem, size = 0x12000, scoped, tag = 'internal scratch']
  %s0 = inlined_call_operand.vmem [shape: bf16[2,3,4,104], index: 0, kind: input, shape index: {}]
  %s1 = inlined_call_operand.vmem [shape: bf16[3,104,64], index: 1, kind: input, shape index: {}]
  %s2 = inlined_call_operand.vmem [shape: f32[1,64], index: 2, kind: input, shape index: {}]
  %s3 = inlined_call_operand.vmem [shape: bf16[2,4,64], index: 3, kind: output, shape index: {}]
  %s4 = sld [smem:[#allocation0]]
  $region45: #{ttfnet_forward.4} parent=0
    _
  %s6 = ssub.s32 1, %s4
  %s7 = scalar_select 0, %s6, %s4
  loop: start=0, step=1, limit=4
  $region2: #{ttfnet_forward.4} parent=0 // loop_pre_header
    _
  $region3: #{ttfnet_forward.4} parent=0 // loop_header
    %s9 = sphi 0, %s13
    %p10 = scmp.ge.s32.totalorder %s9, 4
    %s19 = sphi 0, %s21
    %s22 = sphi 0, %s19
    %s23 = sphi 0, %s22
    %s39 = sphi 0, %s23
    %s43 = sphi 0, %s43
    %s45 = sphi 0, %s43
    %s46 = sphi 0, %s45
    %s60 = sphi 0, %s46
    %s64 = sphi 0, %s64
    %s66 = sphi 0, %s64
    %s67 = sphi 0, %s66
    %s81 = sphi 0, %s67
    %s87 = sphi 0, %s89
    %s90 = sphi 0, %s87
    %s91 = sphi 0, %s90
    %s107 = sphi 0, %s91
  $region4: #{ttfnet_forward.4} parent=0 // loop_header_branch
    %12 = sbr.rel (%p10) target = $region8
  $region5: #{ttfnet_forward.4} parent=0 // loop_body
    %s14 = ssub.s32 %s9, 1
    %s15 = ssub.s32 %s9, 2
    %s16 = sadd.s32 %s9, 1
    %s17 = ssub.s32 %s9, %s16
    %p18 = scmp.eq.s32.totalorder %s17, 0
    %s20 = sadd.s32 %s19, 1
    %s21 = scalar_select %p18, %s19, %s20
    %p24 = pneg %p18
    %p25 = scmp.eq.s32.totalorder %s9, 1
    %p26 = por %p24, %p25
    %p27 = scmp.ne.s32.totalorder %s19, %s22
    %p28 = scmp.eq.s32.totalorder %s9, 0
    %p29 = por %p27, %p28
    %p30 = scmp.ne.s32.totalorder %s19, %s22
    %p31 = scmp.eq.s32.totalorder %s14, 1
    %p32 = por %p30, %p31
    %p33 = scmp.ne.s32.totalorder %s22, %s23
    %p34 = scmp.eq.s32.totalorder %s14, 0
    %p35 = por %p33, %p34
    %p36 = scmp.ne.s32.totalorder %s22, %s23
    %p37 = scmp.eq.s32.totalorder %s15, 1
    %p38 = por %p36, %p37
    %p40 = scmp.ne.s32.totalorder %s23, %s39
    %p41 = scmp.eq.s32.totalorder %s15, 0
    %p42 = por %p40, %p41
    %s44 = sadd.s32 %s43, 1
    %p47 = scmp.eq.s32.totalorder %s9, 1
    %p48 = scmp.ne.s32.totalorder %s43, %s45
    %p49 = scmp.eq.s32.totalorder %s9, 0
    %p50 = por %p48, %p49
    %p51 = scmp.ne.s32.totalorder %s43, %s45
    %p52 = scmp.eq.s32.totalorder %s14, 1
    %p53 = por %p51, %p52
    %p54 = scmp.ne.s32.totalorder %s45, %s46
    %p55 = scmp.eq.s32.totalorder %s14, 0
    %p56 = por %p54, %p55
    %p57 = scmp.ne.s32.totalorder %s45, %s46
    %p58 = scmp.eq.s32.totalorder %s15, 1
    %p59 = por %p57, %p58
    %p61 = scmp.ne.s32.totalorder %s46, %s60
    %p62 = scmp.eq.s32.totalorder %s15, 0
    %p63 = por %p61, %p62
    %s65 = sadd.s32 %s64, 1
    %p68 = scmp.eq.s32.totalorder %s9, 1
    %p69 = scmp.ne.s32.totalorder %s64, %s66
    %p70 = scmp.eq.s32.totalorder %s9, 0
    %p71 = por %p69, %p70
    %p72 = scmp.ne.s32.totalorder %s64, %s66
    %p73 = scmp.eq.s32.totalorder %s14, 1
    %p74 = por %p72, %p73
    %p75 = scmp.ne.s32.totalorder %s66, %s67
    %p76 = scmp.eq.s32.totalorder %s14, 0
    %p77 = por %p75, %p76
    %p78 = scmp.ne.s32.totalorder %s66, %s67
    %p79 = scmp.eq.s32.totalorder %s15, 1
    %p80 = por %p78, %p79
    %p82 = scmp.ne.s32.totalorder %s67, %s81
    %p83 = scmp.eq.s32.totalorder %s15, 0
    %p84 = por %p82, %p83
    %s85 = ssub.s32 %s9, %s16
    %p86 = scmp.eq.s32.totalorder %s85, 0
    %s88 = sadd.s32 %s87, 1
    %s89 = scalar_select %p86, %s87, %s88
    %p92 = pneg %p86
    %p93 = scmp.eq.s32.totalorder %s9, 1
    %p94 = por %p92, %p93
    %p95 = scmp.ne.s32.totalorder %s87, %s90
    %p96 = scmp.eq.s32.totalorder %s9, 0
    %p97 = por %p95, %p96
    %p98 = scmp.ne.s32.totalorder %s87, %s90
    %p99 = scmp.eq.s32.totalorder %s14, 1
    %p100 = por %p98, %p99
    %p101 = scmp.ne.s32.totalorder %s90, %s91
    %p102 = scmp.eq.s32.totalorder %s14, 0
    %p103 = por %p101, %p102
    %p104 = scmp.ne.s32.totalorder %s90, %s91
    %p105 = scmp.eq.s32.totalorder %s15, 1
    %p106 = por %p104, %p105
    %p108 = scmp.ne.s32.totalorder %s91, %s107
    %p109 = scmp.eq.s32.totalorder %s15, 0
    %p110 = por %p108, %p109
    %p111 = scmp.le.s32.totalorder 1, %s9
    %p112 = scmp.lt.s32.totalorder %s9, 3
    %p113 = pnand %p111, %p112
    %p114 = pneg %p113
    // Predicated region
    $region9: #{ttfnet_forward.4} parent=5 // pred_check
      _
    $region10: #{ttfnet_forward.4} parent=5 // pred_check_branch
      %116 = sbr.rel (%p113) target = $region12
    $region11: #{ttfnet_forward.4} parent=5 // pred_region
      %s117 = ssub.s32 %s9, 1
      // Predicated region
      $region13: #{ttfnet_forward.4} parent=11 // pred_check
        %p118 = pneg %p56
      $region14: #{ttfnet_forward.4} parent=11 // pred_check_branch
        %120 = sbr.rel (%p118) target = $region16
      $region15: #{ttfnet_forward.4} parent=11 // pred_region
        _
      $region16: #{ttfnet_forward.4} parent=11 // pred_fallthru
        _
      // Predicated region
      $region17: #{ttfnet_forward.4} parent=11 // pred_check
        %p121 = pneg %p77
      $region18: #{ttfnet_forward.4} parent=11 // pred_check_branch
        %123 = sbr.rel (%p121) target = $region20
      $region19: #{ttfnet_forward.4} parent=11 // pred_region
        _
      $region20: #{ttfnet_forward.4} parent=11 // pred_fallthru
        _
    $region12: #{ttfnet_forward.4} parent=5 // pred_fallthru
      _
    %p124 = scmp.lt.s32.totalorder %s9, 2
    // Predicated region
    $region21: #{ttfnet_forward.4} parent=5 // pred_check
      %p125 = pneg %p124
    $region22: #{ttfnet_forward.4} parent=5 // pred_check_branch
      %127 = sbr.rel (%p125) target = $region24
    $region23: #{ttfnet_forward.4} parent=5 // pred_region
      // Predicated region
      $region25: #{ttfnet_forward.4} parent=23 // pred_check
        %p128 = pneg %p29
      $region26: #{ttfnet_forward.4} parent=23 // pred_check_branch
        %130 = sbr.rel (%p128) target = $region28
      $region27: #{ttfnet_forward.4} parent=23 // pred_region
        %p131 = scmp.lt.s32.totalorder %s9, 1
        %s132 = scalar_select %p131, %s9, 1
        %s133 = smul.addr %s132, 3
        %s134 = smul.addr %s133, 2
        %s135 = scalar_lea.vmem %s0, %s134
      $region28: #{ttfnet_forward.4} parent=23 // pred_fallthru
        _
    $region24: #{ttfnet_forward.4} parent=5 // pred_fallthru
      _
    %p136 = scmp.le.s32.totalorder 1, %s9
    %p137 = scmp.lt.s32.totalorder %s9, 3
    %p138 = pnand %p136, %p137
    %p139 = pneg %p138
    // Predicated region
    $region29: #{ttfnet_forward.4} parent=5 // pred_check
      _
    $region30: #{ttfnet_forward.4} parent=5 // pred_check_branch
      %141 = sbr.rel (%p138) target = $region32
    $region31: #{ttfnet_forward.4} parent=5 // pred_region
      %s142 = ssub.s32 %s9, 1
      %p143 = scmp.lt.s32.totalorder %s14, 1
      %s144 = scalar_select %p143, %s14, 1
      %s145 = smul.addr %s144, 3
      %s146 = smul.addr %s145, 2
      %s147 = scalar_lea.vmem %s0, %s146
      %p148 = pneg %p35
      %p149 = pneg %p32
      %p150 = pneg %p56
      %p151 = pneg %p53
      %p152 = pneg %p77
      %p153 = pneg %p74
      %p154 = pneg %p103
      %p155 = pneg %p100
      %p156 = scmp.lt.s32.totalorder %s14, 1
      %s157 = scalar_select %p156, %s14, 1
      %s158 = smul.addr %s157, 2
      %s159 = scalar_lea.vmem %s3, %s158
      %p160 = scmp.lt.s32.totalorder %s14, 1
      %s161 = scalar_select %p160, %s14, 1
      %s162 = smul.addr %s161, 3
      %s163 = smul.addr %s162, 2
      %s164 = scalar_lea.vmem %s0, %s163
      %p165 = scmp.lt.s32.totalorder %s14, 1
      %s166 = scalar_select %p165, %s14, 1
      %s167 = smul.addr %s166, 2
      %s168 = scalar_lea.vmem %s3, %s167
      %v170 = vld [vmem:[%s164] sm:$0x3]
      %v171 = vld [vmem:[%s1] sm:$0xf]
      %v172 = vld [vmem:[%s1 + $0x4] sm:$0xf]
      %v173 = vld [vmem:[%s1 + $0x8] sm:$0xf]
      %v174 = vld [vmem:[%s1 + $0xc] sm:$0xf]
      %v175 = vld [vmem:[%s1 + $0x10] sm:$0xf]
      %v176 = vld [vmem:[%s1 + $0x14] sm:$0xf]
      %v177 = vld [vmem:[%s1 + $0x18] sm:$0xf]
      %v178 = vld [vmem:[%s1 + $0x1c] sm:$0xf]
      %v179 = vld [vmem:[%s1 + $0x20] sm:$0xf]
      %v180 = vld [vmem:[%s1 + $0x24] sm:$0xf]
      %v181 = vld [vmem:[%s1 + $0x28] sm:$0xf]
      %v182 = vld [vmem:[%s1 + $0x2c] sm:$0xf]
      %v183 = vld [vmem:[%s1 + $0x30] sm:$0xf]
      %s184 = scalar_lea.vmem %s164, 2
      %v185 = vld [vmem:[%s184] sm:$0x3]
      %s186 = scalar_lea.vmem %s1, 52
      %v187 = vld [vmem:[%s186] sm:$0xf]
      %v188 = vld [vmem:[%s186 + $0x4] sm:$0xf]
      %v189 = vld [vmem:[%s186 + $0x8] sm:$0xf]
      %v190 = vld [vmem:[%s186 + $0xc] sm:$0xf]
      %v191 = vld [vmem:[%s186 + $0x10] sm:$0xf]
      %v192 = vld [vmem:[%s186 + $0x14] sm:$0xf]
      %v193 = vld [vmem:[%s186 + $0x18] sm:$0xf]
      %v194 = vld [vmem:[%s186 + $0x1c] sm:$0xf]
      %v195 = vld [vmem:[%s186 + $0x20] sm:$0xf]
      %v196 = vld [vmem:[%s186 + $0x24] sm:$0xf]
      %v197 = vld [vmem:[%s186 + $0x28] sm:$0xf]
      %v198 = vld [vmem:[%s186 + $0x2c] sm:$0xf]
      %v199 = vld [vmem:[%s186 + $0x30] sm:$0xf]
      %v213 = vunpack.c.l.b16 %v187
      %v214 = vunpack.c.l.b16 %v188
      %v215 = vunpack.c.l.b16 %v189
      %v216 = vunpack.c.l.b16 %v190
      %v217 = vunpack.c.l.b16 %v191
      %v218 = vunpack.c.l.b16 %v192
      %v219 = vunpack.c.l.b16 %v193
      %v220 = vunpack.c.l.b16 %v194
      %v221 = vunpack.c.l.b16 %v195
      %v222 = vunpack.c.l.b16 %v196
      %v223 = vunpack.c.l.b16 %v197
      %v224 = vunpack.c.l.b16 %v198
      %v225 = vunpack.c.l.b16 %v199
      %v226 = vpack.c.b16 %v214, %v213
      %v227 = vpack.c.b16 %v216, %v215
      %v228 = vpack.c.b16 %v218, %v217
      %v229 = vpack.c.b16 %v220, %v219
      %v230 = vpack.c.b16 %v222, %v221
      %v231 = vpack.c.b16 %v224, %v223
      %v232 = vpack.c.b16 %v225, %v225
      %vm239 = vcmask 850944
      %v241 = vsel %vm239, %v185, 0
      %vm243 = vcmask 1043456
      %v245 = vsel %vm243, %v232, 0
      %247 = vmatprep.subr.bf16.mxu0 0
      %248 = vmatpush1.bf16.msra.mxu0 0
      %249 = vmatprep.subr.bf16.mxu0 0
      %250 = vmatpush1.bf16.msra.mxu0 %v245
      %251 = vmatprep.subr.bf16.mxu0 0
      %252 = vmatpush1.bf16.msra.mxu0 %v231
      %253 = vmatprep.subr.bf16.mxu0 0
      %254 = vmatpush1.bf16.msra.mxu0 %v230
      %255 = vmatprep.subr.bf16.mxu0 0
      %256 = vmatpush1.bf16.msra.mxu0 %v229
      %257 = vmatprep.subr.bf16.mxu0 0
      %258 = vmatpush1.bf16.msra.mxu0 %v228
      %259 = vmatprep.subr.bf16.mxu0 0
      %260 = vmatpush1.bf16.msra.mxu0 %v227
      %261 = vmatprep.subr.bf16.mxu0 0
      %262 = vmatpush1.bf16.msra.mxu0 %v226
      %263 = vmatprep.subr.bf16.mxu0 0
      %264 = vmatpush2.bf16.msra.mxu0 0
      %265 = vmatprep.subr.bf16.mxu0 0
      %266 = vmatpush2.bf16.msra.mxu0 0
      %267 = vmatprep.subr.bf16.mxu0 0
      %268 = vmatpush2.bf16.msra.mxu0 0
      %269 = vmatprep.subr.bf16.mxu0 0
      %270 = vmatpush2.bf16.msra.mxu0 0
      %271 = vmatprep.subr.bf16.mxu0 0
      %272 = vmatpush2.bf16.msra.mxu0 0
      %273 = vmatprep.subr.bf16.mxu0 0
      %274 = vmatpush2.bf16.msra.mxu0 0
      %275 = vmatprep.subr.bf16.mxu0 0
      %276 = vmatpush2.bf16.msra.mxu0 0
      %277 = vmatprep.subr.bf16.mxu0 0
      %278 = vmatpush2.bf16.msra.mxu0 0
      %279 = vmatprep.mubr.bf16.mxu0 0
      %280 = vmatmul.mubr.bf16.gmra.mxu0 %v241
      %v281 = vpop.f32.mrf.mxu0
      %v282 = vadd.f32 0.0, %v281
      %v283 = vpop.f32.mrf.mxu0
      %v284 = vpop.f32.mrf.mxu0
      %v285 = vpop.f32.mrf.mxu0
      %286 = vdwg.mxu0
      %v300 = vunpack.c.l.b16 %v171
      %v301 = vunpack.c.l.b16 %v172
      %v302 = vunpack.c.l.b16 %v173
      %v303 = vunpack.c.l.b16 %v174
      %v304 = vunpack.c.l.b16 %v175
      %v305 = vunpack.c.l.b16 %v176
      %v306 = vunpack.c.l.b16 %v177
      %v307 = vunpack.c.l.b16 %v178
      %v308 = vunpack.c.l.b16 %v179
      %v309 = vunpack.c.l.b16 %v180
      %v310 = vunpack.c.l.b16 %v181
      %v311 = vunpack.c.l.b16 %v182
      %v312 = vunpack.c.l.b16 %v183
      %v313 = vpack.c.b16 %v301, %v300
      %v314 = vpack.c.b16 %v303, %v302
      %v315 = vpack.c.b16 %v305, %v304
      %v316 = vpack.c.b16 %v307, %v306
      %v317 = vpack.c.b16 %v309, %v308
      %v318 = vpack.c.b16 %v311, %v310
      %v319 = vpack.c.b16 %v312, %v312
      %v327 = vsel %vm239, %v170, 0
      %v330 = vsel %vm243, %v319, 0
      %332 = vmatprep.subr.bf16.mxu0 0
      %333 = vmatpush1.bf16.msra.mxu0 0
      %334 = vmatprep.subr.bf16.mxu0 0
      %335 = vmatpush1.bf16.msra.mxu0 %v330
      %336 = vmatprep.subr.bf16.mxu0 0
      %337 = vmatpush1.bf16.msra.mxu0 %v318
      %338 = vmatprep.subr.bf16.mxu0 0
      %339 = vmatpush1.bf16.msra.mxu0 %v317
      %340 = vmatprep.subr.bf16.mxu0 0
      %341 = vmatpush1.bf16.msra.mxu0 %v316
      %342 = vmatprep.subr.bf16.mxu0 0
      %343 = vmatpush1.bf16.msra.mxu0 %v315
      %344 = vmatprep.subr.bf16.mxu0 0
      %345 = vmatpush1.bf16.msra.mxu0 %v314
      %346 = vmatprep.subr.bf16.mxu0 0
      %347 = vmatpush1.bf16.msra.mxu0 %v313
      %348 = vmatprep.subr.bf16.mxu0 0
      %349 = vmatpush2.bf16.msra.mxu0 0
      %350 = vmatprep.subr.bf16.mxu0 0
      %351 = vmatpush2.bf16.msra.mxu0 0
      %352 = vmatprep.subr.bf16.mxu0 0
      %353 = vmatpush2.bf16.msra.mxu0 0
      %354 = vmatprep.subr.bf16.mxu0 0
      %355 = vmatpush2.bf16.msra.mxu0 0
      %356 = vmatprep.subr.bf16.mxu0 0
      %357 = vmatpush2.bf16.msra.mxu0 0
      %358 = vmatprep.subr.bf16.mxu0 0
      %359 = vmatpush2.bf16.msra.mxu0 0
      %360 = vmatprep.subr.bf16.mxu0 0
      %361 = vmatpush2.bf16.msra.mxu0 0
      %362 = vmatprep.subr.bf16.mxu0 0
      %363 = vmatpush2.bf16.msra.mxu0 0
      %364 = vmatprep.mubr.bf16.mxu0 0
      %365 = vmatmul.mubr.bf16.gmra.mxu0 %v327
      %v366 = vpop.f32.mrf.mxu0
      %v367 = vadd.f32 %v282, %v366
      %v368 = vpop.f32.mrf.mxu0
      %v369 = vpop.f32.mrf.mxu0
      %v370 = vpop.f32.mrf.mxu0
      %371 = vdwg.mxu0
      %s372 = scalar_lea.vmem %s164, 4
      %v373 = vld [vmem:[%s372] sm:$0x3]
      %s374 = scalar_lea.vmem %s1, 104
      %v375 = vld [vmem:[%s374] sm:$0xf]
      %v376 = vld [vmem:[%s374 + $0x4] sm:$0xf]
      %v377 = vld [vmem:[%s374 + $0x8] sm:$0xf]
      %v378 = vld [vmem:[%s374 + $0xc] sm:$0xf]
      %v379 = vld [vmem:[%s374 + $0x10] sm:$0xf]
      %v380 = vld [vmem:[%s374 + $0x14] sm:$0xf]
      %v381 = vld [vmem:[%s374 + $0x18] sm:$0xf]
      %v382 = vld [vmem:[%s374 + $0x1c] sm:$0xf]
      %v383 = vld [vmem:[%s374 + $0x20] sm:$0xf]
      %v384 = vld [vmem:[%s374 + $0x24] sm:$0xf]
      %v385 = vld [vmem:[%s374 + $0x28] sm:$0xf]
      %v386 = vld [vmem:[%s374 + $0x2c] sm:$0xf]
      %v387 = vld [vmem:[%s374 + $0x30] sm:$0xf]
      %v401 = vunpack.c.l.b16 %v375
      %v402 = vunpack.c.l.b16 %v376
      %v403 = vunpack.c.l.b16 %v377
      %v404 = vunpack.c.l.b16 %v378
      %v405 = vunpack.c.l.b16 %v379
      %v406 = vunpack.c.l.b16 %v380
      %v407 = vunpack.c.l.b16 %v381
      %v408 = vunpack.c.l.b16 %v382
      %v409 = vunpack.c.l.b16 %v383
      %v410 = vunpack.c.l.b16 %v384
      %v411 = vunpack.c.l.b16 %v385
      %v412 = vunpack.c.l.b16 %v386
      %v413 = vunpack.c.l.b16 %v387
      %v414 = vpack.c.b16 %v402, %v401
      %v415 = vpack.c.b16 %v404, %v403
      %v416 = vpack.c.b16 %v406, %v405
      %v417 = vpack.c.b16 %v408, %v407
      %v418 = vpack.c.b16 %v410, %v409
      %v419 = vpack.c.b16 %v412, %v411
      %v420 = vpack.c.b16 %v413, %v413
      %v428 = vsel %vm239, %v373, 0
      %v431 = vsel %vm243, %v420, 0
      %433 = vmatprep.subr.bf16.mxu0 0
      %434 = vmatpush1.bf16.msra.mxu0 0
      %435 = vmatprep.subr.bf16.mxu0 0
      %436 = vmatpush1.bf16.msra.mxu0 %v431
      %437 = vmatprep.subr.bf16.mxu0 0
      %438 = vmatpush1.bf16.msra.mxu0 %v419
      %439 = vmatprep.subr.bf16.mxu0 0
      %440 = vmatpush1.bf16.msra.mxu0 %v418
      %441 = vmatprep.subr.bf16.mxu0 0
      %442 = vmatpush1.bf16.msra.mxu0 %v417
      %443 = vmatprep.subr.bf16.mxu0 0
      %444 = vmatpush1.bf16.msra.mxu0 %v416
      %445 = vmatprep.subr.bf16.mxu0 0
      %446 = vmatpush1.bf16.msra.mxu0 %v415
      %447 = vmatprep.subr.bf16.mxu0 0
      %448 = vmatpush1.bf16.msra.mxu0 %v414
      %449 = vmatprep.subr.bf16.mxu0 0
      %450 = vmatpush2.bf16.msra.mxu0 0
      %451 = vmatprep.subr.bf16.mxu0 0
      %452 = vmatpush2.bf16.msra.mxu0 0
      %453 = vmatprep.subr.bf16.mxu0 0
      %454 = vmatpush2.bf16.msra.mxu0 0
      %455 = vmatprep.subr.bf16.mxu0 0
      %456 = vmatpush2.bf16.msra.mxu0 0
      %457 = vmatprep.subr.bf16.mxu0 0
      %458 = vmatpush2.bf16.msra.mxu0 0
      %459 = vmatprep.subr.bf16.mxu0 0
      %460 = vmatpush2.bf16.msra.mxu0 0
      %461 = vmatprep.subr.bf16.mxu0 0
      %462 = vmatpush2.bf16.msra.mxu0 0
      %463 = vmatprep.subr.bf16.mxu0 0
      %464 = vmatpush2.bf16.msra.mxu0 0
      %465 = vmatprep.mubr.bf16.mxu0 0
      %466 = vmatmul.mubr.bf16.gmra.mxu0 %v428
      %v467 = vpop.f32.mrf.mxu0
      %v468 = vadd.f32 0.0, %v467
      %v469 = vpop.f32.mrf.mxu0
      %v470 = vpop.f32.mrf.mxu0
      %v471 = vpop.f32.mrf.mxu0
      %472 = vdwg.mxu0
      %v473 = vadd.f32 %v367, %v468
      %v474 = vld [vmem:[%s2] sm:$0x1]
      %v476 = vlaneseq
      %v477 = vshrl.u32 %v476, 7
      %v478 = vsub.s32 0, %v477
      %v479 = vrot.slane %v474, %v478
      %v481 = vadd.f32 %v473, %v479
      %v482 = vmax.f32 %v481, 0.0
      %v483 = vpack.c.bf16 %v482, %v482
      %vm484 = vcmask 517120
      %485 = vst.msk [vmem:[%s168] sm:$0x3] %vm484, %v483
      %p486 = scmp.lt.s32.totalorder %s14, 1
      %s487 = scalar_select %p486, %s14, 1
      %s488 = smul.addr %s487, 2
      %s489 = scalar_lea.vmem %s3, %s488
      // Predicated region
      $region33: #{ttfnet_forward.4} parent=31 // pred_check
        %p490 = pneg %p100
      $region34: #{ttfnet_forward.4} parent=31 // pred_check_branch
        %492 = sbr.rel (%p490) target = $region36
      $region35: #{ttfnet_forward.4} parent=31 // pred_region
        _
      $region36: #{ttfnet_forward.4} parent=31 // pred_fallthru
        _
    $region32: #{ttfnet_forward.4} parent=5 // pred_fallthru
      _
    %p493 = scmp.le.s32.totalorder 2, %s9
    // Predicated region
    $region37: #{ttfnet_forward.4} parent=5 // pred_check
      %p494 = pneg %p493
    $region38: #{ttfnet_forward.4} parent=5 // pred_check_branch
      %496 = sbr.rel (%p494) target = $region40
    $region39: #{ttfnet_forward.4} parent=5 // pred_region
      %s497 = ssub.s32 %s9, 2
      // Predicated region
      $region41: #{ttfnet_forward.4} parent=39 // pred_check
        %p498 = pneg %p106
      $region42: #{ttfnet_forward.4} parent=39 // pred_check_branch
        %500 = sbr.rel (%p498) target = $region44
      $region43: #{ttfnet_forward.4} parent=39 // pred_region
        %p501 = scmp.lt.s32.totalorder %s15, 1
        %s502 = scalar_select %p501, %s15, 1
        %s503 = smul.addr %s502, 2
        %s504 = scalar_lea.vmem %s3, %s503
      $region44: #{ttfnet_forward.4} parent=39 // pred_fallthru
        _
    $region40: #{ttfnet_forward.4} parent=5 // pred_fallthru
      _
  $region6: #{ttfnet_forward.4} parent=0 // loop_footer
    %s13 = sadd.s32 1, %s9
  $region7: #{ttfnet_forward.4} parent=0 // loop_footer_branch
    %8 = sbr.rel target = $region3
  $region8: #{ttfnet_forward.4} parent=0 // loop_exit
    _

// kernel: tile.27
$region0: #{tile.27}
  #allocation0 [shape = 's32[1]{0}', space=sflag, size = 0x4, scoped, tag = 'scoped memory for tile.27']
  %s0 = inlined_call_operand.vmem [shape: f32[16], index: 0, kind: input, shape index: {}]
  %s1 = inlined_call_operand.vmem [shape: f32[8,16], index: 1, kind: output, shape index: {}]
  // Predicated region
  $region2: #{tile.27} parent=0 // pred_check
    _
  $region3: #{tile.27} parent=0 // pred_check_branch
    %3 = sbr.rel (0) target = $region5
  $region4: #{tile.27} parent=0 // pred_region
    _
  $region5: #{tile.27} parent=0 // pred_fallthru
    _
  %v4 = vld [vmem:[%s0] ss:$0 sm:$0xff]
  %5 = vst [vmem:[%s1] sm:$0xff] %v4

// kernel: tile.28
$region0: #{tile.28}
  %s0 = inlined_call_operand.vmem [shape: f32[8,16], index: 0, kind: input, shape index: {}]
  %s1 = inlined_call_operand.vmem [shape: f32[1,128], index: 1, kind: output, shape index: {}]
  $region1: #{tile.28} parent=0
    #allocation0 [shape = 'u8[4096]{0}', space=vmem, size = 0x1000, scoped, tag = 'scoped mem for output reshape']
    %v2 = vld [vmem:[%s0] sm:$0x1]
    %vm3 = vcmask 130048
    %4 = vst.msk [vmem:[#allocation0] sm:$0x1] %vm3, %v2
    %s5 = scalar_lea.vmem %s0, 7
    %v6 = vld [vmem:[%s5] sm:$0x1]
    %7 = vrot.lane.b32.xlu0 %v6, 112
    %v8 = vpop.permute.xlu0 %7
    %vm9 = vcmask 1048448
    %10 = vst.msk [vmem:[#allocation0] sm:$0x1] %vm9, %v8
    %s11 = scalar_lea.vmem %s0, 6
    %v12 = vld [vmem:[%s11] sm:$0x1]
    %13 = vrot.lane.b32.xlu0 %v12, 96
    %v14 = vpop.permute.xlu0 %13
    %vm15 = vcmask 917248
    %16 = vst.msk [vmem:[#allocation0] sm:$0x1] %vm15, %v14
    %s17 = scalar_lea.vmem %s0, 5
    %v18 = vld [vmem:[%s17] sm:$0x1]
    %19 = vrot.lane.b32.xlu0 %v18, 80
    %v20 = vpop.permute.xlu0 %19
    %vm21 = vcmask 786048
    %22 = vst.msk [vmem:[#allocation0] sm:$0x1] %vm21, %v20
    %s23 = scalar_lea.vmem %s0, 4
    %v24 = vld [vmem:[%s23] sm:$0x1]
    %25 = vrot.lane.b32.xlu0 %v24, 64
    %v26 = vpop.permute.xlu0 %25
    %vm27 = vcmask 654848
    %28 = vst.msk [vmem:[#allocation0] sm:$0x1] %vm27, %v26
    %s29 = scalar_lea.vmem %s0, 3
    %v30 = vld [vmem:[%s29] sm:$0x1]
    %31 = vrot.lane.b32.xlu0 %v30, 48
    %v32 = vpop.permute.xlu0 %31
    %vm33 = vcmask 523648
    %34 = vst.msk [vmem:[#allocation0] sm:$0x1] %vm33, %v32
    %s35 = scalar_lea.vmem %s0, 2
    %v36 = vld [vmem:[%s35] sm:$0x1]
    %37 = vrot.lane.b32.xlu0 %v36, 32
    %v38 = vpop.permute.xlu0 %37
    %vm39 = vcmask 392448
    %40 = vst.msk [vmem:[#allocation0] sm:$0x1] %vm39, %v38
    %s41 = scalar_lea.vmem %s0, 1
    %v42 = vld [vmem:[%s41] sm:$0x1]
    %43 = vrot.lane.b32.xlu0 %v42, 16
    %v44 = vpop.permute.xlu0 %43
    %vm45 = vcmask 261248
    %46 = vst.msk [vmem:[#allocation0] sm:$0x1] %vm45, %v44
    %s48 = sshll.u32 1, 1
    %s49 = ssub.s32 %s48, 1
    %v51 = vld [vmem:[#allocation0] sm:%s49]
    %s52 = sshll.u32 1, 1
    %s53 = ssub.s32 %s52, 1
    %54 = vst [vmem:[%s1] sm:%s53] %v51

// kernel: ttfnet_forward.5
$region0: #{ttfnet_forward.5}
  #allocation0 [shape = 'u32[]', space=smem, size = 0x4, offset = 0x4, fixed_abs, tag = 'smem constant byte address 0x4 - core index']
  #allocation1 [shape = 'u32[144,128]{1,0:T(1,128)}', space=vmem, size = 0x12000, scoped, tag = 'internal scratch']
  %s0 = inlined_call_operand.vmem [shape: bf16[2,10,160], index: 0, kind: input, shape index: {}]
  %s1 = inlined_call_operand.vmem [shape: bf16[3,160,128], index: 1, kind: input, shape index: {}]
  %s2 = inlined_call_operand.vmem [shape: f32[1,128], index: 2, kind: input, shape index: {}]
  %s3 = inlined_call_operand.vmem [shape: bf16[2,8,128], index: 3, kind: output, shape index: {}]
  %s4 = sld [smem:[#allocation0]]
  $region45: #{ttfnet_forward.5} parent=0
    _
  %s6 = ssub.s32 1, %s4
  %s7 = scalar_select 0, %s6, %s4
  loop: start=0, step=1, limit=4
  $region2: #{ttfnet_forward.5} parent=0 // loop_pre_header
    _
  $region3: #{ttfnet_forward.5} parent=0 // loop_header
    %s9 = sphi 0, %s13
    %p10 = scmp.ge.s32.totalorder %s9, 4
    %s19 = sphi 0, %s21
    %s22 = sphi 0, %s19
    %s23 = sphi 0, %s22
    %s39 = sphi 0, %s23
    %s43 = sphi 0, %s43
    %s45 = sphi 0, %s43
    %s46 = sphi 0, %s45
    %s60 = sphi 0, %s46
    %s64 = sphi 0, %s64
    %s66 = sphi 0, %s64
    %s67 = sphi 0, %s66
    %s81 = sphi 0, %s67
    %s87 = sphi 0, %s89
    %s90 = sphi 0, %s87
    %s91 = sphi 0, %s90
    %s107 = sphi 0, %s91
  $region4: #{ttfnet_forward.5} parent=0 // loop_header_branch
    %12 = sbr.rel (%p10) target = $region8
  $region5: #{ttfnet_forward.5} parent=0 // loop_body
    %s14 = ssub.s32 %s9, 1
    %s15 = ssub.s32 %s9, 2
    %s16 = sadd.s32 %s9, 1
    %s17 = ssub.s32 %s9, %s16
    %p18 = scmp.eq.s32.totalorder %s17, 0
    %s20 = sadd.s32 %s19, 1
    %s21 = scalar_select %p18, %s19, %s20
    %p24 = pneg %p18
    %p25 = scmp.eq.s32.totalorder %s9, 1
    %p26 = por %p24, %p25
    %p27 = scmp.ne.s32.totalorder %s19, %s22
    %p28 = scmp.eq.s32.totalorder %s9, 0
    %p29 = por %p27, %p28
    %p30 = scmp.ne.s32.totalorder %s19, %s22
    %p31 = scmp.eq.s32.totalorder %s14, 1
    %p32 = por %p30, %p31
    %p33 = scmp.ne.s32.totalorder %s22, %s23
    %p34 = scmp.eq.s32.totalorder %s14, 0
    %p35 = por %p33, %p34
    %p36 = scmp.ne.s32.totalorder %s22, %s23
    %p37 = scmp.eq.s32.totalorder %s15, 1
    %p38 = por %p36, %p37
    %p40 = scmp.ne.s32.totalorder %s23, %s39
    %p41 = scmp.eq.s32.totalorder %s15, 0
    %p42 = por %p40, %p41
    %s44 = sadd.s32 %s43, 1
    %p47 = scmp.eq.s32.totalorder %s9, 1
    %p48 = scmp.ne.s32.totalorder %s43, %s45
    %p49 = scmp.eq.s32.totalorder %s9, 0
    %p50 = por %p48, %p49
    %p51 = scmp.ne.s32.totalorder %s43, %s45
    %p52 = scmp.eq.s32.totalorder %s14, 1
    %p53 = por %p51, %p52
    %p54 = scmp.ne.s32.totalorder %s45, %s46
    %p55 = scmp.eq.s32.totalorder %s14, 0
    %p56 = por %p54, %p55
    %p57 = scmp.ne.s32.totalorder %s45, %s46
    %p58 = scmp.eq.s32.totalorder %s15, 1
    %p59 = por %p57, %p58
    %p61 = scmp.ne.s32.totalorder %s46, %s60
    %p62 = scmp.eq.s32.totalorder %s15, 0
    %p63 = por %p61, %p62
    %s65 = sadd.s32 %s64, 1
    %p68 = scmp.eq.s32.totalorder %s9, 1
    %p69 = scmp.ne.s32.totalorder %s64, %s66
    %p70 = scmp.eq.s32.totalorder %s9, 0
    %p71 = por %p69, %p70
    %p72 = scmp.ne.s32.totalorder %s64, %s66
    %p73 = scmp.eq.s32.totalorder %s14, 1
    %p74 = por %p72, %p73
    %p75 = scmp.ne.s32.totalorder %s66, %s67
    %p76 = scmp.eq.s32.totalorder %s14, 0
    %p77 = por %p75, %p76
    %p78 = scmp.ne.s32.totalorder %s66, %s67
    %p79 = scmp.eq.s32.totalorder %s15, 1
    %p80 = por %p78, %p79
    %p82 = scmp.ne.s32.totalorder %s67, %s81
    %p83 = scmp.eq.s32.totalorder %s15, 0
    %p84 = por %p82, %p83
    %s85 = ssub.s32 %s9, %s16
    %p86 = scmp.eq.s32.totalorder %s85, 0
    %s88 = sadd.s32 %s87, 1
    %s89 = scalar_select %p86, %s87, %s88
    %p92 = pneg %p86
    %p93 = scmp.eq.s32.totalorder %s9, 1
    %p94 = por %p92, %p93
    %p95 = scmp.ne.s32.totalorder %s87, %s90
    %p96 = scmp.eq.s32.totalorder %s9, 0
    %p97 = por %p95, %p96
    %p98 = scmp.ne.s32.totalorder %s87, %s90
    %p99 = scmp.eq.s32.totalorder %s14, 1
    %p100 = por %p98, %p99
    %p101 = scmp.ne.s32.totalorder %s90, %s91
    %p102 = scmp.eq.s32.totalorder %s14, 0
    %p103 = por %p101, %p102
    %p104 = scmp.ne.s32.totalorder %s90, %s91
    %p105 = scmp.eq.s32.totalorder %s15, 1
    %p106 = por %p104, %p105
    %p108 = scmp.ne.s32.totalorder %s91, %s107
    %p109 = scmp.eq.s32.totalorder %s15, 0
    %p110 = por %p108, %p109
    %p111 = scmp.le.s32.totalorder 1, %s9
    %p112 = scmp.lt.s32.totalorder %s9, 3
    %p113 = pnand %p111, %p112
    %p114 = pneg %p113
    // Predicated region
    $region9: #{ttfnet_forward.5} parent=5 // pred_check
      _
    $region10: #{ttfnet_forward.5} parent=5 // pred_check_branch
      %116 = sbr.rel (%p113) target = $region12
    $region11: #{ttfnet_forward.5} parent=5 // pred_region
      %s117 = ssub.s32 %s9, 1
      // Predicated region
      $region13: #{ttfnet_forward.5} parent=11 // pred_check
        %p118 = pneg %p56
      $region14: #{ttfnet_forward.5} parent=11 // pred_check_branch
        %120 = sbr.rel (%p118) target = $region16
      $region15: #{ttfnet_forward.5} parent=11 // pred_region
        _
      $region16: #{ttfnet_forward.5} parent=11 // pred_fallthru
        _
      // Predicated region
      $region17: #{ttfnet_forward.5} parent=11 // pred_check
        %p121 = pneg %p77
      $region18: #{ttfnet_forward.5} parent=11 // pred_check_branch
        %123 = sbr.rel (%p121) target = $region20
      $region19: #{ttfnet_forward.5} parent=11 // pred_region
        _
      $region20: #{ttfnet_forward.5} parent=11 // pred_fallthru
        _
    $region12: #{ttfnet_forward.5} parent=5 // pred_fallthru
      _
    %p124 = scmp.lt.s32.totalorder %s9, 2
    // Predicated region
    $region21: #{ttfnet_forward.5} parent=5 // pred_check
      %p125 = pneg %p124
    $region22: #{ttfnet_forward.5} parent=5 // pred_check_branch
      %127 = sbr.rel (%p125) target = $region24
    $region23: #{ttfnet_forward.5} parent=5 // pred_region
      // Predicated region
      $region25: #{ttfnet_forward.5} parent=23 // pred_check
        %p128 = pneg %p29
      $region26: #{ttfnet_forward.5} parent=23 // pred_check_branch
        %130 = sbr.rel (%p128) target = $region28
      $region27: #{ttfnet_forward.5} parent=23 // pred_region
        %p131 = scmp.lt.s32.totalorder %s9, 1
        %s132 = scalar_select %p131, %s9, 1
        %s133 = smul.addr %s132, 4
        %s134 = smul.addr %s133, 4
        %s135 = scalar_lea.vmem %s0, %s134
      $region28: #{ttfnet_forward.5} parent=23 // pred_fallthru
        _
    $region24: #{ttfnet_forward.5} parent=5 // pred_fallthru
      _
    %p136 = scmp.le.s32.totalorder 1, %s9
    %p137 = scmp.lt.s32.totalorder %s9, 3
    %p138 = pnand %p136, %p137
    %p139 = pneg %p138
    // Predicated region
    $region29: #{ttfnet_forward.5} parent=5 // pred_check
      _
    $region30: #{ttfnet_forward.5} parent=5 // pred_check_branch
      %141 = sbr.rel (%p138) target = $region32
    $region31: #{ttfnet_forward.5} parent=5 // pred_region
      %s142 = ssub.s32 %s9, 1
      %p143 = scmp.lt.s32.totalorder %s14, 1
      %s144 = scalar_select %p143, %s14, 1
      %s145 = smul.addr %s144, 4
      %s146 = smul.addr %s145, 4
      %s147 = scalar_lea.vmem %s0, %s146
      %p148 = pneg %p35
      %p149 = pneg %p32
      %p150 = pneg %p56
      %p151 = pneg %p53
      %p152 = pneg %p77
      %p153 = pneg %p74
      %p154 = pneg %p103
      %p155 = pneg %p100
      %p156 = scmp.lt.s32.totalorder %s14, 1
      %s157 = scalar_select %p156, %s14, 1
      %s158 = smul.addr %s157, 4
      %s159 = scalar_lea.vmem %s3, %s158
      %p160 = scmp.lt.s32.totalorder %s14, 1
      %s161 = scalar_select %p160, %s14, 1
      %s162 = smul.addr %s161, 4
      %s163 = smul.addr %s162, 4
      %s164 = scalar_lea.vmem %s0, %s163
      %p165 = scmp.lt.s32.totalorder %s14, 1
      %s166 = scalar_select %p165, %s14, 1
      %s167 = smul.addr %s166, 4
      %s168 = scalar_lea.vmem %s3, %s167
      %v170 = vld [vmem:[%s164] sm:$0xff]
      %v171 = vld [vmem:[%s1] sm:$0xf]
      %v172 = vld [vmem:[%s1 + $0x4] sm:$0xf]
      %v173 = vld [vmem:[%s1 + $0x8] sm:$0xf]
      %v174 = vld [vmem:[%s1 + $0xc] sm:$0xf]
      %v175 = vld [vmem:[%s1 + $0x10] sm:$0xf]
      %v176 = vld [vmem:[%s1 + $0x14] sm:$0xf]
      %v177 = vld [vmem:[%s1 + $0x18] sm:$0xf]
      %v178 = vld [vmem:[%s1 + $0x1c] sm:$0xf]
      %v179 = vld [vmem:[%s1 + $0x20] sm:$0xf]
      %v180 = vld [vmem:[%s1 + $0x24] sm:$0xf]
      %v181 = vld [vmem:[%s1 + $0x28] sm:$0xf]
      %v182 = vld [vmem:[%s1 + $0x2c] sm:$0xf]
      %v183 = vld [vmem:[%s1 + $0x30] sm:$0xf]
      %v184 = vld [vmem:[%s1 + $0x34] sm:$0xf]
      %v185 = vld [vmem:[%s1 + $0x38] sm:$0xf]
      %v186 = vld [vmem:[%s1 + $0x3c] sm:$0xf]
      %v187 = vld [vmem:[%s1 + $0x40] sm:$0xf]
      %v188 = vld [vmem:[%s1 + $0x44] sm:$0xf]
      %v189 = vld [vmem:[%s1 + $0x48] sm:$0xf]
      %v190 = vld [vmem:[%s1 + $0x4c] sm:$0xf]
      %v191 = vld [vmem:[%s164 + $0x8] sm:$0x11]
      %s192 = scalar_lea.vmem %s1, 80
      %v193 = vld [vmem:[%s192] sm:$0xf]
      %v194 = vld [vmem:[%s192 + $0x4] sm:$0xf]
      %v195 = vld [vmem:[%s192 + $0x8] sm:$0xf]
      %v196 = vld [vmem:[%s192 + $0xc] sm:$0xf]
      %v197 = vld [vmem:[%s192 + $0x10] sm:$0xf]
      %v198 = vld [vmem:[%s192 + $0x14] sm:$0xf]
      %v199 = vld [vmem:[%s192 + $0x18] sm:$0xf]
      %v200 = vld [vmem:[%s192 + $0x1c] sm:$0xf]
      %v201 = vld [vmem:[%s192 + $0x20] sm:$0xf]
      %v202 = vld [vmem:[%s192 + $0x24] sm:$0xf]
      %v203 = vld [vmem:[%s192 + $0x28] sm:$0xf]
      %v204 = vld [vmem:[%s192 + $0x2c] sm:$0xf]
      %v205 = vld [vmem:[%s192 + $0x30] sm:$0xf]
      %v206 = vld [vmem:[%s192 + $0x34] sm:$0xf]
      %v207 = vld [vmem:[%s192 + $0x38] sm:$0xf]
      %v208 = vld [vmem:[%s192 + $0x3c] sm:$0xf]
      %v209 = vld [vmem:[%s192 + $0x40] sm:$0xf]
      %v210 = vld [vmem:[%s192 + $0x44] sm:$0xf]
      %v211 = vld [vmem:[%s192 + $0x48] sm:$0xf]
      %v212 = vld [vmem:[%s192 + $0x4c] sm:$0xf]
      %v215 = vunpack.c.l.b16 %v170
      %v216 = vunpack.c.h.b16 %v170
      %v217 = vunpack.c.l.b16 %v191
      %v218 = vunpack.c.h.b16 %v191
      %v219 = vpack.c.b16 %v217, %v215
      %v220 = vpack.c.b16 %v218, %v216
      %v222 = vshrl.u32 %v219, 16
      %v224 = vshll.u32 %v219, 16
      %v226 = vrot.slane %v224, 1
      %v227 = vor.u32 %v222, %v226
      %v229 = vshrl.u32 %v220, 16
      %v231 = vshll.u32 %v220, 16
      %v233 = vrot.slane %v231, 1
      %v234 = vor.u32 %v229, %v233
      %v256 = vunpack.c.l.b16 %v193
      %v257 = vunpack.c.l.b16 %v194
      %v258 = vunpack.c.l.b16 %v195
      %v259 = vunpack.c.l.b16 %v196
      %v260 = vunpack.c.l.b16 %v197
      %v261 = vunpack.c.l.b16 %v198
      %v262 = vunpack.c.l.b16 %v199
      %v263 = vunpack.c.l.b16 %v200
      %v264 = vunpack.c.l.b16 %v201
      %v265 = vunpack.c.l.b16 %v202
      %v266 = vunpack.c.l.b16 %v203
      %v267 = vunpack.c.l.b16 %v204
      %v268 = vunpack.c.l.b16 %v205
      %v269 = vunpack.c.l.b16 %v206
      %v270 = vunpack.c.l.b16 %v207
      %v271 = vunpack.c.l.b16 %v208
      %v272 = vunpack.c.l.b16 %v209
      %v273 = vunpack.c.l.b16 %v210
      %v274 = vunpack.c.l.b16 %v211
      %v275 = vunpack.c.l.b16 %v212
      %v276 = vpack.c.b16 %v257, %v256
      %v277 = vpack.c.b16 %v259, %v258
      %v278 = vpack.c.b16 %v261, %v260
      %v279 = vpack.c.b16 %v263, %v262
      %v280 = vpack.c.b16 %v265, %v264
      %v281 = vpack.c.b16 %v267, %v266
      %v282 = vpack.c.b16 %v269, %v268
      %v283 = vpack.c.b16 %v271, %v270
      %v284 = vpack.c.b16 %v273, %v272
      %v285 = vpack.c.b16 %v275, %v274
      %vm296 = vcmask 261120
      %v298 = vsel %vm296, %v234, 0
      %300 = vmatprep.subr.bf16.mxu0 0
      %301 = vmatpush1.bf16.msra.mxu0 %v283
      %302 = vmatprep.subr.bf16.mxu0 0
      %303 = vmatpush1.bf16.msra.mxu0 %v282
      %304 = vmatprep.subr.bf16.mxu0 0
      %305 = vmatpush1.bf16.msra.mxu0 %v281
      %306 = vmatprep.subr.bf16.mxu0 0
      %307 = vmatpush1.bf16.msra.mxu0 %v280
      %308 = vmatprep.subr.bf16.mxu0 0
      %309 = vmatpush1.bf16.msra.mxu0 %v279
      %310 = vmatprep.subr.bf16.mxu0 0
      %311 = vmatpush1.bf16.msra.mxu0 %v278
      %312 = vmatprep.subr.bf16.mxu0 0
      %313 = vmatpush1.bf16.msra.mxu0 %v277
      %314 = vmatprep.subr.bf16.mxu0 0
      %315 = vmatpush1.bf16.msra.mxu0 %v276
      %316 = vmatprep.subr.bf16.mxu0 0
      %317 = vmatpush2.bf16.msra.mxu0 0
      %318 = vmatprep.subr.bf16.mxu0 0
      %319 = vmatpush2.bf16.msra.mxu0 0
      %320 = vmatprep.subr.bf16.mxu0 0
      %321 = vmatpush2.bf16.msra.mxu0 0
      %322 = vmatprep.subr.bf16.mxu0 0
      %323 = vmatpush2.bf16.msra.mxu0 0
      %324 = vmatprep.subr.bf16.mxu0 0
      %325 = vmatpush2.bf16.msra.mxu0 0
      %326 = vmatprep.subr.bf16.mxu0 0
      %327 = vmatpush2.bf16.msra.mxu0 0
      %328 = vmatprep.subr.bf16.mxu0 0
      %329 = vmatpush2.bf16.msra.mxu0 %v285
      %330 = vmatprep.subr.bf16.mxu0 0
      %331 = vmatpush2.bf16.msra.mxu0 %v284
      %332 = vmatprep.mubr.bf16.mxu0 %v298
      %333 = vmatmul.mubr.bf16.gmra.mxu0 %v227
      %v334 = vpop.f32.mrf.mxu0
      %v335 = vadd.f32 0.0, %v334
      %v336 = vpop.f32.mrf.mxu0
      %v337 = vpop.f32.mrf.mxu0
      %v338 = vpop.f32.mrf.mxu0
      %339 = vdwg.mxu0
      %v340 = vpack.c.b16 %v215, %v215
      %v341 = vpack.c.b16 %v216, %v216
      %v363 = vunpack.c.l.b16 %v171
      %v364 = vunpack.c.l.b16 %v172
      %v365 = vunpack.c.l.b16 %v173
      %v366 = vunpack.c.l.b16 %v174
      %v367 = vunpack.c.l.b16 %v175
      %v368 = vunpack.c.l.b16 %v176
      %v369 = vunpack.c.l.b16 %v177
      %v370 = vunpack.c.l.b16 %v178
      %v371 = vunpack.c.l.b16 %v179
      %v372 = vunpack.c.l.b16 %v180
      %v373 = vunpack.c.l.b16 %v181
      %v374 = vunpack.c.l.b16 %v182
      %v375 = vunpack.c.l.b16 %v183
      %v376 = vunpack.c.l.b16 %v184
      %v377 = vunpack.c.l.b16 %v185
      %v378 = vunpack.c.l.b16 %v186
      %v379 = vunpack.c.l.b16 %v187
      %v380 = vunpack.c.l.b16 %v188
      %v381 = vunpack.c.l.b16 %v189
      %v382 = vunpack.c.l.b16 %v190
      %v383 = vpack.c.b16 %v364, %v363
      %v384 = vpack.c.b16 %v366, %v365
      %v385 = vpack.c.b16 %v368, %v367
      %v386 = vpack.c.b16 %v370, %v369
      %v387 = vpack.c.b16 %v372, %v371
      %v388 = vpack.c.b16 %v374, %v373
      %v389 = vpack.c.b16 %v376, %v375
      %v390 = vpack.c.b16 %v378, %v377
      %v391 = vpack.c.b16 %v380, %v379
      %v392 = vpack.c.b16 %v382, %v381
      %v404 = vsel %vm296, %v341, 0
      %406 = vmatprep.subr.bf16.mxu0 0
      %407 = vmatpush1.bf16.msra.mxu0 %v390
      %408 = vmatprep.subr.bf16.mxu0 0
      %409 = vmatpush1.bf16.msra.mxu0 %v389
      %410 = vmatprep.subr.bf16.mxu0 0
      %411 = vmatpush1.bf16.msra.mxu0 %v388
      %412 = vmatprep.subr.bf16.mxu0 0
      %413 = vmatpush1.bf16.msra.mxu0 %v387
      %414 = vmatprep.subr.bf16.mxu0 0
      %415 = vmatpush1.bf16.msra.mxu0 %v386
      %416 = vmatprep.subr.bf16.mxu0 0
      %417 = vmatpush1.bf16.msra.mxu0 %v385
      %418 = vmatprep.subr.bf16.mxu0 0
      %419 = vmatpush1.bf16.msra.mxu0 %v384
      %420 = vmatprep.subr.bf16.mxu0 0
      %421 = vmatpush1.bf16.msra.mxu0 %v383
      %422 = vmatprep.subr.bf16.mxu0 0
      %423 = vmatpush2.bf16.msra.mxu0 0
      %424 = vmatprep.subr.bf16.mxu0 0
      %425 = vmatpush2.bf16.msra.mxu0 0
      %426 = vmatprep.subr.bf16.mxu0 0
      %427 = vmatpush2.bf16.msra.mxu0 0
      %428 = vmatprep.subr.bf16.mxu0 0
      %429 = vmatpush2.bf16.msra.mxu0 0
      %430 = vmatprep.subr.bf16.mxu0 0
      %431 = vmatpush2.bf16.msra.mxu0 0
      %432 = vmatprep.subr.bf16.mxu0 0
      %433 = vmatpush2.bf16.msra.mxu0 0
      %434 = vmatprep.subr.bf16.mxu0 0
      %435 = vmatpush2.bf16.msra.mxu0 %v392
      %436 = vmatprep.subr.bf16.mxu0 0
      %437 = vmatpush2.bf16.msra.mxu0 %v391
      %438 = vmatprep.mubr.bf16.mxu0 %v404
      %439 = vmatmul.mubr.bf16.gmra.mxu0 %v340
      %v440 = vpop.f32.mrf.mxu0
      %v441 = vadd.f32 %v335, %v440
      %v442 = vpop.f32.mrf.mxu0
      %v443 = vpop.f32.mrf.mxu0
      %v444 = vpop.f32.mrf.mxu0
      %445 = vdwg.mxu0
      %v446 = vld [vmem:[%s164] sm:$0xee]
      %s447 = scalar_lea.vmem %s1, 160
      %v448 = vld [vmem:[%s447] sm:$0xf]
      %v449 = vld [vmem:[%s447 + $0x4] sm:$0xf]
      %v450 = vld [vmem:[%s447 + $0x8] sm:$0xf]
      %v451 = vld [vmem:[%s447 + $0xc] sm:$0xf]
      %v452 = vld [vmem:[%s447 + $0x10] sm:$0xf]
      %v453 = vld [vmem:[%s447 + $0x14] sm:$0xf]
      %v454 = vld [vmem:[%s447 + $0x18] sm:$0xf]
      %v455 = vld [vmem:[%s447 + $0x1c] sm:$0xf]
      %v456 = vld [vmem:[%s447 + $0x20] sm:$0xf]
      %v457 = vld [vmem:[%s447 + $0x24] sm:$0xf]
      %v458 = vld [vmem:[%s447 + $0x28] sm:$0xf]
      %v459 = vld [vmem:[%s447 + $0x2c] sm:$0xf]
      %v460 = vld [vmem:[%s447 + $0x30] sm:$0xf]
      %v461 = vld [vmem:[%s447 + $0x34] sm:$0xf]
      %v462 = vld [vmem:[%s447 + $0x38] sm:$0xf]
      %v463 = vld [vmem:[%s447 + $0x3c] sm:$0xf]
      %v464 = vld [vmem:[%s447 + $0x40] sm:$0xf]
      %v465 = vld [vmem:[%s447 + $0x44] sm:$0xf]
      %v466 = vld [vmem:[%s447 + $0x48] sm:$0xf]
      %v467 = vld [vmem:[%s447 + $0x4c] sm:$0xf]
      %v469 = vunpack.c.l.b16 %v446
      %v470 = vunpack.c.h.b16 %v446
      %v471 = vpack.c.b16 %v217, %v469
      %v472 = vpack.c.b16 %v218, %v470
      %v473 = vrot.slane %v471, 1
      %v474 = vrot.slane %v472, 1
      %v496 = vunpack.c.l.b16 %v448
      %v497 = vunpack.c.l.b16 %v449
      %v498 = vunpack.c.l.b16 %v450
      %v499 = vunpack.c.l.b16 %v451
      %v500 = vunpack.c.l.b16 %v452
      %v501 = vunpack.c.l.b16 %v453
      %v502 = vunpack.c.l.b16 %v454
      %v503 = vunpack.c.l.b16 %v455
      %v504 = vunpack.c.l.b16 %v456
      %v505 = vunpack.c.l.b16 %v457
      %v506 = vunpack.c.l.b16 %v458
      %v507 = vunpack.c.l.b16 %v459
      %v508 = vunpack.c.l.b16 %v460
      %v509 = vunpack.c.l.b16 %v461
      %v510 = vunpack.c.l.b16 %v462
      %v511 = vunpack.c.l.b16 %v463
      %v512 = vunpack.c.l.b16 %v464
      %v513 = vunpack.c.l.b16 %v465
      %v514 = vunpack.c.l.b16 %v466
      %v515 = vunpack.c.l.b16 %v467
      %v516 = vpack.c.b16 %v497, %v496
      %v517 = vpack.c.b16 %v499, %v498
      %v518 = vpack.c.b16 %v501, %v500
      %v519 = vpack.c.b16 %v503, %v502
      %v520 = vpack.c.b16 %v505, %v504
      %v521 = vpack.c.b16 %v507, %v506
      %v522 = vpack.c.b16 %v509, %v508
      %v523 = vpack.c.b16 %v511, %v510
      %v524 = vpack.c.b16 %v513, %v512
      %v525 = vpack.c.b16 %v515, %v514
      %v537 = vsel %vm296, %v474, 0
      %539 = vmatprep.subr.bf16.mxu0 0
      %540 = vmatpush1.bf16.msra.mxu0 %v523
      %541 = vmatprep.subr.bf16.mxu0 0
      %542 = vmatpush1.bf16.msra.mxu0 %v522
      %543 = vmatprep.subr.bf16.mxu0 0
      %544 = vmatpush1.bf16.msra.mxu0 %v521
      %545 = vmatprep.subr.bf16.mxu0 0
      %546 = vmatpush1.bf16.msra.mxu0 %v520
      %547 = vmatprep.subr.bf16.mxu0 0
      %548 = vmatpush1.bf16.msra.mxu0 %v519
      %549 = vmatprep.subr.bf16.mxu0 0
      %550 = vmatpush1.bf16.msra.mxu0 %v518
      %551 = vmatprep.subr.bf16.mxu0 0
      %552 = vmatpush1.bf16.msra.mxu0 %v517
      %553 = vmatprep.subr.bf16.mxu0 0
      %554 = vmatpush1.bf16.msra.mxu0 %v516
      %555 = vmatprep.subr.bf16.mxu0 0
      %556 = vmatpush2.bf16.msra.mxu0 0
      %557 = vmatprep.subr.bf16.mxu0 0
      %558 = vmatpush2.bf16.msra.mxu0 0
      %559 = vmatprep.subr.bf16.mxu0 0
      %560 = vmatpush2.bf16.msra.mxu0 0
      %561 = vmatprep.subr.bf16.mxu0 0
      %562 = vmatpush2.bf16.msra.mxu0 0
      %563 = vmatprep.subr.bf16.mxu0 0
      %564 = vmatpush2.bf16.msra.mxu0 0
      %565 = vmatprep.subr.bf16.mxu0 0
      %566 = vmatpush2.bf16.msra.mxu0 0
      %567 = vmatprep.subr.bf16.mxu0 0
      %568 = vmatpush2.bf16.msra.mxu0 %v525
      %569 = vmatprep.subr.bf16.mxu0 0
      %570 = vmatpush2.bf16.msra.mxu0 %v524
      %571 = vmatprep.mubr.bf16.mxu0 %v537
      %572 = vmatmul.mubr.bf16.gmra.mxu0 %v473
      %v573 = vpop.f32.mrf.mxu0
      %v574 = vadd.f32 0.0, %v573
      %v575 = vpop.f32.mrf.mxu0
      %v576 = vpop.f32.mrf.mxu0
      %v577 = vpop.f32.mrf.mxu0
      %578 = vdwg.mxu0
      %v579 = vadd.f32 %v441, %v574
      %v580 = vld [vmem:[%s2] sm:$0x1]
      %v582 = vlaneseq
      %v583 = vshrl.u32 %v582, 7
      %v584 = vsub.s32 0, %v583
      %v585 = vrot.slane %v580, %v584
      %v587 = vadd.f32 %v579, %v585
      %v588 = vmax.f32 %v587, 0.0
      %v589 = vpack.c.bf16 %v588, %v588
      %590 = vst [vmem:[%s168] sm:$0xf] %v589
      %p591 = scmp.lt.s32.totalorder %s14, 1
      %s592 = scalar_select %p591, %s14, 1
      %s593 = smul.addr %s592, 4
      %s594 = scalar_lea.vmem %s3, %s593
      // Predicated region
      $region33: #{ttfnet_forward.5} parent=31 // pred_check
        %p595 = pneg %p100
      $region34: #{ttfnet_forward.5} parent=31 // pred_check_branch
        %597 = sbr.rel (%p595) target = $region36
      $region35: #{ttfnet_forward.5} parent=31 // pred_region
        _
      $region36: #{ttfnet_forward.5} parent=31 // pred_fallthru
        _
    $region32: #{ttfnet_forward.5} parent=5 // pred_fallthru
      _
    %p598 = scmp.le.s32.totalorder 2, %s9
    // Predicated region
    $region37: #{ttfnet_forward.5} parent=5 // pred_check
      %p599 = pneg %p598
    $region38: #{ttfnet_forward.5} parent=5 // pred_check_branch
      %601 = sbr.rel (%p599) target = $region40
    $region39: #{ttfnet_forward.5} parent=5 // pred_region
      %s602 = ssub.s32 %s9, 2
      // Predicated region
      $region41: #{ttfnet_forward.5} parent=39 // pred_check
        %p603 = pneg %p106
      $region42: #{ttfnet_forward.5} parent=39 // pred_check_branch
        %605 = sbr.rel (%p603) target = $region44
      $region43: #{ttfnet_forward.5} parent=39 // pred_region
        %p606 = scmp.lt.s32.totalorder %s15, 1
        %s607 = scalar_select %p606, %s15, 1
        %s608 = smul.addr %s607, 4
        %s609 = scalar_lea.vmem %s3, %s608
      $region44: #{ttfnet_forward.5} parent=39 // pred_fallthru
        _
    $region40: #{ttfnet_forward.5} parent=5 // pred_fallthru
      _
  $region6: #{ttfnet_forward.5} parent=0 // loop_footer
    %s13 = sadd.s32 1, %s9
  $region7: #{ttfnet_forward.5} parent=0 // loop_footer_branch
    %8 = sbr.rel target = $region3
  $region8: #{ttfnet_forward.5} parent=0 // loop_exit
    _

// kernel: tile.32
$region0: #{tile.32}
  #allocation0 [shape = 's32[1]{0}', space=sflag, size = 0x4, scoped, tag = 'scoped memory for tile.32']
  %s0 = inlined_call_operand.vmem [shape: f32[64], index: 0, kind: input, shape index: {}]
  %s1 = inlined_call_operand.vmem [shape: f32[8,64], index: 1, kind: output, shape index: {}]
  // Predicated region
  $region2: #{tile.32} parent=0 // pred_check
    _
  $region3: #{tile.32} parent=0 // pred_check_branch
    %3 = sbr.rel (0) target = $region5
  $region4: #{tile.32} parent=0 // pred_region
    _
  $region5: #{tile.32} parent=0 // pred_fallthru
    _
  %v4 = vld [vmem:[%s0] ss:$0 sm:$0xff]
  %5 = vst [vmem:[%s1] sm:$0xff] %v4

// kernel: tile.33
$region0: #{tile.33}
  %s0 = inlined_call_operand.vmem [shape: f32[8,64], index: 0, kind: input, shape index: {}]
  %s1 = inlined_call_operand.vmem [shape: f32[1,512], index: 1, kind: output, shape index: {}]
  $region1: #{tile.33} parent=0
    #allocation0 [shape = 'u8[16384]{0}', space=vmem, size = 0x4000, scoped, tag = 'scoped mem for output reshape']
    %v2 = vld [vmem:[%s0] ss:$2 sm:$0xf]
    %vm3 = vcmask 523264
    %4 = vst.msk [vmem:[#allocation0] ss:$8 sm:$0xf] %vm3, %v2
    %s5 = scalar_lea.vmem %s0, 1
    %v6 = vld [vmem:[%s5] ss:$2 sm:$0xf]
    %7 = vrot.lane.b32.xlu0 %v6, 64
    %v8 = vpop.permute.xlu0 %7
    %vm9 = vcmask 1048064
    %10 = vst.msk [vmem:[#allocation0] ss:$8 sm:$0xf] %vm9, %v8
    %s12 = sshll.u32 1, 1
    %s13 = ssub.s32 %s12, 1
    %v15 = vld [vmem:[#allocation0] sm:%s13]
    %s16 = sshll.u32 1, 1
    %s17 = ssub.s32 %s16, 1
    %18 = vst [vmem:[%s1] sm:%s17] %v15
    %s19 = scalar_lea.vmem [#allocation0], 8
    %v20 = vld [vmem:[%s19] sm:%s13]
    %s21 = sshll.u32 1, 1
    %s22 = ssub.s32 %s21, 1
    %s23 = scalar_lea.vmem %s1, 1
    %24 = vst [vmem:[%s23] sm:%s22] %v20
    %s25 = scalar_lea.vmem [#allocation0], 16
    %v26 = vld [vmem:[%s25] sm:%s13]
    %s27 = sshll.u32 1, 1
    %s28 = ssub.s32 %s27, 1
    %s29 = smul.addr 1, 2
    %s30 = scalar_lea.vmem %s1, %s29
    %31 = vst [vmem:[%s30] sm:%s28] %v26
    %s32 = scalar_lea.vmem [#allocation0], 24
    %v33 = vld [vmem:[%s32] sm:%s13]
    %s34 = sshll.u32 1, 1
    %s35 = ssub.s32 %s34, 1
    %s36 = smul.addr 1, 3
    %s37 = scalar_lea.vmem %s1, %s36
    %38 = vst [vmem:[%s37] sm:%s35] %v33

// kernel: ttfnet_forward.6
$region0: #{ttfnet_forward.6}
  #allocation0 [shape = 'u32[]', space=smem, size = 0x4, offset = 0x4, fixed_abs, tag = 'smem constant byte address 0x4 - core index']
  #allocation1 [shape = 'u32[144,128]{1,0:T(1,128)}', space=vmem, size = 0x12000, scoped, tag = 'internal scratch']
  %s0 = inlined_call_operand.vmem [shape: bf16[2,10,160], index: 0, kind: input, shape index: {}]
  %s1 = inlined_call_operand.vmem [shape: bf16[3,160,512], index: 1, kind: input, shape index: {}]
  %s2 = inlined_call_operand.vmem [shape: f32[1,512], index: 2, kind: input, shape index: {}]
  %s3 = inlined_call_operand.vmem [shape: bf16[2,8,512], index: 3, kind: output, shape index: {}]
  %s4 = sld [smem:[#allocation0]]
  $region45: #{ttfnet_forward.6} parent=0
    _
  %s6 = ssub.s32 1, %s4
  %s7 = scalar_select 0, %s6, %s4
  loop: start=0, step=1, limit=4
  $region2: #{ttfnet_forward.6} parent=0 // loop_pre_header
    _
  $region3: #{ttfnet_forward.6} parent=0 // loop_header
    %s9 = sphi 0, %s13
    %p10 = scmp.ge.s32.totalorder %s9, 4
    %s19 = sphi 0, %s21
    %s22 = sphi 0, %s19
    %s23 = sphi 0, %s22
    %s39 = sphi 0, %s23
    %s43 = sphi 0, %s43
    %s45 = sphi 0, %s43
    %s46 = sphi 0, %s45
    %s60 = sphi 0, %s46
    %s64 = sphi 0, %s64
    %s66 = sphi 0, %s64
    %s67 = sphi 0, %s66
    %s81 = sphi 0, %s67
    %s87 = sphi 0, %s89
    %s90 = sphi 0, %s87
    %s91 = sphi 0, %s90
    %s107 = sphi 0, %s91
  $region4: #{ttfnet_forward.6} parent=0 // loop_header_branch
    %12 = sbr.rel (%p10) target = $region8
  $region5: #{ttfnet_forward.6} parent=0 // loop_body
    %s14 = ssub.s32 %s9, 1
    %s15 = ssub.s32 %s9, 2
    %s16 = sadd.s32 %s9, 1
    %s17 = ssub.s32 %s9, %s16
    %p18 = scmp.eq.s32.totalorder %s17, 0
    %s20 = sadd.s32 %s19, 1
    %s21 = scalar_select %p18, %s19, %s20
    %p24 = pneg %p18
    %p25 = scmp.eq.s32.totalorder %s9, 1
    %p26 = por %p24, %p25
    %p27 = scmp.ne.s32.totalorder %s19, %s22
    %p28 = scmp.eq.s32.totalorder %s9, 0
    %p29 = por %p27, %p28
    %p30 = scmp.ne.s32.totalorder %s19, %s22
    %p31 = scmp.eq.s32.totalorder %s14, 1
    %p32 = por %p30, %p31
    %p33 = scmp.ne.s32.totalorder %s22, %s23
    %p34 = scmp.eq.s32.totalorder %s14, 0
    %p35 = por %p33, %p34
    %p36 = scmp.ne.s32.totalorder %s22, %s23
    %p37 = scmp.eq.s32.totalorder %s15, 1
    %p38 = por %p36, %p37
    %p40 = scmp.ne.s32.totalorder %s23, %s39
    %p41 = scmp.eq.s32.totalorder %s15, 0
    %p42 = por %p40, %p41
    %s44 = sadd.s32 %s43, 1
    %p47 = scmp.eq.s32.totalorder %s9, 1
    %p48 = scmp.ne.s32.totalorder %s43, %s45
    %p49 = scmp.eq.s32.totalorder %s9, 0
    %p50 = por %p48, %p49
    %p51 = scmp.ne.s32.totalorder %s43, %s45
    %p52 = scmp.eq.s32.totalorder %s14, 1
    %p53 = por %p51, %p52
    %p54 = scmp.ne.s32.totalorder %s45, %s46
    %p55 = scmp.eq.s32.totalorder %s14, 0
    %p56 = por %p54, %p55
    %p57 = scmp.ne.s32.totalorder %s45, %s46
    %p58 = scmp.eq.s32.totalorder %s15, 1
    %p59 = por %p57, %p58
    %p61 = scmp.ne.s32.totalorder %s46, %s60
    %p62 = scmp.eq.s32.totalorder %s15, 0
    %p63 = por %p61, %p62
    %s65 = sadd.s32 %s64, 1
    %p68 = scmp.eq.s32.totalorder %s9, 1
    %p69 = scmp.ne.s32.totalorder %s64, %s66
    %p70 = scmp.eq.s32.totalorder %s9, 0
    %p71 = por %p69, %p70
    %p72 = scmp.ne.s32.totalorder %s64, %s66
    %p73 = scmp.eq.s32.totalorder %s14, 1
    %p74 = por %p72, %p73
    %p75 = scmp.ne.s32.totalorder %s66, %s67
    %p76 = scmp.eq.s32.totalorder %s14, 0
    %p77 = por %p75, %p76
    %p78 = scmp.ne.s32.totalorder %s66, %s67
    %p79 = scmp.eq.s32.totalorder %s15, 1
    %p80 = por %p78, %p79
    %p82 = scmp.ne.s32.totalorder %s67, %s81
    %p83 = scmp.eq.s32.totalorder %s15, 0
    %p84 = por %p82, %p83
    %s85 = ssub.s32 %s9, %s16
    %p86 = scmp.eq.s32.totalorder %s85, 0
    %s88 = sadd.s32 %s87, 1
    %s89 = scalar_select %p86, %s87, %s88
    %p92 = pneg %p86
    %p93 = scmp.eq.s32.totalorder %s9, 1
    %p94 = por %p92, %p93
    %p95 = scmp.ne.s32.totalorder %s87, %s90
    %p96 = scmp.eq.s32.totalorder %s9, 0
    %p97 = por %p95, %p96
    %p98 = scmp.ne.s32.totalorder %s87, %s90
    %p99 = scmp.eq.s32.totalorder %s14, 1
    %p100 = por %p98, %p99
    %p101 = scmp.ne.s32.totalorder %s90, %s91
    %p102 = scmp.eq.s32.totalorder %s14, 0
    %p103 = por %p101, %p102
    %p104 = scmp.ne.s32.totalorder %s90, %s91
    %p105 = scmp.eq.s32.totalorder %s15, 1
    %p106 = por %p104, %p105
    %p108 = scmp.ne.s32.totalorder %s91, %s107
    %p109 = scmp.eq.s32.totalorder %s15, 0
    %p110 = por %p108, %p109
    %p111 = scmp.le.s32.totalorder 1, %s9
    %p112 = scmp.lt.s32.totalorder %s9, 3
    %p113 = pnand %p111, %p112
    %p114 = pneg %p113
    // Predicated region
    $region9: #{ttfnet_forward.6} parent=5 // pred_check
      _
    $region10: #{ttfnet_forward.6} parent=5 // pred_check_branch
      %116 = sbr.rel (%p113) target = $region12
    $region11: #{ttfnet_forward.6} parent=5 // pred_region
      %s117 = ssub.s32 %s9, 1
      // Predicated region
      $region13: #{ttfnet_forward.6} parent=11 // pred_check
        %p118 = pneg %p56
      $region14: #{ttfnet_forward.6} parent=11 // pred_check_branch
        %120 = sbr.rel (%p118) target = $region16
      $region15: #{ttfnet_forward.6} parent=11 // pred_region
        _
      $region16: #{ttfnet_forward.6} parent=11 // pred_fallthru
        _
      // Predicated region
      $region17: #{ttfnet_forward.6} parent=11 // pred_check
        %p121 = pneg %p77
      $region18: #{ttfnet_forward.6} parent=11 // pred_check_branch
        %123 = sbr.rel (%p121) target = $region20
      $region19: #{ttfnet_forward.6} parent=11 // pred_region
        _
      $region20: #{ttfnet_forward.6} parent=11 // pred_fallthru
        _
    $region12: #{ttfnet_forward.6} parent=5 // pred_fallthru
      _
    %p124 = scmp.lt.s32.totalorder %s9, 2
    // Predicated region
    $region21: #{ttfnet_forward.6} parent=5 // pred_check
      %p125 = pneg %p124
    $region22: #{ttfnet_forward.6} parent=5 // pred_check_branch
      %127 = sbr.rel (%p125) target = $region24
    $region23: #{ttfnet_forward.6} parent=5 // pred_region
      // Predicated region
      $region25: #{ttfnet_forward.6} parent=23 // pred_check
        %p128 = pneg %p29
      $region26: #{ttfnet_forward.6} parent=23 // pred_check_branch
        %130 = sbr.rel (%p128) target = $region28
      $region27: #{ttfnet_forward.6} parent=23 // pred_region
        %p131 = scmp.lt.s32.totalorder %s9, 1
        %s132 = scalar_select %p131, %s9, 1
        %s133 = smul.addr %s132, 4
        %s134 = smul.addr %s133, 4
        %s135 = scalar_lea.vmem %s0, %s134
      $region28: #{ttfnet_forward.6} parent=23 // pred_fallthru
        _
    $region24: #{ttfnet_forward.6} parent=5 // pred_fallthru
      _
    %p136 = scmp.le.s32.totalorder 1, %s9
    %p137 = scmp.lt.s32.totalorder %s9, 3
    %p138 = pnand %p136, %p137
    %p139 = pneg %p138
    // Predicated region
    $region29: #{ttfnet_forward.6} parent=5 // pred_check
      _
    $region30: #{ttfnet_forward.6} parent=5 // pred_check_branch
      %141 = sbr.rel (%p138) target = $region32
    $region31: #{ttfnet_forward.6} parent=5 // pred_region
      %s142 = ssub.s32 %s9, 1
      %p143 = scmp.lt.s32.totalorder %s14, 1
      %s144 = scalar_select %p143, %s14, 1
      %s145 = smul.addr %s144, 4
      %s146 = smul.addr %s145, 4
      %s147 = scalar_lea.vmem %s0, %s146
      %p148 = pneg %p35
      %p149 = pneg %p32
      %p150 = pneg %p56
      %p151 = pneg %p53
      %p152 = pneg %p77
      %p153 = pneg %p74
      %p154 = pneg %p103
      %p155 = pneg %p100
      %p156 = scmp.lt.s32.totalorder %s14, 1
      %s157 = scalar_select %p156, %s14, 1
      %s158 = smul.addr %s157, 4
      %s159 = smul.addr %s158, 4
      %s160 = scalar_lea.vmem %s3, %s159
      %p161 = scmp.lt.s32.totalorder %s14, 1
      %s162 = scalar_select %p161, %s14, 1
      %s163 = smul.addr %s162, 4
      %s164 = smul.addr %s163, 4
      %s165 = scalar_lea.vmem %s0, %s164
      %p166 = scmp.lt.s32.totalorder %s14, 1
      %s167 = scalar_select %p166, %s14, 1
      %s168 = smul.addr %s167, 4
      %s169 = smul.addr %s168, 4
      %s170 = scalar_lea.vmem %s3, %s169
      %v172 = vld [vmem:[%s165] sm:$0xff]
      %v173 = vld [vmem:[%s1] sm:$0xff]
      %v174 = vld [vmem:[%s1 + $0x8] sm:$0xff]
      %v175 = vld [vmem:[%s1 + $0x10] sm:$0xff]
      %v176 = vld [vmem:[%s1 + $0x18] sm:$0xff]
      %v177 = vld [vmem:[%s1 + $0x20] sm:$0xff]
      %v178 = vld [vmem:[%s1 + $0x28] sm:$0xff]
      %v179 = vld [vmem:[%s1 + $0x30] sm:$0xff]
      %v180 = vld [vmem:[%s1 + $0x38] sm:$0xff]
      %v181 = vld [vmem:[%s1 + $0x40] sm:$0xff]
      %v182 = vld [vmem:[%s1 + $0x48] sm:$0xff]
      %v183 = vld [vmem:[%s1 + $0x50] sm:$0xff]
      %v184 = vld [vmem:[%s1 + $0x58] sm:$0xff]
      %v185 = vld [vmem:[%s1 + $0x60] sm:$0xff]
      %v186 = vld [vmem:[%s1 + $0x68] sm:$0xff]
      %v187 = vld [vmem:[%s1 + $0x70] sm:$0xff]
      %v188 = vld [vmem:[%s1 + $0x78] sm:$0xff]
      %v189 = vld [vmem:[%s1 + $0x80] sm:$0xff]
      %v190 = vld [vmem:[%s1 + $0x88] sm:$0xff]
      %v191 = vld [vmem:[%s1 + $0x90] sm:$0xff]
      %v192 = vld [vmem:[%s1 + $0x98] sm:$0xff]
      %v193 = vld [vmem:[%s1 + $0xa0] sm:$0xff]
      %v194 = vld [vmem:[%s1 + $0xa8] sm:$0xff]
      %v195 = vld [vmem:[%s1 + $0xb0] sm:$0xff]
      %v196 = vld [vmem:[%s1 + $0xb8] sm:$0xff]
      %v197 = vld [vmem:[%s1 + $0xc0] sm:$0xff]
      %v198 = vld [vmem:[%s1 + $0xc8] sm:$0xff]
      %v199 = vld [vmem:[%s1 + $0xd0] sm:$0xff]
      %v200 = vld [vmem:[%s1 + $0xd8] sm:$0xff]
      %v201 = vld [vmem:[%s1 + $0xe0] sm:$0xff]
      %v202 = vld [vmem:[%s1 + $0xe8] sm:$0xff]
      %v203 = vld [vmem:[%s1 + $0xf0] sm:$0xff]
      %v204 = vld [vmem:[%s1 + $0xf8] sm:$0xff]
      %v205 = vld [vmem:[%s1 + $0x100] sm:$0xff]
      %v206 = vld [vmem:[%s1 + $0x108] sm:$0xff]
      %v207 = vld [vmem:[%s1 + $0x110] sm:$0xff]
      %v208 = vld [vmem:[%s1 + $0x118] sm:$0xff]
      %v209 = vld [vmem:[%s1 + $0x120] sm:$0xff]
      %v210 = vld [vmem:[%s1 + $0x128] sm:$0xff]
      %v211 = vld [vmem:[%s1 + $0x130] sm:$0xff]
      %v212 = vld [vmem:[%s1 + $0x138] sm:$0xff]
      %v213 = vld [vmem:[%s165 + $0x8] sm:$0x11]
      %s214 = scalar_lea.vmem %s1, 320
      %v215 = vld [vmem:[%s214] sm:$0xff]
      %v216 = vld [vmem:[%s214 + $0x8] sm:$0xff]
      %v217 = vld [vmem:[%s214 + $0x10] sm:$0xff]
      %v218 = vld [vmem:[%s214 + $0x18] sm:$0xff]
      %v219 = vld [vmem:[%s214 + $0x20] sm:$0xff]
      %v220 = vld [vmem:[%s214 + $0x28] sm:$0xff]
      %v221 = vld [vmem:[%s214 + $0x30] sm:$0xff]
      %v222 = vld [vmem:[%s214 + $0x38] sm:$0xff]
      %v223 = vld [vmem:[%s214 + $0x40] sm:$0xff]
      %v224 = vld [vmem:[%s214 + $0x48] sm:$0xff]
      %v225 = vld [vmem:[%s214 + $0x50] sm:$0xff]
      %v226 = vld [vmem:[%s214 + $0x58] sm:$0xff]
      %v227 = vld [vmem:[%s214 + $0x60] sm:$0xff]
      %v228 = vld [vmem:[%s214 + $0x68] sm:$0xff]
      %v229 = vld [vmem:[%s214 + $0x70] sm:$0xff]
      %v230 = vld [vmem:[%s214 + $0x78] sm:$0xff]
      %v231 = vld [vmem:[%s214 + $0x80] sm:$0xff]
      %v232 = vld [vmem:[%s214 + $0x88] sm:$0xff]
      %v233 = vld [vmem:[%s214 + $0x90] sm:$0xff]
      %v234 = vld [vmem:[%s214 + $0x98] sm:$0xff]
      %v235 = vld [vmem:[%s214 + $0xa0] sm:$0xff]
      %v236 = vld [vmem:[%s214 + $0xa8] sm:$0xff]
      %v237 = vld [vmem:[%s214 + $0xb0] sm:$0xff]
      %v238 = vld [vmem:[%s214 + $0xb8] sm:$0xff]
      %v239 = vld [vmem:[%s214 + $0xc0] sm:$0xff]
      %v240 = vld [vmem:[%s214 + $0xc8] sm:$0xff]
      %v241 = vld [vmem:[%s214 + $0xd0] sm:$0xff]
      %v242 = vld [vmem:[%s214 + $0xd8] sm:$0xff]
      %v243 = vld [vmem:[%s214 + $0xe0] sm:$0xff]
      %v244 = vld [vmem:[%s214 + $0xe8] sm:$0xff]
      %v245 = vld [vmem:[%s214 + $0xf0] sm:$0xff]
      %v246 = vld [vmem:[%s214 + $0xf8] sm:$0xff]
      %v247 = vld [vmem:[%s214 + $0x100] sm:$0xff]
      %v248 = vld [vmem:[%s214 + $0x108] sm:$0xff]
      %v249 = vld [vmem:[%s214 + $0x110] sm:$0xff]
      %v250 = vld [vmem:[%s214 + $0x118] sm:$0xff]
      %v251 = vld [vmem:[%s214 + $0x120] sm:$0xff]
      %v252 = vld [vmem:[%s214 + $0x128] sm:$0xff]
      %v253 = vld [vmem:[%s214 + $0x130] sm:$0xff]
      %v254 = vld [vmem:[%s214 + $0x138] sm:$0xff]
      %v257 = vunpack.c.l.b16 %v172
      %v258 = vunpack.c.h.b16 %v172
      %v259 = vunpack.c.l.b16 %v213
      %v260 = vunpack.c.h.b16 %v213
      %v261 = vpack.c.b16 %v259, %v257
      %v262 = vpack.c.b16 %v260, %v258
      %v264 = vshrl.u32 %v261, 16
      %v266 = vshll.u32 %v261, 16
      %v268 = vrot.slane %v266, 1
      %v269 = vor.u32 %v264, %v268
      %v271 = vshrl.u32 %v262, 16
      %v273 = vshll.u32 %v262, 16
      %v275 = vrot.slane %v273, 1
      %v276 = vor.u32 %v271, %v275
      %v318 = vunpack.c.l.b16 %v215
      %v319 = vunpack.c.h.b16 %v215
      %v320 = vunpack.c.l.b16 %v216
      %v321 = vunpack.c.h.b16 %v216
      %v322 = vunpack.c.l.b16 %v217
      %v323 = vunpack.c.h.b16 %v217
      %v324 = vunpack.c.l.b16 %v218
      %v325 = vunpack.c.h.b16 %v218
      %v326 = vunpack.c.l.b16 %v219
      %v327 = vunpack.c.h.b16 %v219
      %v328 = vunpack.c.l.b16 %v220
      %v329 = vunpack.c.h.b16 %v220
      %v330 = vunpack.c.l.b16 %v221
      %v331 = vunpack.c.h.b16 %v221
      %v332 = vunpack.c.l.b16 %v222
      %v333 = vunpack.c.h.b16 %v222
      %v334 = vunpack.c.l.b16 %v223
      %v335 = vunpack.c.h.b16 %v223
      %v336 = vunpack.c.l.b16 %v224
      %v337 = vunpack.c.h.b16 %v224
      %v338 = vunpack.c.l.b16 %v225
      %v339 = vunpack.c.h.b16 %v225
      %v340 = vunpack.c.l.b16 %v226
      %v341 = vunpack.c.h.b16 %v226
      %v342 = vunpack.c.l.b16 %v227
      %v343 = vunpack.c.h.b16 %v227
      %v344 = vunpack.c.l.b16 %v228
      %v345 = vunpack.c.h.b16 %v228
      %v346 = vunpack.c.l.b16 %v229
      %v347 = vunpack.c.h.b16 %v229
      %v348 = vunpack.c.l.b16 %v230
      %v349 = vunpack.c.h.b16 %v230
      %v350 = vunpack.c.l.b16 %v231
      %v351 = vunpack.c.h.b16 %v231
      %v352 = vunpack.c.l.b16 %v232
      %v353 = vunpack.c.h.b16 %v232
      %v354 = vunpack.c.l.b16 %v233
      %v355 = vunpack.c.h.b16 %v233
      %v356 = vunpack.c.l.b16 %v234
      %v357 = vunpack.c.h.b16 %v234
      %v358 = vunpack.c.l.b16 %v235
      %v359 = vunpack.c.h.b16 %v235
      %v360 = vunpack.c.l.b16 %v236
      %v361 = vunpack.c.h.b16 %v236
      %v362 = vunpack.c.l.b16 %v237
      %v363 = vunpack.c.h.b16 %v237
      %v364 = vunpack.c.l.b16 %v238
      %v365 = vunpack.c.h.b16 %v238
      %v366 = vunpack.c.l.b16 %v239
      %v367 = vunpack.c.h.b16 %v239
      %v368 = vunpack.c.l.b16 %v240
      %v369 = vunpack.c.h.b16 %v240
      %v370 = vunpack.c.l.b16 %v241
      %v371 = vunpack.c.h.b16 %v241
      %v372 = vunpack.c.l.b16 %v242
      %v373 = vunpack.c.h.b16 %v242
      %v374 = vunpack.c.l.b16 %v243
      %v375 = vunpack.c.h.b16 %v243
      %v376 = vunpack.c.l.b16 %v244
      %v377 = vunpack.c.h.b16 %v244
      %v378 = vunpack.c.l.b16 %v245
      %v379 = vunpack.c.h.b16 %v245
      %v380 = vunpack.c.l.b16 %v246
      %v381 = vunpack.c.h.b16 %v246
      %v382 = vunpack.c.l.b16 %v247
      %v383 = vunpack.c.h.b16 %v247
      %v384 = vunpack.c.l.b16 %v248
      %v385 = vunpack.c.h.b16 %v248
      %v386 = vunpack.c.l.b16 %v249
      %v387 = vunpack.c.h.b16 %v249
      %v388 = vunpack.c.l.b16 %v250
      %v389 = vunpack.c.h.b16 %v250
      %v390 = vunpack.c.l.b16 %v251
      %v391 = vunpack.c.h.b16 %v251
      %v392 = vunpack.c.l.b16 %v252
      %v393 = vunpack.c.h.b16 %v252
      %v394 = vunpack.c.l.b16 %v253
      %v395 = vunpack.c.h.b16 %v253
      %v396 = vunpack.c.l.b16 %v254
      %v397 = vunpack.c.h.b16 %v254
      %v398 = vpack.c.b16 %v322, %v318
      %v399 = vpack.c.b16 %v323, %v319
      %v400 = vpack.c.b16 %v324, %v320
      %v401 = vpack.c.b16 %v325, %v321
      %v402 = vpack.c.b16 %v330, %v326
      %v403 = vpack.c.b16 %v331, %v327
      %v404 = vpack.c.b16 %v332, %v328
      %v405 = vpack.c.b16 %v333, %v329
      %v406 = vpack.c.b16 %v338, %v334
      %v407 = vpack.c.b16 %v339, %v335
      %v408 = vpack.c.b16 %v340, %v336
      %v409 = vpack.c.b16 %v341, %v337
      %v410 = vpack.c.b16 %v346, %v342
      %v411 = vpack.c.b16 %v347, %v343
      %v412 = vpack.c.b16 %v348, %v344
      %v413 = vpack.c.b16 %v349, %v345
      %v414 = vpack.c.b16 %v354, %v350
      %v415 = vpack.c.b16 %v355, %v351
      %v416 = vpack.c.b16 %v356, %v352
      %v417 = vpack.c.b16 %v357, %v353
      %v418 = vpack.c.b16 %v362, %v358
      %v419 = vpack.c.b16 %v363, %v359
      %v420 = vpack.c.b16 %v364, %v360
      %v421 = vpack.c.b16 %v365, %v361
      %v422 = vpack.c.b16 %v370, %v366
      %v423 = vpack.c.b16 %v371, %v367
      %v424 = vpack.c.b16 %v372, %v368
      %v425 = vpack.c.b16 %v373, %v369
      %v426 = vpack.c.b16 %v378, %v374
      %v427 = vpack.c.b16 %v379, %v375
      %v428 = vpack.c.b16 %v380, %v376
      %v429 = vpack.c.b16 %v381, %v377
      %v430 = vpack.c.b16 %v386, %v382
      %v431 = vpack.c.b16 %v387, %v383
      %v432 = vpack.c.b16 %v388, %v384
      %v433 = vpack.c.b16 %v389, %v385
      %v434 = vpack.c.b16 %v394, %v390
      %v435 = vpack.c.b16 %v395, %v391
      %v436 = vpack.c.b16 %v396, %v392
      %v437 = vpack.c.b16 %v397, %v393
      %vm478 = vcmask 261120
      %v480 = vsel %vm478, %v276, 0
      %482 = vmatprep.subr.bf16.mxu0 %v427
      %483 = vmatpush1.bf16.msra.mxu0 %v426
      %484 = vmatprep.subr.bf16.mxu0 %v423
      %485 = vmatpush1.bf16.msra.mxu0 %v422
      %486 = vmatprep.subr.bf16.mxu0 %v419
      %487 = vmatpush1.bf16.msra.mxu0 %v418
      %488 = vmatprep.subr.bf16.mxu0 %v415
      %489 = vmatpush1.bf16.msra.mxu0 %v414
      %490 = vmatprep.subr.bf16.mxu0 %v411
      %491 = vmatpush1.bf16.msra.mxu0 %v410
      %492 = vmatprep.subr.bf16.mxu0 %v407
      %493 = vmatpush1.bf16.msra.mxu0 %v406
      %494 = vmatprep.subr.bf16.mxu0 %v403
      %495 = vmatpush1.bf16.msra.mxu0 %v402
      %496 = vmatprep.subr.bf16.mxu0 %v399
      %497 = vmatpush1.bf16.msra.mxu0 %v398
      %498 = vmatprep.subr.bf16.mxu0 0
      %499 = vmatpush2.bf16.msra.mxu0 0
      %500 = vmatprep.subr.bf16.mxu0 0
      %501 = vmatpush2.bf16.msra.mxu0 0
      %502 = vmatprep.subr.bf16.mxu0 0
      %503 = vmatpush2.bf16.msra.mxu0 0
      %504 = vmatprep.subr.bf16.mxu0 0
      %505 = vmatpush2.bf16.msra.mxu0 0
      %506 = vmatprep.subr.bf16.mxu0 0
      %507 = vmatpush2.bf16.msra.mxu0 0
      %508 = vmatprep.subr.bf16.mxu0 0
      %509 = vmatpush2.bf16.msra.mxu0 0
      %510 = vmatprep.subr.bf16.mxu0 %v435
      %511 = vmatpush2.bf16.msra.mxu0 %v434
      %512 = vmatprep.subr.bf16.mxu0 %v431
      %513 = vmatpush2.bf16.msra.mxu0 %v430
      %514 = vmatprep.mubr.bf16.mxu0 %v480
      %515 = vmatmul.mubr.bf16.gmra.mxu0 %v269
      %v516 = vpop.f32.mrf.mxu0
      %v517 = vadd.f32 0.0, %v516
      %v518 = vpop.f32.mrf.mxu0
      %v519 = vadd.f32 0.0, %v518
      %v520 = vpop.f32.mrf.mxu0
      %v521 = vpop.f32.mrf.mxu0
      %522 = vdwg.mxu0
      %523 = vmatprep.subr.bf16.mxu0 %v429
      %524 = vmatpush1.bf16.msra.mxu0 %v428
      %525 = vmatprep.subr.bf16.mxu0 %v425
      %526 = vmatpush1.bf16.msra.mxu0 %v424
      %527 = vmatprep.subr.bf16.mxu0 %v421
      %528 = vmatpush1.bf16.msra.mxu0 %v420
      %529 = vmatprep.subr.bf16.mxu0 %v417
      %530 = vmatpush1.bf16.msra.mxu0 %v416
      %531 = vmatprep.subr.bf16.mxu0 %v413
      %532 = vmatpush1.bf16.msra.mxu0 %v412
      %533 = vmatprep.subr.bf16.mxu0 %v409
      %534 = vmatpush1.bf16.msra.mxu0 %v408
      %535 = vmatprep.subr.bf16.mxu0 %v405
      %536 = vmatpush1.bf16.msra.mxu0 %v404
      %537 = vmatprep.subr.bf16.mxu0 %v401
      %538 = vmatpush1.bf16.msra.mxu0 %v400
      %539 = vmatprep.subr.bf16.mxu0 0
      %540 = vmatpush2.bf16.msra.mxu0 0
      %541 = vmatprep.subr.bf16.mxu0 0
      %542 = vmatpush2.bf16.msra.mxu0 0
      %543 = vmatprep.subr.bf16.mxu0 0
      %544 = vmatpush2.bf16.msra.mxu0 0
      %545 = vmatprep.subr.bf16.mxu0 0
      %546 = vmatpush2.bf16.msra.mxu0 0
      %547 = vmatprep.subr.bf16.mxu0 0
      %548 = vmatpush2.bf16.msra.mxu0 0
      %549 = vmatprep.subr.bf16.mxu0 0
      %550 = vmatpush2.bf16.msra.mxu0 0
      %551 = vmatprep.subr.bf16.mxu0 %v437
      %552 = vmatpush2.bf16.msra.mxu0 %v436
      %553 = vmatprep.subr.bf16.mxu0 %v433
      %554 = vmatpush2.bf16.msra.mxu0 %v432
      %555 = vmatprep.mubr.bf16.mxu0 %v480
      %556 = vmatmul.mubr.bf16.gmra.mxu0 %v269
      %v557 = vpop.f32.mrf.mxu0
      %v558 = vadd.f32 0.0, %v557
      %v559 = vpop.f32.mrf.mxu0
      %v560 = vadd.f32 0.0, %v559
      %v561 = vpop.f32.mrf.mxu0
      %v562 = vpop.f32.mrf.mxu0
      %563 = vdwg.mxu0
      %v564 = vpack.c.b16 %v257, %v257
      %v565 = vpack.c.b16 %v258, %v258
      %v607 = vunpack.c.l.b16 %v173
      %v608 = vunpack.c.h.b16 %v173
      %v609 = vunpack.c.l.b16 %v174
      %v610 = vunpack.c.h.b16 %v174
      %v611 = vunpack.c.l.b16 %v175
      %v612 = vunpack.c.h.b16 %v175
      %v613 = vunpack.c.l.b16 %v176
      %v614 = vunpack.c.h.b16 %v176
      %v615 = vunpack.c.l.b16 %v177
      %v616 = vunpack.c.h.b16 %v177
      %v617 = vunpack.c.l.b16 %v178
      %v618 = vunpack.c.h.b16 %v178
      %v619 = vunpack.c.l.b16 %v179
      %v620 = vunpack.c.h.b16 %v179
      %v621 = vunpack.c.l.b16 %v180
      %v622 = vunpack.c.h.b16 %v180
      %v623 = vunpack.c.l.b16 %v181
      %v624 = vunpack.c.h.b16 %v181
      %v625 = vunpack.c.l.b16 %v182
      %v626 = vunpack.c.h.b16 %v182
      %v627 = vunpack.c.l.b16 %v183
      %v628 = vunpack.c.h.b16 %v183
      %v629 = vunpack.c.l.b16 %v184
      %v630 = vunpack.c.h.b16 %v184
      %v631 = vunpack.c.l.b16 %v185
      %v632 = vunpack.c.h.b16 %v185
      %v633 = vunpack.c.l.b16 %v186
      %v634 = vunpack.c.h.b16 %v186
      %v635 = vunpack.c.l.b16 %v187
      %v636 = vunpack.c.h.b16 %v187
      %v637 = vunpack.c.l.b16 %v188
      %v638 = vunpack.c.h.b16 %v188
      %v639 = vunpack.c.l.b16 %v189
      %v640 = vunpack.c.h.b16 %v189
      %v641 = vunpack.c.l.b16 %v190
      %v642 = vunpack.c.h.b16 %v190
      %v643 = vunpack.c.l.b16 %v191
      %v644 = vunpack.c.h.b16 %v191
      %v645 = vunpack.c.l.b16 %v192
      %v646 = vunpack.c.h.b16 %v192
      %v647 = vunpack.c.l.b16 %v193
      %v648 = vunpack.c.h.b16 %v193
      %v649 = vunpack.c.l.b16 %v194
      %v650 = vunpack.c.h.b16 %v194
      %v651 = vunpack.c.l.b16 %v195
      %v652 = vunpack.c.h.b16 %v195
      %v653 = vunpack.c.l.b16 %v196
      %v654 = vunpack.c.h.b16 %v196
      %v655 = vunpack.c.l.b16 %v197
      %v656 = vunpack.c.h.b16 %v197
      %v657 = vunpack.c.l.b16 %v198
      %v658 = vunpack.c.h.b16 %v198
      %v659 = vunpack.c.l.b16 %v199
      %v660 = vunpack.c.h.b16 %v199
      %v661 = vunpack.c.l.b16 %v200
      %v662 = vunpack.c.h.b16 %v200
      %v663 = vunpack.c.l.b16 %v201
      %v664 = vunpack.c.h.b16 %v201
      %v665 = vunpack.c.l.b16 %v202
      %v666 = vunpack.c.h.b16 %v202
      %v667 = vunpack.c.l.b16 %v203
      %v668 = vunpack.c.h.b16 %v203
      %v669 = vunpack.c.l.b16 %v204
      %v670 = vunpack.c.h.b16 %v204
      %v671 = vunpack.c.l.b16 %v205
      %v672 = vunpack.c.h.b16 %v205
      %v673 = vunpack.c.l.b16 %v206
      %v674 = vunpack.c.h.b16 %v206
      %v675 = vunpack.c.l.b16 %v207
      %v676 = vunpack.c.h.b16 %v207
      %v677 = vunpack.c.l.b16 %v208
      %v678 = vunpack.c.h.b16 %v208
      %v679 = vunpack.c.l.b16 %v209
      %v680 = vunpack.c.h.b16 %v209
      %v681 = vunpack.c.l.b16 %v210
      %v682 = vunpack.c.h.b16 %v210
      %v683 = vunpack.c.l.b16 %v211
      %v684 = vunpack.c.h.b16 %v211
      %v685 = vunpack.c.l.b16 %v212
      %v686 = vunpack.c.h.b16 %v212
      %v687 = vpack.c.b16 %v611, %v607
      %v688 = vpack.c.b16 %v612, %v608
      %v689 = vpack.c.b16 %v613, %v609
      %v690 = vpack.c.b16 %v614, %v610
      %v691 = vpack.c.b16 %v619, %v615
      %v692 = vpack.c.b16 %v620, %v616
      %v693 = vpack.c.b16 %v621, %v617
      %v694 = vpack.c.b16 %v622, %v618
      %v695 = vpack.c.b16 %v627, %v623
      %v696 = vpack.c.b16 %v628, %v624
      %v697 = vpack.c.b16 %v629, %v625
      %v698 = vpack.c.b16 %v630, %v626
      %v699 = vpack.c.b16 %v635, %v631
      %v700 = vpack.c.b16 %v636, %v632
      %v701 = vpack.c.b16 %v637, %v633
      %v702 = vpack.c.b16 %v638, %v634
      %v703 = vpack.c.b16 %v643, %v639
      %v704 = vpack.c.b16 %v644, %v640
      %v705 = vpack.c.b16 %v645, %v641
      %v706 = vpack.c.b16 %v646, %v642
      %v707 = vpack.c.b16 %v651, %v647
      %v708 = vpack.c.b16 %v652, %v648
      %v709 = vpack.c.b16 %v653, %v649
      %v710 = vpack.c.b16 %v654, %v650
      %v711 = vpack.c.b16 %v659, %v655
      %v712 = vpack.c.b16 %v660, %v656
      %v713 = vpack.c.b16 %v661, %v657
      %v714 = vpack.c.b16 %v662, %v658
      %v715 = vpack.c.b16 %v667, %v663
      %v716 = vpack.c.b16 %v668, %v664
      %v717 = vpack.c.b16 %v669, %v665
      %v718 = vpack.c.b16 %v670, %v666
      %v719 = vpack.c.b16 %v675, %v671
      %v720 = vpack.c.b16 %v676, %v672
      %v721 = vpack.c.b16 %v677, %v673
      %v722 = vpack.c.b16 %v678, %v674
      %v723 = vpack.c.b16 %v683, %v679
      %v724 = vpack.c.b16 %v684, %v680
      %v725 = vpack.c.b16 %v685, %v681
      %v726 = vpack.c.b16 %v686, %v682
      %v768 = vsel %vm478, %v565, 0
      %770 = vmatprep.subr.bf16.mxu0 %v716
      %771 = vmatpush1.bf16.msra.mxu0 %v715
      %772 = vmatprep.subr.bf16.mxu0 %v712
      %773 = vmatpush1.bf16.msra.mxu0 %v711
      %774 = vmatprep.subr.bf16.mxu0 %v708
      %775 = vmatpush1.bf16.msra.mxu0 %v707
      %776 = vmatprep.subr.bf16.mxu0 %v704
      %777 = vmatpush1.bf16.msra.mxu0 %v703
      %778 = vmatprep.subr.bf16.mxu0 %v700
      %779 = vmatpush1.bf16.msra.mxu0 %v699
      %780 = vmatprep.subr.bf16.mxu0 %v696
      %781 = vmatpush1.bf16.msra.mxu0 %v695
      %782 = vmatprep.subr.bf16.mxu0 %v692
      %783 = vmatpush1.bf16.msra.mxu0 %v691
      %784 = vmatprep.subr.bf16.mxu0 %v688
      %785 = vmatpush1.bf16.msra.mxu0 %v687
      %786 = vmatprep.subr.bf16.mxu0 0
      %787 = vmatpush2.bf16.msra.mxu0 0
      %788 = vmatprep.subr.bf16.mxu0 0
      %789 = vmatpush2.bf16.msra.mxu0 0
      %790 = vmatprep.subr.bf16.mxu0 0
      %791 = vmatpush2.bf16.msra.mxu0 0
      %792 = vmatprep.subr.bf16.mxu0 0
      %793 = vmatpush2.bf16.msra.mxu0 0
      %794 = vmatprep.subr.bf16.mxu0 0
      %795 = vmatpush2.bf16.msra.mxu0 0
      %796 = vmatprep.subr.bf16.mxu0 0
      %797 = vmatpush2.bf16.msra.mxu0 0
      %798 = vmatprep.subr.bf16.mxu0 %v724
      %799 = vmatpush2.bf16.msra.mxu0 %v723
      %800 = vmatprep.subr.bf16.mxu0 %v720
      %801 = vmatpush2.bf16.msra.mxu0 %v719
      %802 = vmatprep.mubr.bf16.mxu0 %v768
      %803 = vmatmul.mubr.bf16.gmra.mxu0 %v564
      %v804 = vpop.f32.mrf.mxu0
      %v805 = vadd.f32 %v517, %v804
      %v806 = vpop.f32.mrf.mxu0
      %v807 = vadd.f32 %v519, %v806
      %v808 = vpop.f32.mrf.mxu0
      %v809 = vpop.f32.mrf.mxu0
      %810 = vdwg.mxu0
      %811 = vmatprep.subr.bf16.mxu0 %v718
      %812 = vmatpush1.bf16.msra.mxu0 %v717
      %813 = vmatprep.subr.bf16.mxu0 %v714
      %814 = vmatpush1.bf16.msra.mxu0 %v713
      %815 = vmatprep.subr.bf16.mxu0 %v710
      %816 = vmatpush1.bf16.msra.mxu0 %v709
      %817 = vmatprep.subr.bf16.mxu0 %v706
      %818 = vmatpush1.bf16.msra.mxu0 %v705
      %819 = vmatprep.subr.bf16.mxu0 %v702
      %820 = vmatpush1.bf16.msra.mxu0 %v701
      %821 = vmatprep.subr.bf16.mxu0 %v698
      %822 = vmatpush1.bf16.msra.mxu0 %v697
      %823 = vmatprep.subr.bf16.mxu0 %v694
      %824 = vmatpush1.bf16.msra.mxu0 %v693
      %825 = vmatprep.subr.bf16.mxu0 %v690
      %826 = vmatpush1.bf16.msra.mxu0 %v689
      %827 = vmatprep.subr.bf16.mxu0 0
      %828 = vmatpush2.bf16.msra.mxu0 0
      %829 = vmatprep.subr.bf16.mxu0 0
      %830 = vmatpush2.bf16.msra.mxu0 0
      %831 = vmatprep.subr.bf16.mxu0 0
      %832 = vmatpush2.bf16.msra.mxu0 0
      %833 = vmatprep.subr.bf16.mxu0 0
      %834 = vmatpush2.bf16.msra.mxu0 0
      %835 = vmatprep.subr.bf16.mxu0 0
      %836 = vmatpush2.bf16.msra.mxu0 0
      %837 = vmatprep.subr.bf16.mxu0 0
      %838 = vmatpush2.bf16.msra.mxu0 0
      %839 = vmatprep.subr.bf16.mxu0 %v726
      %840 = vmatpush2.bf16.msra.mxu0 %v725
      %841 = vmatprep.subr.bf16.mxu0 %v722
      %842 = vmatpush2.bf16.msra.mxu0 %v721
      %843 = vmatprep.mubr.bf16.mxu0 %v768
      %844 = vmatmul.mubr.bf16.gmra.mxu0 %v564
      %v845 = vpop.f32.mrf.mxu0
      %v846 = vadd.f32 %v558, %v845
      %v847 = vpop.f32.mrf.mxu0
      %v848 = vadd.f32 %v560, %v847
      %v849 = vpop.f32.mrf.mxu0
      %v850 = vpop.f32.mrf.mxu0
      %851 = vdwg.mxu0
      %v852 = vld [vmem:[%s165] sm:$0xee]
      %s853 = scalar_lea.vmem %s1, 640
      %v854 = vld [vmem:[%s853] sm:$0xff]
      %v855 = vld [vmem:[%s853 + $0x8] sm:$0xff]
      %v856 = vld [vmem:[%s853 + $0x10] sm:$0xff]
      %v857 = vld [vmem:[%s853 + $0x18] sm:$0xff]
      %v858 = vld [vmem:[%s853 + $0x20] sm:$0xff]
      %v859 = vld [vmem:[%s853 + $0x28] sm:$0xff]
      %v860 = vld [vmem:[%s853 + $0x30] sm:$0xff]
      %v861 = vld [vmem:[%s853 + $0x38] sm:$0xff]
      %v862 = vld [vmem:[%s853 + $0x40] sm:$0xff]
      %v863 = vld [vmem:[%s853 + $0x48] sm:$0xff]
      %v864 = vld [vmem:[%s853 + $0x50] sm:$0xff]
      %v865 = vld [vmem:[%s853 + $0x58] sm:$0xff]
      %v866 = vld [vmem:[%s853 + $0x60] sm:$0xff]
      %v867 = vld [vmem:[%s853 + $0x68] sm:$0xff]
      %v868 = vld [vmem:[%s853 + $0x70] sm:$0xff]
      %v869 = vld [vmem:[%s853 + $0x78] sm:$0xff]
      %v870 = vld [vmem:[%s853 + $0x80] sm:$0xff]
      %v871 = vld [vmem:[%s853 + $0x88] sm:$0xff]
      %v872 = vld [vmem:[%s853 + $0x90] sm:$0xff]
      %v873 = vld [vmem:[%s853 + $0x98] sm:$0xff]
      %v874 = vld [vmem:[%s853 + $0xa0] sm:$0xff]
      %v875 = vld [vmem:[%s853 + $0xa8] sm:$0xff]
      %v876 = vld [vmem:[%s853 + $0xb0] sm:$0xff]
      %v877 = vld [vmem:[%s853 + $0xb8] sm:$0xff]
      %v878 = vld [vmem:[%s853 + $0xc0] sm:$0xff]
      %v879 = vld [vmem:[%s853 + $0xc8] sm:$0xff]
      %v880 = vld [vmem:[%s853 + $0xd0] sm:$0xff]
      %v881 = vld [vmem:[%s853 + $0xd8] sm:$0xff]
      %v882 = vld [vmem:[%s853 + $0xe0] sm:$0xff]
      %v883 = vld [vmem:[%s853 + $0xe8] sm:$0xff]
      %v884 = vld [vmem:[%s853 + $0xf0] sm:$0xff]
      %v885 = vld [vmem:[%s853 + $0xf8] sm:$0xff]
      %v886 = vld [vmem:[%s853 + $0x100] sm:$0xff]
      %v887 = vld [vmem:[%s853 + $0x108] sm:$0xff]
      %v888 = vld [vmem:[%s853 + $0x110] sm:$0xff]
      %v889 = vld [vmem:[%s853 + $0x118] sm:$0xff]
      %v890 = vld [vmem:[%s853 + $0x120] sm:$0xff]
      %v891 = vld [vmem:[%s853 + $0x128] sm:$0xff]
      %v892 = vld [vmem:[%s853 + $0x130] sm:$0xff]
      %v893 = vld [vmem:[%s853 + $0x138] sm:$0xff]
      %v895 = vunpack.c.l.b16 %v852
      %v896 = vunpack.c.h.b16 %v852
      %v897 = vpack.c.b16 %v259, %v895
      %v898 = vpack.c.b16 %v260, %v896
      %v899 = vrot.slane %v897, 1
      %v900 = vrot.slane %v898, 1
      %v942 = vunpack.c.l.b16 %v854
      %v943 = vunpack.c.h.b16 %v854
      %v944 = vunpack.c.l.b16 %v855
      %v945 = vunpack.c.h.b16 %v855
      %v946 = vunpack.c.l.b16 %v856
      %v947 = vunpack.c.h.b16 %v856
      %v948 = vunpack.c.l.b16 %v857
      %v949 = vunpack.c.h.b16 %v857
      %v950 = vunpack.c.l.b16 %v858
      %v951 = vunpack.c.h.b16 %v858
      %v952 = vunpack.c.l.b16 %v859
      %v953 = vunpack.c.h.b16 %v859
      %v954 = vunpack.c.l.b16 %v860
      %v955 = vunpack.c.h.b16 %v860
      %v956 = vunpack.c.l.b16 %v861
      %v957 = vunpack.c.h.b16 %v861
      %v958 = vunpack.c.l.b16 %v862
      %v959 = vunpack.c.h.b16 %v862
      %v960 = vunpack.c.l.b16 %v863
      %v961 = vunpack.c.h.b16 %v863
      %v962 = vunpack.c.l.b16 %v864
      %v963 = vunpack.c.h.b16 %v864
      %v964 = vunpack.c.l.b16 %v865
      %v965 = vunpack.c.h.b16 %v865
      %v966 = vunpack.c.l.b16 %v866
      %v967 = vunpack.c.h.b16 %v866
      %v968 = vunpack.c.l.b16 %v867
      %v969 = vunpack.c.h.b16 %v867
      %v970 = vunpack.c.l.b16 %v868
      %v971 = vunpack.c.h.b16 %v868
      %v972 = vunpack.c.l.b16 %v869
      %v973 = vunpack.c.h.b16 %v869
      %v974 = vunpack.c.l.b16 %v870
      %v975 = vunpack.c.h.b16 %v870
      %v976 = vunpack.c.l.b16 %v871
      %v977 = vunpack.c.h.b16 %v871
      %v978 = vunpack.c.l.b16 %v872
      %v979 = vunpack.c.h.b16 %v872
      %v980 = vunpack.c.l.b16 %v873
      %v981 = vunpack.c.h.b16 %v873
      %v982 = vunpack.c.l.b16 %v874
      %v983 = vunpack.c.h.b16 %v874
      %v984 = vunpack.c.l.b16 %v875
      %v985 = vunpack.c.h.b16 %v875
      %v986 = vunpack.c.l.b16 %v876
      %v987 = vunpack.c.h.b16 %v876
      %v988 = vunpack.c.l.b16 %v877
      %v989 = vunpack.c.h.b16 %v877
      %v990 = vunpack.c.l.b16 %v878
      %v991 = vunpack.c.h.b16 %v878
      %v992 = vunpack.c.l.b16 %v879
      %v993 = vunpack.c.h.b16 %v879
      %v994 = vunpack.c.l.b16 %v880
      %v995 = vunpack.c.h.b16 %v880
      %v996 = vunpack.c.l.b16 %v881
      %v997 = vunpack.c.h.b16 %v881
      %v998 = vunpack.c.l.b16 %v882
      %v999 = vunpack.c.h.b16 %v882
      %v1000 = vunpack.c.l.b16 %v883
      %v1001 = vunpack.c.h.b16 %v883
      %v1002 = vunpack.c.l.b16 %v884
      %v1003 = vunpack.c.h.b16 %v884
      %v1004 = vunpack.c.l.b16 %v885
      %v1005 = vunpack.c.h.b16 %v885
      %v1006 = vunpack.c.l.b16 %v886
      %v1007 = vunpack.c.h.b16 %v886
      %v1008 = vunpack.c.l.b16 %v887
      %v1009 = vunpack.c.h.b16 %v887
      %v1010 = vunpack.c.l.b16 %v888
      %v1011 = vunpack.c.h.b16 %v888
      %v1012 = vunpack.c.l.b16 %v889
      %v1013 = vunpack.c.h.b16 %v889
      %v1014 = vunpack.c.l.b16 %v890
      %v1015 = vunpack.c.h.b16 %v890
      %v1016 = vunpack.c.l.b16 %v891
      %v1017 = vunpack.c.h.b16 %v891
      %v1018 = vunpack.c.l.b16 %v892
      %v1019 = vunpack.c.h.b16 %v892
      %v1020 = vunpack.c.l.b16 %v893
      %v1021 = vunpack.c.h.b16 %v893
      %v1022 = vpack.c.b16 %v946, %v942
      %v1023 = vpack.c.b16 %v947, %v943
      %v1024 = vpack.c.b16 %v948, %v944
      %v1025 = vpack.c.b16 %v949, %v945
      %v1026 = vpack.c.b16 %v954, %v950
      %v1027 = vpack.c.b16 %v955, %v951
      %v1028 = vpack.c.b16 %v956, %v952
      %v1029 = vpack.c.b16 %v957, %v953
      %v1030 = vpack.c.b16 %v962, %v958
      %v1031 = vpack.c.b16 %v963, %v959
      %v1032 = vpack.c.b16 %v964, %v960
      %v1033 = vpack.c.b16 %v965, %v961
      %v1034 = vpack.c.b16 %v970, %v966
      %v1035 = vpack.c.b16 %v971, %v967
      %v1036 = vpack.c.b16 %v972, %v968
      %v1037 = vpack.c.b16 %v973, %v969
      %v1038 = vpack.c.b16 %v978, %v974
      %v1039 = vpack.c.b16 %v979, %v975
      %v1040 = vpack.c.b16 %v980, %v976
      %v1041 = vpack.c.b16 %v981, %v977
      %v1042 = vpack.c.b16 %v986, %v982
      %v1043 = vpack.c.b16 %v987, %v983
      %v1044 = vpack.c.b16 %v988, %v984
      %v1045 = vpack.c.b16 %v989, %v985
      %v1046 = vpack.c.b16 %v994, %v990
      %v1047 = vpack.c.b16 %v995, %v991
      %v1048 = vpack.c.b16 %v996, %v992
      %v1049 = vpack.c.b16 %v997, %v993
      %v1050 = vpack.c.b16 %v1002, %v998
      %v1051 = vpack.c.b16 %v1003, %v999
      %v1052 = vpack.c.b16 %v1004, %v1000
      %v1053 = vpack.c.b16 %v1005, %v1001
      %v1054 = vpack.c.b16 %v1010, %v1006
      %v1055 = vpack.c.b16 %v1011, %v1007
      %v1056 = vpack.c.b16 %v1012, %v1008
      %v1057 = vpack.c.b16 %v1013, %v1009
      %v1058 = vpack.c.b16 %v1018, %v1014
      %v1059 = vpack.c.b16 %v1019, %v1015
      %v1060 = vpack.c.b16 %v1020, %v1016
      %v1061 = vpack.c.b16 %v1021, %v1017
      %v1103 = vsel %vm478, %v900, 0
      %1105 = vmatprep.subr.bf16.mxu0 %v1051
      %1106 = vmatpush1.bf16.msra.mxu0 %v1050
      %1107 = vmatprep.subr.bf16.mxu0 %v1047
      %1108 = vmatpush1.bf16.msra.mxu0 %v1046
      %1109 = vmatprep.subr.bf16.mxu0 %v1043
      %1110 = vmatpush1.bf16.msra.mxu0 %v1042
      %1111 = vmatprep.subr.bf16.mxu0 %v1039
      %1112 = vmatpush1.bf16.msra.mxu0 %v1038
      %1113 = vmatprep.subr.bf16.mxu0 %v1035
      %1114 = vmatpush1.bf16.msra.mxu0 %v1034
      %1115 = vmatprep.subr.bf16.mxu0 %v1031
      %1116 = vmatpush1.bf16.msra.mxu0 %v1030
      %1117 = vmatprep.subr.bf16.mxu0 %v1027
      %1118 = vmatpush1.bf16.msra.mxu0 %v1026
      %1119 = vmatprep.subr.bf16.mxu0 %v1023
      %1120 = vmatpush1.bf16.msra.mxu0 %v1022
      %1121 = vmatprep.subr.bf16.mxu0 0
      %1122 = vmatpush2.bf16.msra.mxu0 0
      %1123 = vmatprep.subr.bf16.mxu0 0
      %1124 = vmatpush2.bf16.msra.mxu0 0
      %1125 = vmatprep.subr.bf16.mxu0 0
      %1126 = vmatpush2.bf16.msra.mxu0 0
      %1127 = vmatprep.subr.bf16.mxu0 0
      %1128 = vmatpush2.bf16.msra.mxu0 0
      %1129 = vmatprep.subr.bf16.mxu0 0
      %1130 = vmatpush2.bf16.msra.mxu0 0
      %1131 = vmatprep.subr.bf16.mxu0 0
      %1132 = vmatpush2.bf16.msra.mxu0 0
      %1133 = vmatprep.subr.bf16.mxu0 %v1059
      %1134 = vmatpush2.bf16.msra.mxu0 %v1058
      %1135 = vmatprep.subr.bf16.mxu0 %v1055
      %1136 = vmatpush2.bf16.msra.mxu0 %v1054
      %1137 = vmatprep.mubr.bf16.mxu0 %v1103
      %1138 = vmatmul.mubr.bf16.gmra.mxu0 %v899
      %v1139 = vpop.f32.mrf.mxu0
      %v1140 = vadd.f32 0.0, %v1139
      %v1141 = vpop.f32.mrf.mxu0
      %v1142 = vadd.f32 0.0, %v1141
      %v1143 = vpop.f32.mrf.mxu0
      %v1144 = vpop.f32.mrf.mxu0
      %1145 = vdwg.mxu0
      %1146 = vmatprep.subr.bf16.mxu0 %v1053
      %1147 = vmatpush1.bf16.msra.mxu0 %v1052
      %1148 = vmatprep.subr.bf16.mxu0 %v1049
      %1149 = vmatpush1.bf16.msra.mxu0 %v1048
      %1150 = vmatprep.subr.bf16.mxu0 %v1045
      %1151 = vmatpush1.bf16.msra.mxu0 %v1044
      %1152 = vmatprep.subr.bf16.mxu0 %v1041
      %1153 = vmatpush1.bf16.msra.mxu0 %v1040
      %1154 = vmatprep.subr.bf16.mxu0 %v1037
      %1155 = vmatpush1.bf16.msra.mxu0 %v1036
      %1156 = vmatprep.subr.bf16.mxu0 %v1033
      %1157 = vmatpush1.bf16.msra.mxu0 %v1032
      %1158 = vmatprep.subr.bf16.mxu0 %v1029
      %1159 = vmatpush1.bf16.msra.mxu0 %v1028
      %1160 = vmatprep.subr.bf16.mxu0 %v1025
      %1161 = vmatpush1.bf16.msra.mxu0 %v1024
      %1162 = vmatprep.subr.bf16.mxu0 0
      %1163 = vmatpush2.bf16.msra.mxu0 0
      %1164 = vmatprep.subr.bf16.mxu0 0
      %1165 = vmatpush2.bf16.msra.mxu0 0
      %1166 = vmatprep.subr.bf16.mxu0 0
      %1167 = vmatpush2.bf16.msra.mxu0 0
      %1168 = vmatprep.subr.bf16.mxu0 0
      %1169 = vmatpush2.bf16.msra.mxu0 0
      %1170 = vmatprep.subr.bf16.mxu0 0
      %1171 = vmatpush2.bf16.msra.mxu0 0
      %1172 = vmatprep.subr.bf16.mxu0 0
      %1173 = vmatpush2.bf16.msra.mxu0 0
      %1174 = vmatprep.subr.bf16.mxu0 %v1061
      %1175 = vmatpush2.bf16.msra.mxu0 %v1060
      %1176 = vmatprep.subr.bf16.mxu0 %v1057
      %1177 = vmatpush2.bf16.msra.mxu0 %v1056
      %1178 = vmatprep.mubr.bf16.mxu0 %v1103
      %1179 = vmatmul.mubr.bf16.gmra.mxu0 %v899
      %v1180 = vpop.f32.mrf.mxu0
      %v1181 = vadd.f32 0.0, %v1180
      %v1182 = vpop.f32.mrf.mxu0
      %v1183 = vadd.f32 0.0, %v1182
      %v1184 = vpop.f32.mrf.mxu0
      %v1185 = vpop.f32.mrf.mxu0
      %1186 = vdwg.mxu0
      %v1187 = vadd.f32 %v805, %v1140
      %v1188 = vadd.f32 %v807, %v1142
      %v1189 = vadd.f32 %v846, %v1181
      %v1190 = vadd.f32 %v848, %v1183
      %v1191 = vld [vmem:[%s2] sm:$0xf]
      %v1193 = vlaneseq
      %v1194 = vshrl.u32 %v1193, 7
      %v1195 = vsub.s32 0, %v1194
      %v1196 = vrot.slane %v1191, %v1195
      %v1197 = vlaneseq
      %v1198 = vshrl.u32 %v1197, 7
      %v1199 = vsub.s32 1, %v1198
      %v1200 = vrot.slane %v1191, %v1199
      %v1201 = vlaneseq
      %v1202 = vshrl.u32 %v1201, 7
      %v1203 = vsub.s32 2, %v1202
      %v1204 = vrot.slane %v1191, %v1203
      %v1205 = vlaneseq
      %v1206 = vshrl.u32 %v1205, 7
      %v1207 = vsub.s32 3, %v1206
      %v1208 = vrot.slane %v1191, %v1207
      %v1213 = vadd.f32 %v1187, %v1196
      %v1214 = vadd.f32 %v1188, %v1200
      %v1215 = vadd.f32 %v1189, %v1204
      %v1216 = vadd.f32 %v1190, %v1208
      %v1217 = vmax.f32 %v1213, 0.0
      %v1218 = vmax.f32 %v1214, 0.0
      %v1219 = vmax.f32 %v1215, 0.0
      %v1220 = vmax.f32 %v1216, 0.0
      %v1221 = vpack.c.bf16 %v1217, %v1217
      %v1222 = vpack.c.bf16 %v1218, %v1218
      %v1223 = vpack.c.bf16 %v1219, %v1219
      %v1224 = vpack.c.bf16 %v1220, %v1220
      %v1229 = vunpack.c.l.b16 %v1221
      %v1230 = vunpack.c.l.b16 %v1222
      %v1231 = vunpack.c.l.b16 %v1223
      %v1232 = vunpack.c.l.b16 %v1224
      %v1233 = vpack.c.b16 %v1230, %v1229
      %v1234 = vpack.c.b16 %v1232, %v1231
      %1237 = vst [vmem:[%s170] sm:$0xff] %v1233
      %1238 = vst [vmem:[%s170 + $0x8] sm:$0xff] %v1234
      %p1239 = scmp.lt.s32.totalorder %s14, 1
      %s1240 = scalar_select %p1239, %s14, 1
      %s1241 = smul.addr %s1240, 4
      %s1242 = smul.addr %s1241, 4
      %s1243 = scalar_lea.vmem %s3, %s1242
      // Predicated region
      $region33: #{ttfnet_forward.6} parent=31 // pred_check
        %p1244 = pneg %p100
      $region34: #{ttfnet_forward.6} parent=31 // pred_check_branch
        %1246 = sbr.rel (%p1244) target = $region36
      $region35: #{ttfnet_forward.6} parent=31 // pred_region
        _
      $region36: #{ttfnet_forward.6} parent=31 // pred_fallthru
        _
    $region32: #{ttfnet_forward.6} parent=5 // pred_fallthru
      _
    %p1247 = scmp.le.s32.totalorder 2, %s9
    // Predicated region
    $region37: #{ttfnet_forward.6} parent=5 // pred_check
      %p1248 = pneg %p1247
    $region38: #{ttfnet_forward.6} parent=5 // pred_check_branch
      %1250 = sbr.rel (%p1248) target = $region40
    $region39: #{ttfnet_forward.6} parent=5 // pred_region
      %s1251 = ssub.s32 %s9, 2
      // Predicated region
      $region41: #{ttfnet_forward.6} parent=39 // pred_check
        %p1252 = pneg %p106
      $region42: #{ttfnet_forward.6} parent=39 // pred_check_branch
        %1254 = sbr.rel (%p1252) target = $region44
      $region43: #{ttfnet_forward.6} parent=39 // pred_region
        %p1255 = scmp.lt.s32.totalorder %s15, 1
        %s1256 = scalar_select %p1255, %s15, 1
        %s1257 = smul.addr %s1256, 4
        %s1258 = smul.addr %s1257, 4
        %s1259 = scalar_lea.vmem %s3, %s1258
      $region44: #{ttfnet_forward.6} parent=39 // pred_fallthru
        _
    $region40: #{ttfnet_forward.6} parent=5 // pred_fallthru
      _
  $region6: #{ttfnet_forward.6} parent=0 // loop_footer
    %s13 = sadd.s32 1, %s9
  $region7: #{ttfnet_forward.6} parent=0 // loop_footer_branch
    %8 = sbr.rel target = $region3
  $region8: #{ttfnet_forward.6} parent=0 // loop_exit
    _

// kernel: tile.37
$region0: #{tile.37}
  %s0 = inlined_call_operand.vmem [shape: f32[2,64,2], index: 0, kind: input, shape index: {}]
  %s1 = inlined_call_operand.vmem [shape: f32[128,2], index: 1, kind: output, shape index: {}]
  $region1: #{tile.37} parent=0
    #allocation0 [shape = 'u8[4096]{0}', space=vmem, size = 0x1000, scoped, tag = 'scoped mem for output reshape']
    #allocation1 [shape = 'u8[8192]{0}', space=vmem, size = 0x2000, scoped, tag = 'scoped mem for input reshape']
    %s3 = sshll.u32 1, 2
    %s4 = ssub.s32 %s3, 1
    %s5 = scalar_lea.vmem %s0, 2
    %v6 = vld [vmem:[%s5] sm:%s4]
    %s7 = scalar_lea.vmem [#allocation1], 8
    %8 = vst [vmem:[%s7] sm:%s4] %v6
    %v9 = vld [vmem:[%s0] sm:%s4]
    %10 = vst [vmem:[#allocation1] sm:%s4] %v9
    %s11 = smov 3
    %v12 = vld [vmem:[#allocation1] ss:$8 sm:%s11]
    %vm13 = vcmask 523264
    %14 = vst.msk [vmem:[#allocation0] sm:$0x3] %vm13, %v12
    %s15 = scalar_lea.vmem [#allocation1], 1
    %s16 = smov 3
    %v17 = vld [vmem:[%s15] ss:$8 sm:%s16]
    %18 = vrot.lane.b32.xlu0 %v17, 64
    %v19 = vpop.permute.xlu0 %18
    %vm20 = vcmask 1048064
    %21 = vst.msk [vmem:[#allocation0] sm:$0x3] %vm20, %v19
    %s23 = sshll.u32 1, 2
    %s24 = ssub.s32 %s23, 1
    %v26 = vld [vmem:[#allocation0] sm:%s24]
    %s27 = sshll.u32 1, 2
    %s28 = ssub.s32 %s27, 1
    %29 = vst [vmem:[%s1] sm:%s28] %v26

// kernel: ttfnet_forward.7
$region0: #{ttfnet_forward.7}
  #allocation0 [shape = 'u32[]', space=smem, size = 0x4, offset = 0x4, fixed_abs, tag = 'smem constant byte address 0x4 - core index']
  #allocation1 [shape = 'u32[144,128]{1,0:T(1,128)}', space=vmem, size = 0x12000, scoped, tag = 'internal scratch']
  %s0 = inlined_call_operand.vmem [shape: bf16[128,64], index: 0, kind: input, shape index: {}]
  %s1 = inlined_call_operand.vmem [shape: bf16[64,8], index: 1, kind: input, shape index: {}]
  %s2 = inlined_call_operand.vmem [shape: f32[1,8], index: 2, kind: input, shape index: {}]
  %s3 = inlined_call_operand.vmem [shape: f32[128,11], index: 3, kind: input, shape index: {}]
  %s4 = inlined_call_operand.vmem [shape: f32[8,128], index: 4, kind: output, shape index: {}]
  %s5 = sld [smem:[#allocation0]]
  $region53: #{ttfnet_forward.7} parent=0
    _
  %s7 = ssub.s32 1, %s5
  %s8 = scalar_select 0, %s7, %s5
  loop: start=0, step=1, limit=4
  $region2: #{ttfnet_forward.7} parent=0 // loop_pre_header
    _
  $region3: #{ttfnet_forward.7} parent=0 // loop_header
    %s10 = sphi 0, %s14
    %p11 = scmp.ge.s32.totalorder %s10, 4
    %s20 = sphi 0, %s22
    %s23 = sphi 0, %s20
    %s24 = sphi 0, %s23
    %s40 = sphi 0, %s24
    %s44 = sphi 0, %s44
    %s46 = sphi 0, %s44
    %s47 = sphi 0, %s46
    %s61 = sphi 0, %s47
    %s65 = sphi 0, %s65
    %s67 = sphi 0, %s65
    %s68 = sphi 0, %s67
    %s82 = sphi 0, %s68
    %s88 = sphi 0, %s90
    %s91 = sphi 0, %s88
    %s92 = sphi 0, %s91
    %s108 = sphi 0, %s92
    %s112 = sphi 0, %s112
    %s114 = sphi 0, %s112
    %s115 = sphi 0, %s114
    %s129 = sphi 0, %s115
  $region4: #{ttfnet_forward.7} parent=0 // loop_header_branch
    %13 = sbr.rel (%p11) target = $region8
  $region5: #{ttfnet_forward.7} parent=0 // loop_body
    %s15 = ssub.s32 %s10, 1
    %s16 = ssub.s32 %s10, 2
    %s17 = sadd.s32 %s10, 1
    %s18 = ssub.s32 %s10, %s17
    %p19 = scmp.eq.s32.totalorder %s18, 0
    %s21 = sadd.s32 %s20, 1
    %s22 = scalar_select %p19, %s20, %s21
    %p25 = pneg %p19
    %p26 = scmp.eq.s32.totalorder %s10, 1
    %p27 = por %p25, %p26
    %p28 = scmp.ne.s32.totalorder %s20, %s23
    %p29 = scmp.eq.s32.totalorder %s10, 0
    %p30 = por %p28, %p29
    %p31 = scmp.ne.s32.totalorder %s20, %s23
    %p32 = scmp.eq.s32.totalorder %s15, 1
    %p33 = por %p31, %p32
    %p34 = scmp.ne.s32.totalorder %s23, %s24
    %p35 = scmp.eq.s32.totalorder %s15, 0
    %p36 = por %p34, %p35
    %p37 = scmp.ne.s32.totalorder %s23, %s24
    %p38 = scmp.eq.s32.totalorder %s16, 1
    %p39 = por %p37, %p38
    %p41 = scmp.ne.s32.totalorder %s24, %s40
    %p42 = scmp.eq.s32.totalorder %s16, 0
    %p43 = por %p41, %p42
    %s45 = sadd.s32 %s44, 1
    %p48 = scmp.eq.s32.totalorder %s10, 1
    %p49 = scmp.ne.s32.totalorder %s44, %s46
    %p50 = scmp.eq.s32.totalorder %s10, 0
    %p51 = por %p49, %p50
    %p52 = scmp.ne.s32.totalorder %s44, %s46
    %p53 = scmp.eq.s32.totalorder %s15, 1
    %p54 = por %p52, %p53
    %p55 = scmp.ne.s32.totalorder %s46, %s47
    %p56 = scmp.eq.s32.totalorder %s15, 0
    %p57 = por %p55, %p56
    %p58 = scmp.ne.s32.totalorder %s46, %s47
    %p59 = scmp.eq.s32.totalorder %s16, 1
    %p60 = por %p58, %p59
    %p62 = scmp.ne.s32.totalorder %s47, %s61
    %p63 = scmp.eq.s32.totalorder %s16, 0
    %p64 = por %p62, %p63
    %s66 = sadd.s32 %s65, 1
    %p69 = scmp.eq.s32.totalorder %s10, 1
    %p70 = scmp.ne.s32.totalorder %s65, %s67
    %p71 = scmp.eq.s32.totalorder %s10, 0
    %p72 = por %p70, %p71
    %p73 = scmp.ne.s32.totalorder %s65, %s67
    %p74 = scmp.eq.s32.totalorder %s15, 1
    %p75 = por %p73, %p74
    %p76 = scmp.ne.s32.totalorder %s67, %s68
    %p77 = scmp.eq.s32.totalorder %s15, 0
    %p78 = por %p76, %p77
    %p79 = scmp.ne.s32.totalorder %s67, %s68
    %p80 = scmp.eq.s32.totalorder %s16, 1
    %p81 = por %p79, %p80
    %p83 = scmp.ne.s32.totalorder %s68, %s82
    %p84 = scmp.eq.s32.totalorder %s16, 0
    %p85 = por %p83, %p84
    %s86 = ssub.s32 %s10, %s17
    %p87 = scmp.eq.s32.totalorder %s86, 0
    %s89 = sadd.s32 %s88, 1
    %s90 = scalar_select %p87, %s88, %s89
    %p93 = pneg %p87
    %p94 = scmp.eq.s32.totalorder %s10, 1
    %p95 = por %p93, %p94
    %p96 = scmp.ne.s32.totalorder %s88, %s91
    %p97 = scmp.eq.s32.totalorder %s10, 0
    %p98 = por %p96, %p97
    %p99 = scmp.ne.s32.totalorder %s88, %s91
    %p100 = scmp.eq.s32.totalorder %s15, 1
    %p101 = por %p99, %p100
    %p102 = scmp.ne.s32.totalorder %s91, %s92
    %p103 = scmp.eq.s32.totalorder %s15, 0
    %p104 = por %p102, %p103
    %p105 = scmp.ne.s32.totalorder %s91, %s92
    %p106 = scmp.eq.s32.totalorder %s16, 1
    %p107 = por %p105, %p106
    %p109 = scmp.ne.s32.totalorder %s92, %s108
    %p110 = scmp.eq.s32.totalorder %s16, 0
    %p111 = por %p109, %p110
    %s113 = sadd.s32 %s112, 1
    %p116 = scmp.eq.s32.totalorder %s10, 1
    %p117 = scmp.ne.s32.totalorder %s112, %s114
    %p118 = scmp.eq.s32.totalorder %s10, 0
    %p119 = por %p117, %p118
    %p120 = scmp.ne.s32.totalorder %s112, %s114
    %p121 = scmp.eq.s32.totalorder %s15, 1
    %p122 = por %p120, %p121
    %p123 = scmp.ne.s32.totalorder %s114, %s115
    %p124 = scmp.eq.s32.totalorder %s15, 0
    %p125 = por %p123, %p124
    %p126 = scmp.ne.s32.totalorder %s114, %s115
    %p127 = scmp.eq.s32.totalorder %s16, 1
    %p128 = por %p126, %p127
    %p130 = scmp.ne.s32.totalorder %s115, %s129
    %p131 = scmp.eq.s32.totalorder %s16, 0
    %p132 = por %p130, %p131
    %p133 = scmp.le.s32.totalorder 1, %s10
    %p134 = scmp.lt.s32.totalorder %s10, 3
    %p135 = pnand %p133, %p134
    %p136 = pneg %p135
    // Predicated region
    $region9: #{ttfnet_forward.7} parent=5 // pred_check
      _
    $region10: #{ttfnet_forward.7} parent=5 // pred_check_branch
      %138 = sbr.rel (%p135) target = $region12
    $region11: #{ttfnet_forward.7} parent=5 // pred_region
      %s139 = ssub.s32 %s10, 1
      // Predicated region
      $region13: #{ttfnet_forward.7} parent=11 // pred_check
        %p140 = pneg %p57
      $region14: #{ttfnet_forward.7} parent=11 // pred_check_branch
        %142 = sbr.rel (%p140) target = $region16
      $region15: #{ttfnet_forward.7} parent=11 // pred_region
        _
      $region16: #{ttfnet_forward.7} parent=11 // pred_fallthru
        _
      // Predicated region
      $region17: #{ttfnet_forward.7} parent=11 // pred_check
        %p143 = pneg %p78
      $region18: #{ttfnet_forward.7} parent=11 // pred_check_branch
        %145 = sbr.rel (%p143) target = $region20
      $region19: #{ttfnet_forward.7} parent=11 // pred_region
        _
      $region20: #{ttfnet_forward.7} parent=11 // pred_fallthru
        _
    $region12: #{ttfnet_forward.7} parent=5 // pred_fallthru
      _
    %p146 = scmp.lt.s32.totalorder %s10, 2
    // Predicated region
    $region21: #{ttfnet_forward.7} parent=5 // pred_check
      %p147 = pneg %p146
    $region22: #{ttfnet_forward.7} parent=5 // pred_check_branch
      %149 = sbr.rel (%p147) target = $region24
    $region23: #{ttfnet_forward.7} parent=5 // pred_region
      // Predicated region
      $region25: #{ttfnet_forward.7} parent=23 // pred_check
        %p150 = pneg %p30
      $region26: #{ttfnet_forward.7} parent=23 // pred_check_branch
        %152 = sbr.rel (%p150) target = $region28
      $region27: #{ttfnet_forward.7} parent=23 // pred_region
        %s153 = smul.u32 8, %s10
        %p154 = scmp.lt.s32.totalorder %s153, 15
        %s155 = scalar_select %p154, %s153, 15
        %s156 = smul.addr %s155, 4
        %s157 = scalar_lea.vmem %s0, %s156
        %s158 = smul.u32 8, %s10
      $region28: #{ttfnet_forward.7} parent=23 // pred_fallthru
        _
      // Predicated region
      $region29: #{ttfnet_forward.7} parent=23 // pred_check
        %p159 = pneg %p98
      $region30: #{ttfnet_forward.7} parent=23 // pred_check_branch
        %161 = sbr.rel (%p159) target = $region32
      $region31: #{ttfnet_forward.7} parent=23 // pred_region
        %s162 = smul.u32 8, %s10
        %p163 = scmp.lt.s32.totalorder %s162, 15
        %s164 = scalar_select %p163, %s162, 15
        %s165 = smul.addr %s164, 8
        %s166 = scalar_lea.vmem %s3, %s165
        %s167 = smul.u32 8, %s10
      $region32: #{ttfnet_forward.7} parent=23 // pred_fallthru
        _
    $region24: #{ttfnet_forward.7} parent=5 // pred_fallthru
      _
    %p168 = scmp.le.s32.totalorder 1, %s10
    %p169 = scmp.lt.s32.totalorder %s10, 3
    %p170 = pnand %p168, %p169
    %p171 = pneg %p170
    // Predicated region
    $region33: #{ttfnet_forward.7} parent=5 // pred_check
      _
    $region34: #{ttfnet_forward.7} parent=5 // pred_check_branch
      %173 = sbr.rel (%p170) target = $region36
    $region35: #{ttfnet_forward.7} parent=5 // pred_region
      %s174 = ssub.s32 %s10, 1
      %s175 = smul.u32 8, %s15
      %p176 = scmp.lt.s32.totalorder %s175, 15
      %s177 = scalar_select %p176, %s175, 15
      %s178 = smul.addr %s177, 4
      %s179 = scalar_lea.vmem %s0, %s178
      %p180 = pneg %p36
      %p181 = pneg %p33
      %p182 = pneg %p57
      %p183 = pneg %p54
      %p184 = pneg %p78
      %p185 = pneg %p75
      %s186 = smul.u32 8, %s15
      %p187 = scmp.lt.s32.totalorder %s186, 15
      %s188 = scalar_select %p187, %s186, 15
      %s189 = smul.addr %s188, 8
      %s190 = scalar_lea.vmem %s3, %s189
      %p191 = pneg %p104
      %p192 = pneg %p101
      %p193 = pneg %p125
      %p194 = pneg %p122
      %s195 = smul.u32 8, %s15
      %p196 = scmp.lt.s32.totalorder %s195, 15
      %s197 = scalar_select %p196, %s195, 15
      %s198 = smul.addr %s197, 4
      %s199 = scalar_lea.vmem %s0, %s198
      %s200 = smul.u32 8, %s15
      %s201 = smul.u32 8, %s15
      %p202 = scmp.lt.s32.totalorder %s201, 15
      %s203 = scalar_select %p202, %s201, 15
      %s204 = smul.addr %s203, 8
      %s205 = scalar_lea.vmem %s3, %s204
      %s206 = smul.u32 8, %s15
      %p208 = scmp.eq.s32.totalorder %s15, 0
      // Predicated region
      $region37: #{ttfnet_forward.7} parent=35 // pred_check
        %p209 = pneg %p208
      $region38: #{ttfnet_forward.7} parent=35 // pred_check_branch
        %211 = sbr.rel (%p209) target = $region40
      $region39: #{ttfnet_forward.7} parent=35 // pred_region
        %212 = vst [vmem:[%s4] sm:$0xff] 0.0
      $region40: #{ttfnet_forward.7} parent=35 // pred_fallthru
        _
      %v213 = vld [vmem:[%s199] sm:$0xf]
      %v214 = vld [vmem:[%s199 + $0x4] sm:$0xf]
      %v215 = vld [vmem:[%s199 + $0x8] sm:$0xf]
      %v216 = vld [vmem:[%s199 + $0xc] sm:$0xf]
      %v217 = vld [vmem:[%s199 + $0x10] sm:$0xf]
      %v218 = vld [vmem:[%s199 + $0x14] sm:$0xf]
      %v219 = vld [vmem:[%s199 + $0x18] sm:$0xf]
      %v220 = vld [vmem:[%s199 + $0x1c] sm:$0xf]
      %v221 = vld [vmem:[%s1] sm:$0xf]
      %v222 = vld [vmem:[%s1 + $0x4] sm:$0xf]
      %v223 = vld [vmem:[%s1 + $0x8] sm:$0xf]
      %v224 = vld [vmem:[%s1 + $0xc] sm:$0xf]
      %v225 = vld [vmem:[%s1 + $0x10] sm:$0xf]
      %v226 = vld [vmem:[%s1 + $0x14] sm:$0xf]
      %v227 = vld [vmem:[%s1 + $0x18] sm:$0xf]
      %v228 = vld [vmem:[%s1 + $0x1c] sm:$0xf]
      %v229 = vld [vmem:[%s2] sm:$0x1]
      %v231 = vlaneseq
      %v232 = vshrl.u32 %v231, 7
      %v233 = vsub.s32 0, %v232
      %v234 = vrot.slane %v229, %v233
      %v244 = vunpack.c.l.b16 %v213
      %v245 = vunpack.c.l.b16 %v214
      %v246 = vunpack.c.l.b16 %v215
      %v247 = vunpack.c.l.b16 %v216
      %v248 = vunpack.c.l.b16 %v217
      %v249 = vunpack.c.l.b16 %v218
      %v250 = vunpack.c.l.b16 %v219
      %v251 = vunpack.c.l.b16 %v220
      %v252 = vpack.c.b16 %v245, %v244
      %v253 = vpack.c.b16 %v247, %v246
      %v254 = vpack.c.b16 %v249, %v248
      %v255 = vpack.c.b16 %v251, %v250
      %v264 = vunpack.c.l.b16 %v221
      %v265 = vunpack.c.l.b16 %v222
      %v266 = vunpack.c.l.b16 %v223
      %v267 = vunpack.c.l.b16 %v224
      %v268 = vunpack.c.l.b16 %v225
      %v269 = vunpack.c.l.b16 %v226
      %v270 = vunpack.c.l.b16 %v227
      %v271 = vunpack.c.l.b16 %v228
      %v272 = vpack.c.b16 %v265, %v264
      %v273 = vpack.c.b16 %v267, %v266
      %v274 = vpack.c.b16 %v269, %v268
      %v275 = vpack.c.b16 %v271, %v270
      %vm280 = vcmask 523264
      %v282 = vsel %vm280, %v252, 0
      %v285 = vsel %vm280, %v253, 0
      %v288 = vsel %vm280, %v254, 0
      %v291 = vsel %vm280, %v255, 0
      %293 = vmatprep.subr.bf16.mxu0 0
      %294 = vmatpush1.bf16.msra.mxu0 0
      %295 = vmatprep.subr.bf16.mxu0 0
      %296 = vmatpush1.bf16.msra.mxu0 0
      %297 = vmatprep.subr.bf16.mxu0 0
      %298 = vmatpush1.bf16.msra.mxu0 0
      %299 = vmatprep.subr.bf16.mxu0 0
      %300 = vmatpush1.bf16.msra.mxu0 0
      %301 = vmatprep.subr.bf16.mxu0 0
      %302 = vmatpush1.bf16.msra.mxu0 %v275
      %303 = vmatprep.subr.bf16.mxu0 0
      %304 = vmatpush1.bf16.msra.mxu0 %v274
      %305 = vmatprep.subr.bf16.mxu0 0
      %306 = vmatpush1.bf16.msra.mxu0 %v273
      %307 = vmatprep.subr.bf16.mxu0 0
      %308 = vmatpush1.bf16.msra.mxu0 %v272
      %309 = vmatprep.subr.bf16.mxu0 0
      %310 = vmatpush2.bf16.msra.mxu0 0
      %311 = vmatprep.subr.bf16.mxu0 0
      %312 = vmatpush2.bf16.msra.mxu0 0
      %313 = vmatprep.subr.bf16.mxu0 0
      %314 = vmatpush2.bf16.msra.mxu0 0
      %315 = vmatprep.subr.bf16.mxu0 0
      %316 = vmatpush2.bf16.msra.mxu0 0
      %317 = vmatprep.subr.bf16.mxu0 0
      %318 = vmatpush2.bf16.msra.mxu0 0
      %319 = vmatprep.subr.bf16.mxu0 0
      %320 = vmatpush2.bf16.msra.mxu0 0
      %321 = vmatprep.subr.bf16.mxu0 0
      %322 = vmatpush2.bf16.msra.mxu0 0
      %323 = vmatprep.subr.bf16.mxu0 0
      %324 = vmatpush2.bf16.msra.mxu0 0
      %325 = vmatprep.mubr.bf16.mxu0 0
      %326 = vmatmul.mubr.bf16.gmra.mxu0 %v282
      %v327 = vpop.f32.mrf.mxu0
      %v328 = vadd.f32 %v234, %v327
      %v329 = vpop.f32.mrf.mxu0
      %v330 = vpop.f32.mrf.mxu0
      %v331 = vadd.f32 %v234, %v330
      %v332 = vpop.f32.mrf.mxu0
      %333 = vmatprep.mubr.bf16.mxu0 0
      %334 = vmatmul.mubr.bf16.gmra.mxu0 %v285
      %v335 = vpop.f32.mrf.mxu0
      %v336 = vadd.f32 %v234, %v335
      %v337 = vpop.f32.mrf.mxu0
      %v338 = vpop.f32.mrf.mxu0
      %v339 = vadd.f32 %v234, %v338
      %v340 = vpop.f32.mrf.mxu0
      %341 = vmatprep.mubr.bf16.mxu0 0
      %342 = vmatmul.mubr.bf16.gmra.mxu0 %v288
      %v343 = vpop.f32.mrf.mxu0
      %v344 = vadd.f32 %v234, %v343
      %v345 = vpop.f32.mrf.mxu0
      %v346 = vpop.f32.mrf.mxu0
      %v347 = vadd.f32 %v234, %v346
      %v348 = vpop.f32.mrf.mxu0
      %349 = vmatprep.mubr.bf16.mxu0 0
      %350 = vmatmul.mubr.bf16.gmra.mxu0 %v291
      %v351 = vpop.f32.mrf.mxu0
      %v352 = vadd.f32 %v234, %v351
      %v353 = vpop.f32.mrf.mxu0
      %v354 = vpop.f32.mrf.mxu0
      %v355 = vadd.f32 %v234, %v354
      %v356 = vpop.f32.mrf.mxu0
      %357 = vdwg.mxu0
      %v358 = vxor.u32 %v328, 2147483648
      %v359 = vxor.u32 %v331, 2147483648
      %v360 = vxor.u32 %v336, 2147483648
      %v361 = vxor.u32 %v339, 2147483648
      %v362 = vxor.u32 %v344, 2147483648
      %v363 = vxor.u32 %v347, 2147483648
      %v364 = vxor.u32 %v352, 2147483648
      %v365 = vxor.u32 %v355, 2147483648
      %v366 = vmul.f32 %v358, 1.442695
      %v367 = vpow.pop %v366
      %v368 = vmul.f32 %v359, 1.442695
      %v369 = vpow.pop %v368
      %v370 = vmul.f32 %v360, 1.442695
      %v371 = vpow.pop %v370
      %v372 = vmul.f32 %v361, 1.442695
      %v373 = vpow.pop %v372
      %v374 = vmul.f32 %v362, 1.442695
      %v375 = vpow.pop %v374
      %v376 = vmul.f32 %v363, 1.442695
      %v377 = vpow.pop %v376
      %v378 = vmul.f32 %v364, 1.442695
      %v379 = vpow.pop %v378
      %v380 = vmul.f32 %v365, 1.442695
      %v381 = vpow.pop %v380
      %v382 = vadd.f32 %v367, 1.0
      %v383 = vadd.f32 %v369, 1.0
      %v384 = vadd.f32 %v371, 1.0
      %v385 = vadd.f32 %v373, 1.0
      %v386 = vadd.f32 %v375, 1.0
      %v387 = vadd.f32 %v377, 1.0
      %v388 = vadd.f32 %v379, 1.0
      %v389 = vadd.f32 %v381, 1.0
      %v390 = vrcp.pop %v382
      %v391 = vmul.f32 1.0, %v390
      %v392 = vrcp.pop %v383
      %v393 = vmul.f32 1.0, %v392
      %v394 = vrcp.pop %v384
      %v395 = vmul.f32 1.0, %v394
      %v396 = vrcp.pop %v385
      %v397 = vmul.f32 1.0, %v396
      %v398 = vrcp.pop %v386
      %v399 = vmul.f32 1.0, %v398
      %v400 = vrcp.pop %v387
      %v401 = vmul.f32 1.0, %v400
      %v402 = vrcp.pop %v388
      %v403 = vmul.f32 1.0, %v402
      %v404 = vrcp.pop %v389
      %v405 = vmul.f32 1.0, %v404
      %v406 = vmax.f32 %v328, 0.0
      %v407 = vmax.f32 %v331, 0.0
      %v408 = vmax.f32 %v336, 0.0
      %v409 = vmax.f32 %v339, 0.0
      %v410 = vmax.f32 %v344, 0.0
      %v411 = vmax.f32 %v347, 0.0
      %v412 = vmax.f32 %v352, 0.0
      %v413 = vmax.f32 %v355, 0.0
      %v414 = vmul.f32 %v406, 16.0
      %v415 = vmul.f32 %v407, 16.0
      %v416 = vmul.f32 %v408, 16.0
      %v417 = vmul.f32 %v409, 16.0
      %v418 = vmul.f32 %v410, 16.0
      %v419 = vmul.f32 %v411, 16.0
      %v420 = vmul.f32 %v412, 16.0
      %v421 = vmul.f32 %v413, 16.0
      %v422 = vld [vmem:[%s205] sm:$0xff]
      %v423 = vld [vmem:[%s205 + $0x8] sm:$0xff]
      %v424 = vld [vmem:[%s205 + $0x10] sm:$0xff]
      %v425 = vld [vmem:[%s205 + $0x18] sm:$0xff]
      %v426 = vld [vmem:[%s205 + $0x20] sm:$0xff]
      %v427 = vld [vmem:[%s205 + $0x28] sm:$0xff]
      %v428 = vld [vmem:[%s205 + $0x30] sm:$0xff]
      %v429 = vld [vmem:[%s205 + $0x38] sm:$0xff]
      %vm430 = vcmp.eq.f32.partialorder %v422, 1.0
      %vm431 = vcmp.eq.f32.partialorder %v423, 1.0
      %vm432 = vcmp.eq.f32.partialorder %v424, 1.0
      %vm433 = vcmp.eq.f32.partialorder %v425, 1.0
      %vm434 = vcmp.eq.f32.partialorder %v426, 1.0
      %vm435 = vcmp.eq.f32.partialorder %v427, 1.0
      %vm436 = vcmp.eq.f32.partialorder %v428, 1.0
      %vm437 = vcmp.eq.f32.partialorder %v429, 1.0
      %v438 = vsel %vm430, 1, 0
      %v439 = vsel %vm431, 1, 0
      %v440 = vsel %vm432, 1, 0
      %v441 = vsel %vm433, 1, 0
      %v442 = vsel %vm434, 1, 0
      %v443 = vsel %vm435, 1, 0
      %v444 = vsel %vm436, 1, 0
      %v445 = vsel %vm437, 1, 0
      %v446 = vcvt.s32.f32 %v438
      %v447 = vcvt.s32.f32 %v439
      %v448 = vcvt.s32.f32 %v440
      %v449 = vcvt.s32.f32 %v441
      %v450 = vcvt.s32.f32 %v442
      %v451 = vcvt.s32.f32 %v443
      %v452 = vcvt.s32.f32 %v444
      %v453 = vcvt.s32.f32 %v445
      %v454 = vsub.f32 1.0, %v422
      %v455 = vsub.f32 1.0, %v423
      %v456 = vsub.f32 1.0, %v424
      %v457 = vsub.f32 1.0, %v425
      %v458 = vsub.f32 1.0, %v426
      %v459 = vsub.f32 1.0, %v427
      %v460 = vsub.f32 1.0, %v428
      %v461 = vsub.f32 1.0, %v429
      %v462 = vmul.f32 %v454, %v454
      %v463 = vmul.f32 %v455, %v455
      %v464 = vmul.f32 %v456, %v456
      %v465 = vmul.f32 %v457, %v457
      %v466 = vmul.f32 %v458, %v458
      %v467 = vmul.f32 %v459, %v459
      %v468 = vmul.f32 %v460, %v460
      %v469 = vmul.f32 %v461, %v461
      %v470 = vmul.f32 %v462, %v462
      %v471 = vmul.f32 %v463, %v463
      %v472 = vmul.f32 %v464, %v464
      %v473 = vmul.f32 %v465, %v465
      %v474 = vmul.f32 %v466, %v466
      %v475 = vmul.f32 %v467, %v467
      %v476 = vmul.f32 %v468, %v468
      %v477 = vmul.f32 %v469, %v469
      %v478 = vsub.f32 1.0, %v391
      %v479 = vsub.f32 1.0, %v393
      %v480 = vsub.f32 1.0, %v395
      %v481 = vsub.f32 1.0, %v397
      %v482 = vsub.f32 1.0, %v399
      %v483 = vsub.f32 1.0, %v401
      %v484 = vsub.f32 1.0, %v403
      %v485 = vsub.f32 1.0, %v405
      %v486 = vadd.f32 %v391, 1e-12
      %v487 = vadd.f32 %v393, 1e-12
      %v488 = vadd.f32 %v395, 1e-12
      %v489 = vadd.f32 %v397, 1e-12
      %v490 = vadd.f32 %v399, 1e-12
      %v491 = vadd.f32 %v401, 1e-12
      %v492 = vadd.f32 %v403, 1e-12
      %v493 = vadd.f32 %v405, 1e-12
      %v494 = vlog2.pop %v486
      %v495 = vmul.f32 %v494, 0.6931472
      %v496 = vlog2.pop %v487
      %v497 = vmul.f32 %v496, 0.6931472
      %v498 = vlog2.pop %v488
      %v499 = vmul.f32 %v498, 0.6931472
      %v500 = vlog2.pop %v489
      %v501 = vmul.f32 %v500, 0.6931472
      %v502 = vlog2.pop %v490
      %v503 = vmul.f32 %v502, 0.6931472
      %v504 = vlog2.pop %v491
      %v505 = vmul.f32 %v504, 0.6931472
      %v506 = vlog2.pop %v492
      %v507 = vmul.f32 %v506, 0.6931472
      %v508 = vlog2.pop %v493
      %v509 = vmul.f32 %v508, 0.6931472
      %v510 = vsub.f32 0.0, %v495
      %v511 = vsub.f32 0.0, %v497
      %v512 = vsub.f32 0.0, %v499
      %v513 = vsub.f32 0.0, %v501
      %v514 = vsub.f32 0.0, %v503
      %v515 = vsub.f32 0.0, %v505
      %v516 = vsub.f32 0.0, %v507
      %v517 = vsub.f32 0.0, %v509
      %v518 = vmul.f32 %v478, %v478
      %v519 = vmul.f32 %v479, %v479
      %v520 = vmul.f32 %v480, %v480
      %v521 = vmul.f32 %v481, %v481
      %v522 = vmul.f32 %v482, %v482
      %v523 = vmul.f32 %v483, %v483
      %v524 = vmul.f32 %v484, %v484
      %v525 = vmul.f32 %v485, %v485
      %v526 = vmul.f32 %v510, %v518
      %v527 = vmul.f32 %v511, %v519
      %v528 = vmul.f32 %v512, %v520
      %v529 = vmul.f32 %v513, %v521
      %v530 = vmul.f32 %v514, %v522
      %v531 = vmul.f32 %v515, %v523
      %v532 = vmul.f32 %v516, %v524
      %v533 = vmul.f32 %v517, %v525
      %v534 = vmul.f32 %v526, %v446
      %v535 = vmul.f32 %v527, %v447
      %v536 = vmul.f32 %v528, %v448
      %v537 = vmul.f32 %v529, %v449
      %v538 = vmul.f32 %v530, %v450
      %v539 = vmul.f32 %v531, %v451
      %v540 = vmul.f32 %v532, %v452
      %v541 = vmul.f32 %v533, %v453
      %v542 = vadd.f32 %v478, 1e-12
      %v543 = vadd.f32 %v479, 1e-12
      %v544 = vadd.f32 %v480, 1e-12
      %v545 = vadd.f32 %v481, 1e-12
      %v546 = vadd.f32 %v482, 1e-12
      %v547 = vadd.f32 %v483, 1e-12
      %v548 = vadd.f32 %v484, 1e-12
      %v549 = vadd.f32 %v485, 1e-12
      %v550 = vlog2.pop %v542
      %v551 = vmul.f32 %v550, 0.6931472
      %v552 = vlog2.pop %v543
      %v553 = vmul.f32 %v552, 0.6931472
      %v554 = vlog2.pop %v544
      %v555 = vmul.f32 %v554, 0.6931472
      %v556 = vlog2.pop %v545
      %v557 = vmul.f32 %v556, 0.6931472
      %v558 = vlog2.pop %v546
      %v559 = vmul.f32 %v558, 0.6931472
      %v560 = vlog2.pop %v547
      %v561 = vmul.f32 %v560, 0.6931472
      %v562 = vlog2.pop %v548
      %v563 = vmul.f32 %v562, 0.6931472
      %v564 = vlog2.pop %v549
      %v565 = vmul.f32 %v564, 0.6931472
      %v566 = vsub.f32 0.0, %v551
      %v567 = vsub.f32 0.0, %v553
      %v568 = vsub.f32 0.0, %v555
      %v569 = vsub.f32 0.0, %v557
      %v570 = vsub.f32 0.0, %v559
      %v571 = vsub.f32 0.0, %v561
      %v572 = vsub.f32 0.0, %v563
      %v573 = vsub.f32 0.0, %v565
      %v574 = vmul.f32 %v391, %v391
      %v575 = vmul.f32 %v393, %v393
      %v576 = vmul.f32 %v395, %v395
      %v577 = vmul.f32 %v397, %v397
      %v578 = vmul.f32 %v399, %v399
      %v579 = vmul.f32 %v401, %v401
      %v580 = vmul.f32 %v403, %v403
      %v581 = vmul.f32 %v405, %v405
      %v582 = vmul.f32 %v566, %v574
      %v583 = vmul.f32 %v567, %v575
      %v584 = vmul.f32 %v568, %v576
      %v585 = vmul.f32 %v569, %v577
      %v586 = vmul.f32 %v570, %v578
      %v587 = vmul.f32 %v571, %v579
      %v588 = vmul.f32 %v572, %v580
      %v589 = vmul.f32 %v573, %v581
      %v590 = vmul.f32 %v582, %v470
      %v591 = vmul.f32 %v583, %v471
      %v592 = vmul.f32 %v584, %v472
      %v593 = vmul.f32 %v585, %v473
      %v594 = vmul.f32 %v586, %v474
      %v595 = vmul.f32 %v587, %v475
      %v596 = vmul.f32 %v588, %v476
      %v597 = vmul.f32 %v589, %v477
      %v598 = vadd.f32 %v534, %v590
      %v599 = vadd.f32 %v535, %v591
      %v600 = vadd.f32 %v536, %v592
      %v601 = vadd.f32 %v537, %v593
      %v602 = vadd.f32 %v538, %v594
      %v603 = vadd.f32 %v539, %v595
      %v604 = vadd.f32 %v540, %v596
      %v605 = vadd.f32 %v541, %v597
      %vm606 = vcmask 31744
      %v607 = vsel %vm606, %v598, 0.0
      %v608 = vsel %vm606, %v599, 0.0
      %v609 = vadd.f32 %v607, %v608
      %v610 = vsel %vm606, %v600, 0.0
      %v611 = vadd.f32 %v609, %v610
      %v612 = vsel %vm606, %v601, 0.0
      %v613 = vadd.f32 %v611, %v612
      %v614 = vsel %vm606, %v602, 0.0
      %v615 = vadd.f32 %v613, %v614
      %v616 = vsel %vm606, %v603, 0.0
      %v617 = vadd.f32 %v615, %v616
      %v618 = vsel %vm606, %v604, 0.0
      %v619 = vadd.f32 %v617, %v618
      %v620 = vsel %vm606, %v605, 0.0
      %v621 = vadd.f32 %v619, %v620
      %622 = vadd.xlane.f32.xlu0 %v621
      %v623 = vpop.xlane.xlu0 %622
      %v624 = vrot.slane %v623, 4
      %v625 = vadd.f32 %v623, %v624
      %v626 = vrot.slane %v625, 2
      %v627 = vadd.f32 %v625, %v626
      %v628 = vrot.slane %v627, 1
      %v629 = vadd.f32 %v627, %v628
      %s630 = vtos %v629
      %v631 = vsel %vm606, %v446, 0.0
      %v632 = vsel %vm606, %v447, 0.0
      %v633 = vadd.f32 %v631, %v632
      %v634 = vsel %vm606, %v448, 0.0
      %v635 = vadd.f32 %v633, %v634
      %v636 = vsel %vm606, %v449, 0.0
      %v637 = vadd.f32 %v635, %v636
      %v638 = vsel %vm606, %v450, 0.0
      %v639 = vadd.f32 %v637, %v638
      %v640 = vsel %vm606, %v451, 0.0
      %v641 = vadd.f32 %v639, %v640
      %v642 = vsel %vm606, %v452, 0.0
      %v643 = vadd.f32 %v641, %v642
      %v644 = vsel %vm606, %v453, 0.0
      %v645 = vadd.f32 %v643, %v644
      %646 = vadd.xlane.f32.xlu0 %v645
      %v647 = vpop.xlane.xlu0 %646
      %v648 = vrot.slane %v647, 4
      %v649 = vadd.f32 %v647, %v648
      %v650 = vrot.slane %v649, 2
      %v651 = vadd.f32 %v649, %v650
      %v652 = vrot.slane %v651, 1
      %v653 = vadd.f32 %v651, %v652
      %s654 = vtos %v653
      %663 = vrot.lane.b32.xlu0 %v414, 5
      %v664 = vpop.permute.xlu0 %663
      %665 = vrot.lane.b32.xlu0 %v415, 5
      %v666 = vpop.permute.xlu0 %665
      %667 = vrot.lane.b32.xlu0 %v416, 5
      %v668 = vpop.permute.xlu0 %667
      %669 = vrot.lane.b32.xlu0 %v417, 5
      %v670 = vpop.permute.xlu0 %669
      %671 = vrot.lane.b32.xlu0 %v418, 5
      %v672 = vpop.permute.xlu0 %671
      %673 = vrot.lane.b32.xlu0 %v419, 5
      %v674 = vpop.permute.xlu0 %673
      %675 = vrot.lane.b32.xlu0 %v420, 5
      %v676 = vpop.permute.xlu0 %675
      %677 = vrot.lane.b32.xlu0 %v421, 5
      %v678 = vpop.permute.xlu0 %677
      %v687 = vsub.f32 %v422, %v664
      %v688 = vsub.f32 %v423, %v666
      %v689 = vsub.f32 %v424, %v668
      %v690 = vsub.f32 %v425, %v670
      %v691 = vsub.f32 %v426, %v672
      %v692 = vsub.f32 %v427, %v674
      %v693 = vsub.f32 %v428, %v676
      %v694 = vsub.f32 %v429, %v678
      %695 = vrot.lane.b32.xlu0 %v414, 3
      %v696 = vpop.permute.xlu0 %695
      %697 = vrot.lane.b32.xlu0 %v415, 3
      %v698 = vpop.permute.xlu0 %697
      %699 = vrot.lane.b32.xlu0 %v416, 3
      %v700 = vpop.permute.xlu0 %699
      %701 = vrot.lane.b32.xlu0 %v417, 3
      %v702 = vpop.permute.xlu0 %701
      %703 = vrot.lane.b32.xlu0 %v418, 3
      %v704 = vpop.permute.xlu0 %703
      %705 = vrot.lane.b32.xlu0 %v419, 3
      %v706 = vpop.permute.xlu0 %705
      %707 = vrot.lane.b32.xlu0 %v420, 3
      %v708 = vpop.permute.xlu0 %707
      %709 = vrot.lane.b32.xlu0 %v421, 3
      %v710 = vpop.permute.xlu0 %709
      %v719 = vadd.f32 %v422, %v696
      %v720 = vadd.f32 %v423, %v698
      %v721 = vadd.f32 %v424, %v700
      %v722 = vadd.f32 %v425, %v702
      %v723 = vadd.f32 %v426, %v704
      %v724 = vadd.f32 %v427, %v706
      %v725 = vadd.f32 %v428, %v708
      %v726 = vadd.f32 %v429, %v710
      %735 = vrot.lane.b32.xlu0 %v422, 5
      %v736 = vpop.permute.xlu0 %735
      %737 = vrot.lane.b32.xlu0 %v423, 5
      %v738 = vpop.permute.xlu0 %737
      %739 = vrot.lane.b32.xlu0 %v424, 5
      %v740 = vpop.permute.xlu0 %739
      %741 = vrot.lane.b32.xlu0 %v425, 5
      %v742 = vpop.permute.xlu0 %741
      %743 = vrot.lane.b32.xlu0 %v426, 5
      %v744 = vpop.permute.xlu0 %743
      %745 = vrot.lane.b32.xlu0 %v427, 5
      %v746 = vpop.permute.xlu0 %745
      %747 = vrot.lane.b32.xlu0 %v428, 5
      %v748 = vpop.permute.xlu0 %747
      %749 = vrot.lane.b32.xlu0 %v429, 5
      %v750 = vpop.permute.xlu0 %749
      %v759 = vmax.f32 %v687, %v736
      %v760 = vmax.f32 %v688, %v738
      %v761 = vmax.f32 %v689, %v740
      %v762 = vmax.f32 %v690, %v742
      %v763 = vmax.f32 %v691, %v744
      %v764 = vmax.f32 %v692, %v746
      %v765 = vmax.f32 %v693, %v748
      %v766 = vmax.f32 %v694, %v750
      %767 = vrot.lane.b32.xlu0 %v422, 3
      %v768 = vpop.permute.xlu0 %767
      %769 = vrot.lane.b32.xlu0 %v423, 3
      %v770 = vpop.permute.xlu0 %769
      %771 = vrot.lane.b32.xlu0 %v424, 3
      %v772 = vpop.permute.xlu0 %771
      %773 = vrot.lane.b32.xlu0 %v425, 3
      %v774 = vpop.permute.xlu0 %773
      %775 = vrot.lane.b32.xlu0 %v426, 3
      %v776 = vpop.permute.xlu0 %775
      %777 = vrot.lane.b32.xlu0 %v427, 3
      %v778 = vpop.permute.xlu0 %777
      %779 = vrot.lane.b32.xlu0 %v428, 3
      %v780 = vpop.permute.xlu0 %779
      %781 = vrot.lane.b32.xlu0 %v429, 3
      %v782 = vpop.permute.xlu0 %781
      %v791 = vmin.f32 %v719, %v768
      %v792 = vmin.f32 %v720, %v770
      %v793 = vmin.f32 %v721, %v772
      %v794 = vmin.f32 %v722, %v774
      %v795 = vmin.f32 %v723, %v776
      %v796 = vmin.f32 %v724, %v778
      %v797 = vmin.f32 %v725, %v780
      %v798 = vmin.f32 %v726, %v782
      %v799 = vsub.f32 %v791, %v759
      %v800 = vsub.f32 %v792, %v760
      %v801 = vsub.f32 %v793, %v761
      %v802 = vsub.f32 %v794, %v762
      %v803 = vsub.f32 %v795, %v763
      %v804 = vsub.f32 %v796, %v764
      %v805 = vsub.f32 %v797, %v765
      %v806 = vsub.f32 %v798, %v766
      %v807 = vmax.f32 %v799, 0.0
      %v808 = vmax.f32 %v800, 0.0
      %v809 = vmax.f32 %v801, 0.0
      %v810 = vmax.f32 %v802, 0.0
      %v811 = vmax.f32 %v803, 0.0
      %v812 = vmax.f32 %v804, 0.0
      %v813 = vmax.f32 %v805, 0.0
      %v814 = vmax.f32 %v806, 0.0
      %823 = vrot.lane.b32.xlu0 %v807, 127
      %v824 = vpop.permute.xlu0 %823
      %825 = vrot.lane.b32.xlu0 %v808, 127
      %v826 = vpop.permute.xlu0 %825
      %827 = vrot.lane.b32.xlu0 %v809, 127
      %v828 = vpop.permute.xlu0 %827
      %829 = vrot.lane.b32.xlu0 %v810, 127
      %v830 = vpop.permute.xlu0 %829
      %831 = vrot.lane.b32.xlu0 %v811, 127
      %v832 = vpop.permute.xlu0 %831
      %833 = vrot.lane.b32.xlu0 %v812, 127
      %v834 = vpop.permute.xlu0 %833
      %835 = vrot.lane.b32.xlu0 %v813, 127
      %v836 = vpop.permute.xlu0 %835
      %837 = vrot.lane.b32.xlu0 %v814, 127
      %v838 = vpop.permute.xlu0 %837
      %v847 = vmul.f32 %v807, %v824
      %v848 = vmul.f32 %v808, %v826
      %v849 = vmul.f32 %v809, %v828
      %v850 = vmul.f32 %v810, %v830
      %v851 = vmul.f32 %v811, %v832
      %v852 = vmul.f32 %v812, %v834
      %v853 = vmul.f32 %v813, %v836
      %v854 = vmul.f32 %v814, %v838
      %v855 = vsub.f32 %v719, %v687
      %v856 = vsub.f32 %v720, %v688
      %v857 = vsub.f32 %v721, %v689
      %v858 = vsub.f32 %v722, %v690
      %v859 = vsub.f32 %v723, %v691
      %v860 = vsub.f32 %v724, %v692
      %v861 = vsub.f32 %v725, %v693
      %v862 = vsub.f32 %v726, %v694
      %863 = vrot.lane.b32.xlu0 %v422, 2
      %v864 = vpop.permute.xlu0 %863
      %865 = vrot.lane.b32.xlu0 %v423, 2
      %v866 = vpop.permute.xlu0 %865
      %867 = vrot.lane.b32.xlu0 %v424, 2
      %v868 = vpop.permute.xlu0 %867
      %869 = vrot.lane.b32.xlu0 %v425, 2
      %v870 = vpop.permute.xlu0 %869
      %871 = vrot.lane.b32.xlu0 %v426, 2
      %v872 = vpop.permute.xlu0 %871
      %873 = vrot.lane.b32.xlu0 %v427, 2
      %v874 = vpop.permute.xlu0 %873
      %875 = vrot.lane.b32.xlu0 %v428, 2
      %v876 = vpop.permute.xlu0 %875
      %877 = vrot.lane.b32.xlu0 %v429, 2
      %v878 = vpop.permute.xlu0 %877
      %v887 = vsub.f32 %v422, %v864
      %v888 = vsub.f32 %v423, %v866
      %v889 = vsub.f32 %v424, %v868
      %v890 = vsub.f32 %v425, %v870
      %v891 = vsub.f32 %v426, %v872
      %v892 = vsub.f32 %v427, %v874
      %v893 = vsub.f32 %v428, %v876
      %v894 = vsub.f32 %v429, %v878
      %903 = vrot.lane.b32.xlu0 %v855, 127
      %v904 = vpop.permute.xlu0 %903
      %905 = vrot.lane.b32.xlu0 %v856, 127
      %v906 = vpop.permute.xlu0 %905
      %907 = vrot.lane.b32.xlu0 %v857, 127
      %v908 = vpop.permute.xlu0 %907
      %909 = vrot.lane.b32.xlu0 %v858, 127
      %v910 = vpop.permute.xlu0 %909
      %911 = vrot.lane.b32.xlu0 %v859, 127
      %v912 = vpop.permute.xlu0 %911
      %913 = vrot.lane.b32.xlu0 %v860, 127
      %v914 = vpop.permute.xlu0 %913
      %915 = vrot.lane.b32.xlu0 %v861, 127
      %v916 = vpop.permute.xlu0 %915
      %917 = vrot.lane.b32.xlu0 %v862, 127
      %v918 = vpop.permute.xlu0 %917
      %v927 = vmul.f32 %v855, %v904
      %v928 = vmul.f32 %v856, %v906
      %v929 = vmul.f32 %v857, %v908
      %v930 = vmul.f32 %v858, %v910
      %v931 = vmul.f32 %v859, %v912
      %v932 = vmul.f32 %v860, %v914
      %v933 = vmul.f32 %v861, %v916
      %v934 = vmul.f32 %v862, %v918
      %943 = vrot.lane.b32.xlu0 %v887, 127
      %v944 = vpop.permute.xlu0 %943
      %945 = vrot.lane.b32.xlu0 %v888, 127
      %v946 = vpop.permute.xlu0 %945
      %947 = vrot.lane.b32.xlu0 %v889, 127
      %v948 = vpop.permute.xlu0 %947
      %949 = vrot.lane.b32.xlu0 %v890, 127
      %v950 = vpop.permute.xlu0 %949
      %951 = vrot.lane.b32.xlu0 %v891, 127
      %v952 = vpop.permute.xlu0 %951
      %953 = vrot.lane.b32.xlu0 %v892, 127
      %v954 = vpop.permute.xlu0 %953
      %955 = vrot.lane.b32.xlu0 %v893, 127
      %v956 = vpop.permute.xlu0 %955
      %957 = vrot.lane.b32.xlu0 %v894, 127
      %v958 = vpop.permute.xlu0 %957
      %v967 = vmul.f32 %v887, %v944
      %v968 = vmul.f32 %v888, %v946
      %v969 = vmul.f32 %v889, %v948
      %v970 = vmul.f32 %v890, %v950
      %v971 = vmul.f32 %v891, %v952
      %v972 = vmul.f32 %v892, %v954
      %v973 = vmul.f32 %v893, %v956
      %v974 = vmul.f32 %v894, %v958
      %983 = vrot.lane.b32.xlu0 %v967, 3
      %v984 = vpop.permute.xlu0 %983
      %985 = vrot.lane.b32.xlu0 %v968, 3
      %v986 = vpop.permute.xlu0 %985
      %987 = vrot.lane.b32.xlu0 %v969, 3
      %v988 = vpop.permute.xlu0 %987
      %989 = vrot.lane.b32.xlu0 %v970, 3
      %v990 = vpop.permute.xlu0 %989
      %991 = vrot.lane.b32.xlu0 %v971, 3
      %v992 = vpop.permute.xlu0 %991
      %993 = vrot.lane.b32.xlu0 %v972, 3
      %v994 = vpop.permute.xlu0 %993
      %995 = vrot.lane.b32.xlu0 %v973, 3
      %v996 = vpop.permute.xlu0 %995
      %997 = vrot.lane.b32.xlu0 %v974, 3
      %v998 = vpop.permute.xlu0 %997
      %v1007 = vadd.f32 %v927, %v984
      %v1008 = vadd.f32 %v928, %v986
      %v1009 = vadd.f32 %v929, %v988
      %v1010 = vadd.f32 %v930, %v990
      %v1011 = vadd.f32 %v931, %v992
      %v1012 = vadd.f32 %v932, %v994
      %v1013 = vadd.f32 %v933, %v996
      %v1014 = vadd.f32 %v934, %v998
      %v1015 = vsub.f32 %v1007, %v847
      %v1016 = vsub.f32 %v1008, %v848
      %v1017 = vsub.f32 %v1009, %v849
      %v1018 = vsub.f32 %v1010, %v850
      %v1019 = vsub.f32 %v1011, %v851
      %v1020 = vsub.f32 %v1012, %v852
      %v1021 = vsub.f32 %v1013, %v853
      %v1022 = vsub.f32 %v1014, %v854
      %v1023 = vmax.f32 %v1015, 1e-07
      %v1024 = vmax.f32 %v1016, 1e-07
      %v1025 = vmax.f32 %v1017, 1e-07
      %v1026 = vmax.f32 %v1018, 1e-07
      %v1027 = vmax.f32 %v1019, 1e-07
      %v1028 = vmax.f32 %v1020, 1e-07
      %v1029 = vmax.f32 %v1021, 1e-07
      %v1030 = vmax.f32 %v1022, 1e-07
      %v1031 = vrcp.pop %v1023
      %v1032 = vrcp.pop %v1024
      %v1033 = vrcp.pop %v1025
      %v1034 = vrcp.pop %v1026
      %v1035 = vrcp.pop %v1027
      %v1036 = vrcp.pop %v1028
      %v1037 = vrcp.pop %v1029
      %v1038 = vrcp.pop %v1030
      %v1039 = vmul.f32 %v847, %v1031
      %v1040 = vmul.f32 %v848, %v1032
      %v1041 = vmul.f32 %v849, %v1033
      %v1042 = vmul.f32 %v850, %v1034
      %v1043 = vmul.f32 %v851, %v1035
      %v1044 = vmul.f32 %v852, %v1036
      %v1045 = vmul.f32 %v853, %v1037
      %v1046 = vmul.f32 %v854, %v1038
      %v1047 = vmin.f32 %v687, %v736
      %v1048 = vmin.f32 %v688, %v738
      %v1049 = vmin.f32 %v689, %v740
      %v1050 = vmin.f32 %v690, %v742
      %v1051 = vmin.f32 %v691, %v744
      %v1052 = vmin.f32 %v692, %v746
      %v1053 = vmin.f32 %v693, %v748
      %v1054 = vmin.f32 %v694, %v750
      %v1055 = vmax.f32 %v719, %v768
      %v1056 = vmax.f32 %v720, %v770
      %v1057 = vmax.f32 %v721, %v772
      %v1058 = vmax.f32 %v722, %v774
      %v1059 = vmax.f32 %v723, %v776
      %v1060 = vmax.f32 %v724, %v778
      %v1061 = vmax.f32 %v725, %v780
      %v1062 = vmax.f32 %v726, %v782
      %v1063 = vsub.f32 %v1055, %v1047
      %v1064 = vsub.f32 %v1056, %v1048
      %v1065 = vsub.f32 %v1057, %v1049
      %v1066 = vsub.f32 %v1058, %v1050
      %v1067 = vsub.f32 %v1059, %v1051
      %v1068 = vsub.f32 %v1060, %v1052
      %v1069 = vsub.f32 %v1061, %v1053
      %v1070 = vsub.f32 %v1062, %v1054
      %v1071 = vmax.f32 %v1063, 0.0
      %v1072 = vmax.f32 %v1064, 0.0
      %v1073 = vmax.f32 %v1065, 0.0
      %v1074 = vmax.f32 %v1066, 0.0
      %v1075 = vmax.f32 %v1067, 0.0
      %v1076 = vmax.f32 %v1068, 0.0
      %v1077 = vmax.f32 %v1069, 0.0
      %v1078 = vmax.f32 %v1070, 0.0
      %1087 = vrot.lane.b32.xlu0 %v1071, 127
      %v1088 = vpop.permute.xlu0 %1087
      %1089 = vrot.lane.b32.xlu0 %v1072, 127
      %v1090 = vpop.permute.xlu0 %1089
      %1091 = vrot.lane.b32.xlu0 %v1073, 127
      %v1092 = vpop.permute.xlu0 %1091
      %1093 = vrot.lane.b32.xlu0 %v1074, 127
      %v1094 = vpop.permute.xlu0 %1093
      %1095 = vrot.lane.b32.xlu0 %v1075, 127
      %v1096 = vpop.permute.xlu0 %1095
      %1097 = vrot.lane.b32.xlu0 %v1076, 127
      %v1098 = vpop.permute.xlu0 %1097
      %1099 = vrot.lane.b32.xlu0 %v1077, 127
      %v1100 = vpop.permute.xlu0 %1099
      %1101 = vrot.lane.b32.xlu0 %v1078, 127
      %v1102 = vpop.permute.xlu0 %1101
      %v1111 = vmul.f32 %v1071, %v1088
      %v1112 = vmul.f32 %v1072, %v1090
      %v1113 = vmul.f32 %v1073, %v1092
      %v1114 = vmul.f32 %v1074, %v1094
      %v1115 = vmul.f32 %v1075, %v1096
      %v1116 = vmul.f32 %v1076, %v1098
      %v1117 = vmul.f32 %v1077, %v1100
      %v1118 = vmul.f32 %v1078, %v1102
      %v1119 = vmax.f32 %v1111, 1e-07
      %v1120 = vmax.f32 %v1112, 1e-07
      %v1121 = vmax.f32 %v1113, 1e-07
      %v1122 = vmax.f32 %v1114, 1e-07
      %v1123 = vmax.f32 %v1115, 1e-07
      %v1124 = vmax.f32 %v1116, 1e-07
      %v1125 = vmax.f32 %v1117, 1e-07
      %v1126 = vmax.f32 %v1118, 1e-07
      %v1127 = vsub.f32 %v1119, %v1023
      %v1128 = vsub.f32 %v1120, %v1024
      %v1129 = vsub.f32 %v1121, %v1025
      %v1130 = vsub.f32 %v1122, %v1026
      %v1131 = vsub.f32 %v1123, %v1027
      %v1132 = vsub.f32 %v1124, %v1028
      %v1133 = vsub.f32 %v1125, %v1029
      %v1134 = vsub.f32 %v1126, %v1030
      %v1135 = vrcp.pop %v1119
      %v1136 = vrcp.pop %v1120
      %v1137 = vrcp.pop %v1121
      %v1138 = vrcp.pop %v1122
      %v1139 = vrcp.pop %v1123
      %v1140 = vrcp.pop %v1124
      %v1141 = vrcp.pop %v1125
      %v1142 = vrcp.pop %v1126
      %v1143 = vmul.f32 %v1127, %v1135
      %v1144 = vmul.f32 %v1128, %v1136
      %v1145 = vmul.f32 %v1129, %v1137
      %v1146 = vmul.f32 %v1130, %v1138
      %v1147 = vmul.f32 %v1131, %v1139
      %v1148 = vmul.f32 %v1132, %v1140
      %v1149 = vmul.f32 %v1133, %v1141
      %v1150 = vmul.f32 %v1134, %v1142
      %v1151 = vsub.f32 %v1039, %v1143
      %v1152 = vsub.f32 %v1040, %v1144
      %v1153 = vsub.f32 %v1041, %v1145
      %v1154 = vsub.f32 %v1042, %v1146
      %v1155 = vsub.f32 %v1043, %v1147
      %v1156 = vsub.f32 %v1044, %v1148
      %v1157 = vsub.f32 %v1045, %v1149
      %v1158 = vsub.f32 %v1046, %v1150
      %vm1159 = vcmp.gt.f32.partialorder %v422, 0.0
      %vm1160 = vcmp.gt.f32.partialorder %v423, 0.0
      %vm1161 = vcmp.gt.f32.partialorder %v424, 0.0
      %vm1162 = vcmp.gt.f32.partialorder %v425, 0.0
      %vm1163 = vcmp.gt.f32.partialorder %v426, 0.0
      %vm1164 = vcmp.gt.f32.partialorder %v427, 0.0
      %vm1165 = vcmp.gt.f32.partialorder %v428, 0.0
      %vm1166 = vcmp.gt.f32.partialorder %v429, 0.0
      %v1167 = vsel %vm1159, 1, 0
      %v1168 = vsel %vm1160, 1, 0
      %v1169 = vsel %vm1161, 1, 0
      %v1170 = vsel %vm1162, 1, 0
      %v1171 = vsel %vm1163, 1, 0
      %v1172 = vsel %vm1164, 1, 0
      %v1173 = vsel %vm1165, 1, 0
      %v1174 = vsel %vm1166, 1, 0
      %v1175 = vcvt.s32.f32 %v1167
      %v1176 = vcvt.s32.f32 %v1168
      %v1177 = vcvt.s32.f32 %v1169
      %v1178 = vcvt.s32.f32 %v1170
      %v1179 = vcvt.s32.f32 %v1171
      %v1180 = vcvt.s32.f32 %v1172
      %v1181 = vcvt.s32.f32 %v1173
      %v1182 = vcvt.s32.f32 %v1174
      %v1183 = vsub.f32 1.0, %v1151
      %v1184 = vsub.f32 1.0, %v1152
      %v1185 = vsub.f32 1.0, %v1153
      %v1186 = vsub.f32 1.0, %v1154
      %v1187 = vsub.f32 1.0, %v1155
      %v1188 = vsub.f32 1.0, %v1156
      %v1189 = vsub.f32 1.0, %v1157
      %v1190 = vsub.f32 1.0, %v1158
      %1191 = vrot.lane.b32.xlu0 %v422, 1
      %v1192 = vpop.permute.xlu0 %1191
      %1193 = vrot.lane.b32.xlu0 %v423, 1
      %v1194 = vpop.permute.xlu0 %1193
      %1195 = vrot.lane.b32.xlu0 %v424, 1
      %v1196 = vpop.permute.xlu0 %1195
      %1197 = vrot.lane.b32.xlu0 %v425, 1
      %v1198 = vpop.permute.xlu0 %1197
      %1199 = vrot.lane.b32.xlu0 %v426, 1
      %v1200 = vpop.permute.xlu0 %1199
      %1201 = vrot.lane.b32.xlu0 %v427, 1
      %v1202 = vpop.permute.xlu0 %1201
      %1203 = vrot.lane.b32.xlu0 %v428, 1
      %v1204 = vpop.permute.xlu0 %1203
      %1205 = vrot.lane.b32.xlu0 %v429, 1
      %v1206 = vpop.permute.xlu0 %1205
      %v1215 = vmul.f32 %v1183, %v1192
      %v1216 = vmul.f32 %v1184, %v1194
      %v1217 = vmul.f32 %v1185, %v1196
      %v1218 = vmul.f32 %v1186, %v1198
      %v1219 = vmul.f32 %v1187, %v1200
      %v1220 = vmul.f32 %v1188, %v1202
      %v1221 = vmul.f32 %v1189, %v1204
      %v1222 = vmul.f32 %v1190, %v1206
      %1231 = vrot.lane.b32.xlu0 %v1175, 1
      %v1232 = vpop.permute.xlu0 %1231
      %1233 = vrot.lane.b32.xlu0 %v1176, 1
      %v1234 = vpop.permute.xlu0 %1233
      %1235 = vrot.lane.b32.xlu0 %v1177, 1
      %v1236 = vpop.permute.xlu0 %1235
      %1237 = vrot.lane.b32.xlu0 %v1178, 1
      %v1238 = vpop.permute.xlu0 %1237
      %1239 = vrot.lane.b32.xlu0 %v1179, 1
      %v1240 = vpop.permute.xlu0 %1239
      %1241 = vrot.lane.b32.xlu0 %v1180, 1
      %v1242 = vpop.permute.xlu0 %1241
      %1243 = vrot.lane.b32.xlu0 %v1181, 1
      %v1244 = vpop.permute.xlu0 %1243
      %1245 = vrot.lane.b32.xlu0 %v1182, 1
      %v1246 = vpop.permute.xlu0 %1245
      %v1255 = vmul.f32 %v1215, %v1232
      %v1256 = vmul.f32 %v1216, %v1234
      %v1257 = vmul.f32 %v1217, %v1236
      %v1258 = vmul.f32 %v1218, %v1238
      %v1259 = vmul.f32 %v1219, %v1240
      %v1260 = vmul.f32 %v1220, %v1242
      %v1261 = vmul.f32 %v1221, %v1244
      %v1262 = vmul.f32 %v1222, %v1246
      %1271 = vrot.lane.b32.xlu0 %v1255, 119
      %v1272 = vpop.permute.xlu0 %1271
      %1273 = vrot.lane.b32.xlu0 %v1256, 119
      %v1274 = vpop.permute.xlu0 %1273
      %1275 = vrot.lane.b32.xlu0 %v1257, 119
      %v1276 = vpop.permute.xlu0 %1275
      %1277 = vrot.lane.b32.xlu0 %v1258, 119
      %v1278 = vpop.permute.xlu0 %1277
      %1279 = vrot.lane.b32.xlu0 %v1259, 119
      %v1280 = vpop.permute.xlu0 %1279
      %1281 = vrot.lane.b32.xlu0 %v1260, 119
      %v1282 = vpop.permute.xlu0 %1281
      %1283 = vrot.lane.b32.xlu0 %v1261, 119
      %v1284 = vpop.permute.xlu0 %1283
      %1285 = vrot.lane.b32.xlu0 %v1262, 119
      %v1286 = vpop.permute.xlu0 %1285
      %vm1295 = vcmask 7168
      %v1296 = vsel %vm1295, %v1272, 0.0
      %v1297 = vsel %vm1295, %v1274, 0.0
      %v1298 = vadd.f32 %v1296, %v1297
      %v1299 = vsel %vm1295, %v1276, 0.0
      %v1300 = vadd.f32 %v1298, %v1299
      %v1301 = vsel %vm1295, %v1278, 0.0
      %v1302 = vadd.f32 %v1300, %v1301
      %v1303 = vsel %vm1295, %v1280, 0.0
      %v1304 = vadd.f32 %v1302, %v1303
      %v1305 = vsel %vm1295, %v1282, 0.0
      %v1306 = vadd.f32 %v1304, %v1305
      %v1307 = vsel %vm1295, %v1284, 0.0
      %v1308 = vadd.f32 %v1306, %v1307
      %v1309 = vsel %vm1295, %v1286, 0.0
      %v1310 = vadd.f32 %v1308, %v1309
      %1311 = vadd.xlane.f32.xlu0 %v1310
      %v1312 = vpop.xlane.xlu0 %1311
      %v1313 = vrot.slane %v1312, 4
      %v1314 = vadd.f32 %v1312, %v1313
      %v1315 = vrot.slane %v1314, 2
      %v1316 = vadd.f32 %v1314, %v1315
      %v1317 = vrot.slane %v1316, 1
      %v1318 = vadd.f32 %v1316, %v1317
      %s1319 = vtos %v1318
      %1320 = vrot.lane.b32.xlu0 %v422, 120
      %v1321 = vpop.permute.xlu0 %1320
      %1322 = vrot.lane.b32.xlu0 %v423, 120
      %v1323 = vpop.permute.xlu0 %1322
      %1324 = vrot.lane.b32.xlu0 %v424, 120
      %v1325 = vpop.permute.xlu0 %1324
      %1326 = vrot.lane.b32.xlu0 %v425, 120
      %v1327 = vpop.permute.xlu0 %1326
      %1328 = vrot.lane.b32.xlu0 %v426, 120
      %v1329 = vpop.permute.xlu0 %1328
      %1330 = vrot.lane.b32.xlu0 %v427, 120
      %v1331 = vpop.permute.xlu0 %1330
      %1332 = vrot.lane.b32.xlu0 %v428, 120
      %v1333 = vpop.permute.xlu0 %1332
      %1334 = vrot.lane.b32.xlu0 %v429, 120
      %v1335 = vpop.permute.xlu0 %1334
      %v1344 = vsel %vm1295, %v1321, 0.0
      %v1345 = vsel %vm1295, %v1323, 0.0
      %v1346 = vadd.f32 %v1344, %v1345
      %v1347 = vsel %vm1295, %v1325, 0.0
      %v1348 = vadd.f32 %v1346, %v1347
      %v1349 = vsel %vm1295, %v1327, 0.0
      %v1350 = vadd.f32 %v1348, %v1349
      %v1351 = vsel %vm1295, %v1329, 0.0
      %v1352 = vadd.f32 %v1350, %v1351
      %v1353 = vsel %vm1295, %v1331, 0.0
      %v1354 = vadd.f32 %v1352, %v1353
      %v1355 = vsel %vm1295, %v1333, 0.0
      %v1356 = vadd.f32 %v1354, %v1355
      %v1357 = vsel %vm1295, %v1335, 0.0
      %v1358 = vadd.f32 %v1356, %v1357
      %1359 = vadd.xlane.f32.xlu0 %v1358
      %v1360 = vpop.xlane.xlu0 %1359
      %v1361 = vrot.slane %v1360, 4
      %v1362 = vadd.f32 %v1360, %v1361
      %v1363 = vrot.slane %v1362, 2
      %v1364 = vadd.f32 %v1362, %v1363
      %v1365 = vrot.slane %v1364, 1
      %v1366 = vadd.f32 %v1364, %v1365
      %s1367 = vtos %v1366
      %v1368 = vlaneseq
      %v1369 = vshrl.u32 %v1368, 7
      %v1370 = vld [vmem:[%s4] sm:$0xff]
      %vm1371 = vcmp.eq.s32.totalorder %v1369, 0
      %v1372 = vstv %s630
      %v1373 = vsel %vm1371, %v1372, 0.0
      %vm1374 = vcmp.eq.s32.totalorder %v1369, 1
      %v1375 = vstv %s654
      %v1376 = vsel %vm1374, %v1375, 0.0
      %v1377 = vadd.f32 %v1373, %v1376
      %vm1378 = vcmp.eq.s32.totalorder %v1369, 2
      %v1379 = vstv %s1319
      %v1380 = vsel %vm1378, %v1379, 0.0
      %v1381 = vadd.f32 %v1377, %v1380
      %vm1382 = vcmp.eq.s32.totalorder %v1369, 3
      %v1383 = vstv %s1367
      %v1384 = vsel %vm1382, %v1383, 0.0
      %v1385 = vadd.f32 %v1381, %v1384
      %v1386 = vadd.f32 %v1370, %v1385
      %1387 = vst [vmem:[%s4] sm:$0xff] %v1386
      // Predicated region
      $region41: #{ttfnet_forward.7} parent=35 // pred_check
        %p1388 = pneg %p122
      $region42: #{ttfnet_forward.7} parent=35 // pred_check_branch
        %1390 = sbr.rel (%p1388) target = $region44
      $region43: #{ttfnet_forward.7} parent=35 // pred_region
        _
      $region44: #{ttfnet_forward.7} parent=35 // pred_fallthru
        _
      // Predicated region
      $region45: #{ttfnet_forward.7} parent=35 // pred_check
        %p1391 = pneg %p122
      $region46: #{ttfnet_forward.7} parent=35 // pred_check_branch
        %1393 = sbr.rel (%p1391) target = $region48
      $region47: #{ttfnet_forward.7} parent=35 // pred_region
        _
      $region48: #{ttfnet_forward.7} parent=35 // pred_fallthru
        _
    $region36: #{ttfnet_forward.7} parent=5 // pred_fallthru
      _
    %p1394 = scmp.le.s32.totalorder 2, %s10
    // Predicated region
    $region49: #{ttfnet_forward.7} parent=5 // pred_check
      %p1395 = pneg %p1394
    $region50: #{ttfnet_forward.7} parent=5 // pred_check_branch
      %1397 = sbr.rel (%p1395) target = $region52
    $region51: #{ttfnet_forward.7} parent=5 // pred_region
      %s1398 = ssub.s32 %s10, 2
    $region52: #{ttfnet_forward.7} parent=5 // pred_fallthru
      _
  $region6: #{ttfnet_forward.7} parent=0 // loop_footer
    %s14 = sadd.s32 1, %s10
  $region7: #{ttfnet_forward.7} parent=0 // loop_footer_branch
    %9 = sbr.rel target = $region3
  $region8: #{ttfnet_forward.7} parent=0 // loop_exit
    _

</llo_original>
